<compile_context>
chip_gen: v5e
topology: v5e:2x2
jax: 0.10.0
libtpu: 0.0.40
codegen_flags: <defaults>
</compile_context>

<pallas_src>
import jax
import jax.numpy as jnp
from jax import lax
from jax.experimental import pallas as pl
from jax.experimental.pallas import tpu as pltpu

EPS = 1e-5
_ROW_TILE = 512  # max GEMM row tile (multiple of 8 and 128)


# ----------------------------------------------------------------------------
# small helpers (static-shape host logic)
# ----------------------------------------------------------------------------
def _round_up(n, m):
    return ((n + m - 1) // m) * m


def _row_tiling(rows, lane_block=False):
    """Pick (row_tile, padded_rows).  lane_block=True when the row tile lands on the
    lane (minormost) axis of a block, which requires a multiple of 128 when gridded."""
    if rows <= _ROW_TILE:
        tile = _round_up(rows, 8)          # grid == 1 -> tile == full padded dim, always legal
        return tile, tile
    ntiles = -(-rows // _ROW_TILE)
    quantum = 128 if lane_block else 8
    tile = _round_up(-(-rows // ntiles), quantum)
    return tile, tile * ntiles


def _pad_rows(x, rp):
    r = x.shape[0]
    return x if rp == r else jnp.pad(x, ((0, rp - r), (0, 0)))


def _pick_lane_tile(f, target=1024):
    best = f
    for t in range(128, min(f, target) + 1, 128):
        if f % t == 0:
            best = t
    return best


# ----------------------------------------------------------------------------
# Kernel 1: Linear -> BatchNorm1d (batch stats, one pass) -> ELU
#   grid over output-feature (lane) tiles; channels are independent so tiled BN is exact.
# ----------------------------------------------------------------------------
def _linear_bn_elu_kernel(z_ref, w_ref, g_ref, b_ref, o_ref):
    y = jnp.dot(z_ref[...], w_ref[...], preferred_element_type=jnp.float32)   # (B, TN)
    inv_n = 1.0 / y.shape[0]
    mean = jnp.sum(y, axis=0, keepdims=True) * inv_n
    var = jnp.sum(y * y, axis=0, keepdims=True) * inv_n - mean * mean          # biased var
    scale = g_ref[...] * lax.rsqrt(var + EPS)
    shift = b_ref[...] - mean * scale
    y = y * scale + shift
    # ELU, overflow-safe (exp only on the non-positive branch)
    o_ref[...] = jnp.where(y > 0, y, jnp.exp(jnp.minimum(y, 0.0)) - 1.0)


def linear_bn_elu(z, w, g, b):
    bsz, din = z.shape
    f = w.shape[1]
    tn = _pick_lane_tile(f)
    return pl.pallas_call(
        _linear_bn_elu_kernel,
        out_shape=jax.ShapeDtypeStruct((bsz, f), jnp.float32),
        grid=(f // tn,),
        in_specs=[
            pl.BlockSpec((bsz, din), lambda j: (0, 0)),
            pl.BlockSpec((din, tn), lambda j: (0, j)),
            pl.BlockSpec((1, tn), lambda j: (0, j)),
            pl.BlockSpec((1, tn), lambda j: (0, j)),
        ],
        out_specs=pl.BlockSpec((bsz, tn), lambda j: (0, j)),
        compiler_params=pltpu.CompilerParams(dimension_semantics=("parallel",)),
    )(z, w, g, b)


# ----------------------------------------------------------------------------
# Kernel 2: [optional fused previous-layer BN (scale,shift) + ReLU on the input] ->
#           direct transposed-conv GEMM  Y = act(X) @ Wg(Cin, K*K*Cout)
#   Row-tiled grid, "parallel" (independent row tiles -> megacore-shardable).
# ----------------------------------------------------------------------------
def _gemm_kernel(x_ref, w_ref, o_ref):
    o_ref[...] = jnp.dot(x_ref[...], w_ref[...], preferred_element_type=jnp.float32)


def _affine_relu_gemm_kernel(s_ref, t_ref, x_ref, w_ref, o_ref):
    xa = jnp.maximum(x_ref[...] * s_ref[...] + t_ref[...], 0.0)
    o_ref[...] = jnp.dot(xa, w_ref[...], preferred_element_type=jnp.float32)


def deconv_gemm(x, wg, scale=None, shift=None):
    rows, cin = x.shape
    n = wg.shape[1]
    tile, rp = _row_tiling(rows)
    xp = _pad_rows(x, rp)
    if scale is None:
        kernel = _gemm_kernel
        in_specs = [
            pl.BlockSpec((tile, cin), lambda i: (i, 0)),
            pl.BlockSpec((cin, n), lambda i: (0, 0)),
        ]
        args = (xp, wg)
    else:
        kernel = _affine_relu_gemm_kernel
        in_specs = [
            pl.BlockSpec((1, cin), lambda i: (0, 0)),
            pl.BlockSpec((1, cin), lambda i: (0, 0)),
            pl.BlockSpec((tile, cin), lambda i: (i, 0)),
            pl.BlockSpec((cin, n), lambda i: (0, 0)),
        ]
        args = (scale, shift, xp, wg)
    y = pl.pallas_call(
        kernel,
        out_shape=jax.ShapeDtypeStruct((rp, n), jnp.float32),
        grid=(rp // tile,),
        in_specs=in_specs,
        out_specs=pl.BlockSpec((tile, n), lambda i: (i, 0)),
        compiler_params=pltpu.CompilerParams(dimension_semantics=("parallel",)),
    )(*args)
    return y[:rows]


# ----------------------------------------------------------------------------
# Kernel 3: final (Cout=1) layer computed transposed so the result is lane-dense:
#   Yt(K*K*Cout, rows) = Wg_t(K*K*Cout, Cin) @ relu(X*scale+shift)^T
# ----------------------------------------------------------------------------
def _affine_relu_gemm_t_kernel(s_ref, t_ref, x_ref, wt_ref, o_ref):
    xa = jnp.maximum(x_ref[...] * s_ref[...] + t_ref[...], 0.0)                # (TR, Cin)
    o_ref[...] = lax.dot_general(                                              # (N, TR)
        wt_ref[...], xa, (((1,), (1,)), ((), ())),
        preferred_element_type=jnp.float32)


def deconv_gemm_t(x, wgt, scale, shift):
    rows, cin = x.shape
    n = wgt.shape[0]
    tile, rp = _row_tiling(rows, lane_block=True)
    xp = _pad_rows(x, rp)
    y = pl.pallas_call(
        _affine_relu_gemm_t_kernel,
        out_shape=jax.ShapeDtypeStruct((n, rp), jnp.float32),
        grid=(rp // tile,),
        in_specs=[
            pl.BlockSpec((1, cin), lambda i: (0, 0)),
            pl.BlockSpec((1, cin), lambda i: (0, 0)),
            pl.BlockSpec((tile, cin), lambda i: (i, 0)),
            pl.BlockSpec((n, cin), lambda i: (0, 0)),
        ],
        out_specs=pl.BlockSpec((n, tile), lambda i: (0, i)),
        compiler_params=pltpu.CompilerParams(dimension_semantics=("parallel",)),
    )(scale, shift, xp, wgt)
    return y[:, :rows]


# ----------------------------------------------------------------------------
# Kernel 4: bias + sigmoid on the lane-dense (B, C*28*28) final map.
# ----------------------------------------------------------------------------
def _bias_sigmoid_kernel(x_ref, b_ref, o_ref):
    y = x_ref[...] + b_ref[...]
    o_ref[...] = 1.0 / (1.0 + jnp.exp(-y))


def bias_sigmoid(x, bias_row):
    rows, n = x.shape
    tile, rp = _row_tiling(rows)
    xp = _pad_rows(x, rp)
    y = pl.pallas_call(
        _bias_sigmoid_kernel,
        out_shape=jax.ShapeDtypeStruct((rp, n), jnp.float32),
        grid=(rp // tile,),
        in_specs=[
            pl.BlockSpec((tile, n), lambda i: (i, 0)),
            pl.BlockSpec((1, n), lambda i: (0, 0)),
        ],
        out_specs=pl.BlockSpec((tile, n), lambda i: (i, 0)),
        compiler_params=pltpu.CompilerParams(dimension_semantics=("parallel",)),
    )(xp, bias_row)
    return y[:rows]


# ----------------------------------------------------------------------------
# XLA glue: col2im overlap-add (sum of K*K shifted, stride-dilated slabs) and the
# per-channel train-mode BN statistics folded into (scale, shift).
# ----------------------------------------------------------------------------
def _col2im(y, bsz, h, w, k, cout, stride, pad):
    """y: (B*H*W, K*K*Cout) direct-GEMM output -> ConvTranspose2d output (B,OH,OW,Cout), no bias."""
    y = y.reshape(bsz, h, w, k, k, cout)
    acc = None
    for kh in range(k):
        for kw in range(k):
            slab = lax.pad(
                y[:, :, :, kh, kw, :], jnp.float32(0.0),
                [(0, 0, 0),
                 (kh, k - 1 - kh, stride - 1),
                 (kw, k - 1 - kw, stride - 1),
                 (0, 0, 0)])
            acc = slab if acc is None else acc + slab
    oh = (h - 1) * stride - 2 * pad + k
    ow = (w - 1) * stride - 2 * pad + k
    return acc[:, pad:pad + oh, pad:pad + ow, :]


def _bn_scale_shift(x, g, b):
    """x: (B, H, W, C) pre-BN activation -> per-channel (scale, shift), train-mode stats."""
    mean = jnp.mean(x, axis=(0, 1, 2))
    var = jnp.mean(jnp.square(x), axis=(0, 1, 2)) - mean * mean      # biased, one pass
    scale = g.reshape(-1) * lax.rsqrt(var + EPS)
    shift = b.reshape(-1) - mean * scale
    return scale.reshape(1, -1), shift.reshape(1, -1)


# ----------------------------------------------------------------------------
# Parameters (deterministic init matching the PyTorch module; stored kernel-ready)
# ----------------------------------------------------------------------------
def init_decoder_params(key, out_shape=(1, 28, 28), latent_shape=32, n_classes=10,
                        use_label=True):
    channels = out_shape[0] if out_shape[0] < out_shape[2] else out_shape[2]
    height = out_shape[0] if out_shape[0] > out_shape[2] else out_shape[1]
    assert channels in (1, 3)
    assert height in (28, 32)
    cfm, hfm, wfm = (128, 7, 7) if height == 28 else (128, 8, 8)
    input_dim = latent_shape + n_classes if use_label else latent_shape
    f = cfm * hfm * wfm

    keys = jax.random.split(key, 8)
    s = 0.05
    # PyTorch-layout tensors ---------------------------------------------------
    lin_w = jax.random.normal(keys[0], (input_dim, f), jnp.float32) * s        # Linear.weight.T
    ct1_w = jax.random.normal(keys[2], (128, 64, 3, 3), jnp.float32) * s       # ConvTranspose2d
    ct2_w = jax.random.normal(keys[4], (64, 32, 3, 3), jnp.float32) * s
    ct3_w = jax.random.normal(keys[6], (32, channels, 2, 2), jnp.float32) * s
    ct3_b = jax.random.normal(keys[7], (channels,), jnp.float32) * s
    bn1_g = jnp.ones((1, f), jnp.float32)
    bn1_b = jnp.zeros((1, f), jnp.float32)
    # NOTE: lin_b / ct1_b / ct2_b are exactly cancelled by the train-mode BatchNorm that
    # follows them (per-channel constant removed by the mean subtraction), so they are
    # never materialized or used -> one less VPU pass and one less DMA per layer.

    # Kernel-ready layouts -----------------------------------------------------
    def to_hwc_cols(m):  # feature columns (c, h, w)-ordered -> (h, w, c)-ordered (NHWC-ready)
        return m.reshape(m.shape[0], cfm, hfm, wfm).transpose(0, 2, 3, 1).reshape(m.shape[0], f)

    return {
        # Linear + BN1d (feature axis permuted so the output is already NHWC-ordered)
        "lin_w": to_hwc_cols(lin_w),                                           # (Din, F)
        "bn1_g": to_hwc_cols(bn1_g),                                           # (1, F)
        "bn1_b": to_hwc_cols(bn1_b),
        # ConvTranspose2d weights as direct-GEMM matrices  Wg[ci, (kh, kw, co)]
        "wg1": ct1_w.transpose(0, 2, 3, 1).reshape(128, 9 * 64),               # (128, 576)
        "bn2_g": jnp.ones((1, 64), jnp.float32),
        "bn2_b": jnp.zeros((1, 64), jnp.float32),
        "wg2": ct2_w.transpose(0, 2, 3, 1).reshape(64, 9 * 32),                # (64, 288)
        "bn3_g": jnp.ones((1, 32), jnp.float32),
        "bn3_b": jnp.zeros((1, 32), jnp.float32),
        # final layer stored transposed: rows = (kh, kw, co), cols = ci -> lane-dense output
        "wg3_t": ct3_w.transpose(0, 2, 3, 1).reshape(32, 4 * channels).T,      # (4*C, 32)
        "ct3_b": ct3_b,                                                        # (C,)
    }


# ----------------------------------------------------------------------------
# Decoder forward
# ----------------------------------------------------------------------------
def decoder_forward(params, z):
    bsz = z.shape[0]
    f = params["lin_w"].shape[1]
    cfm = 128
    hfm = wfm = int(round((f // cfm) ** 0.5))
    channels = params["ct3_b"].shape[0]

    # linear_block: Linear -> BatchNorm1d -> ELU (fused; output already NHWC-ordered)
    h = linear_bn_elu(z, params["lin_w"], params["bn1_g"], params["bn1_b"])    # (B, F)
    x1 = h.reshape(bsz * hfm * wfm, cfm)                                       # rows = (b, h, w)

    # ConvTranspose2d(128->64, k3, s2, p1): direct GEMM + col2im; BN2+ReLU fused downstream
    y1 = deconv_gemm(x1, params["wg1"])                                        # (B*49, 576)
    c1 = _col2im(y1, bsz, hfm, wfm, 3, 64, stride=2, pad=1)                    # (B, 13, 13, 64)
    s1, t1 = _bn_scale_shift(c1, params["bn2_g"], params["bn2_b"])

    # ConvTranspose2d(64->32, k3, s2, p0), with BN2+ReLU applied to its input inside the kernel
    h1, w1 = c1.shape[1], c1.shape[2]
    x2 = c1.reshape(bsz * h1 * w1, 64)
    y2 = deconv_gemm(x2, params["wg2"], s1, t1)                                # (B*169, 288)
    c2 = _col2im(y2, bsz, h1, w1, 3, 32, stride=2, pad=0)                      # (B, 27, 27, 32)
    s2, t2 = _bn_scale_shift(c2, params["bn3_g"], params["bn3_b"])

    # ConvTranspose2d(32->C, k2, s1, p0), BN3+ReLU fused, transposed lane-dense output
    h2, w2 = c2.shape[1], c2.shape[2]
    x3 = c2.reshape(bsz * h2 * w2, 32)
    y3t = deconv_gemm_t(x3, params["wg3_t"], s2, t2)                           # (4*C, B*h2*w2)

    # final col2im (K=2, s=1, p=0) in glue, then fused bias+sigmoid kernel (lane-dense)
    oh, ow = h2 + 1, w2 + 1
    y3 = y3t.reshape(2, 2, channels, bsz, h2, w2)
    acc = None
    for kh in range(2):
        for kw in range(2):
            slab = lax.pad(
                y3[kh, kw], jnp.float32(0.0),
                [(0, 0, 0), (0, 0, 0), (kh, 1 - kh, 0), (kw, 1 - kw, 0)])      # (C, B, 28, 28)
            acc = slab if acc is None else acc + slab
    pre = acc.transpose(1, 0, 2, 3).reshape(bsz, channels * oh * ow)           # (B, C*784)
    bias_row = jnp.repeat(params["ct3_b"], oh * ow).reshape(1, channels * oh * ow)
    out = bias_sigmoid(pre, bias_row)                                          # (B, C*784)
    return out.reshape(bsz, channels, oh, ow)                                  # NCHW, as PyTorch


if __name__ == "__main__":
    key = jax.random.PRNGKey(0)
    kp, kz = jax.random.split(key)

    # out_shape=(1, 28, 28) (MNIST-like), latent=32, n_classes=10, use_label=True -> z dim 42
    params = init_decoder_params(kp, out_shape=(1, 28, 28), latent_shape=32,
                                 n_classes=10, use_label=True)
    B = 4
    z = jax.random.normal(kz, (B, 32 + 10), jnp.float32)

    fwd = jax.jit(decoder_forward)
    out = jax.block_until_ready(fwd(params, z))

    assert out.shape == (B, 1, 28, 28), out.shape
    assert out.dtype == jnp.float32
    assert bool(jnp.all(jnp.isfinite(out)))
    assert bool(jnp.all((out >= 0.0) & (out <= 1.0)))  # sigmoid range
    print("KERNEL_OK")
</pallas_src>

<mosaic_0001>
module attributes {stable_mosaic.version = 11 : i64} {
  func.func @_linear_bn_elu_kernel(%arg0: i32, %arg1: memref<4x42xf32, #tpu.memory_space<vmem>>, %arg2: memref<42x896xf32, #tpu.memory_space<vmem>>, %arg3: memref<1x896xf32, #tpu.memory_space<vmem>>, %arg4: memref<1x896xf32, #tpu.memory_space<vmem>>, %arg5: memref<4x896xf32, #tpu.memory_space<vmem>>) attributes {dimension_semantics = [#tpu.dimension_semantics<parallel>], iteration_bounds = array<i64: 7>, scalar_prefetch = 0 : i64, scratch_operands = 0 : i64, tpu.core_type = #tpu.core_type<tc>, window_params = [{pipeline_mode = #tpu.pipeline_mode<synchronous>, transform_indices = @transform_0, window_bounds = array<i64: 4, 42>}, {transform_indices = @transform_1, window_bounds = array<i64: 42, 896>}, {transform_indices = @transform_2, window_bounds = array<i64: 1, 896>}, {transform_indices = @transform_3, window_bounds = array<i64: 1, 896>}, {transform_indices = @transform_4, window_bounds = array<i64: 4, 896>}]} {
    %c0 = arith.constant 0 : index
    %c0_0 = arith.constant 0 : index
    %0 = vector.load %arg1[%c0, %c0_0] : memref<4x42xf32, #tpu.memory_space<vmem>>, vector<4x42xf32>
    %c0_1 = arith.constant 0 : index
    %c0_2 = arith.constant 0 : index
    %1 = vector.load %arg2[%c0_1, %c0_2] : memref<42x896xf32, #tpu.memory_space<vmem>>, vector<42x896xf32>
    %cst = arith.constant dense<0.000000e+00> : vector<4x896xf32>
    %2 = tpu.matmul %0, %1, %cst {dimension_numbers = #tpu.dot_dimension_numbers<[1], [0], [0], [1], [0, 0, 1, 1], [], []>} : vector<4x42xf32>, vector<42x896xf32>, vector<4x896xf32> -> vector<4x896xf32>
    %cst_3 = arith.constant dense<0.000000e+00> : vector<896xf32>
    %3 = vector.multi_reduction <add>, %2, %cst_3 [0] : vector<4x896xf32> to vector<896xf32>
    %4 = vector.shape_cast %3 : vector<896xf32> to vector<1x896xf32>
    %cst_4 = arith.constant 2.500000e-01 : f32
    %5 = vector.broadcast %cst_4 : f32 to vector<1x896xf32>
    %6 = arith.mulf %4, %5 : vector<1x896xf32>
    %7 = arith.mulf %2, %2 : vector<4x896xf32>
    %cst_5 = arith.constant dense<0.000000e+00> : vector<896xf32>
    %8 = vector.multi_reduction <add>, %7, %cst_5 [0] : vector<4x896xf32> to vector<896xf32>
    %9 = vector.shape_cast %8 : vector<896xf32> to vector<1x896xf32>
    %cst_6 = arith.constant 2.500000e-01 : f32
    %10 = vector.broadcast %cst_6 : f32 to vector<1x896xf32>
    %11 = arith.mulf %9, %10 : vector<1x896xf32>
    %12 = arith.mulf %6, %6 : vector<1x896xf32>
    %13 = arith.subf %11, %12 : vector<1x896xf32>
    %c0_7 = arith.constant 0 : index
    %c0_8 = arith.constant 0 : index
    %14 = vector.load %arg3[%c0_7, %c0_8] : memref<1x896xf32, #tpu.memory_space<vmem>>, vector<1x896xf32>
    %cst_9 = arith.constant 9.99999974E-6 : f32
    %15 = vector.broadcast %cst_9 : f32 to vector<1x896xf32>
    %16 = arith.addf %13, %15 : vector<1x896xf32>
    %17 = math.rsqrt %16 : vector<1x896xf32>
    %18 = arith.mulf %14, %17 : vector<1x896xf32>
    %c0_10 = arith.constant 0 : index
    %c0_11 = arith.constant 0 : index
    %19 = vector.load %arg4[%c0_10, %c0_11] : memref<1x896xf32, #tpu.memory_space<vmem>>, vector<1x896xf32>
    %20 = arith.mulf %6, %18 : vector<1x896xf32>
    %21 = arith.subf %19, %20 : vector<1x896xf32>
    %22 = vector.broadcast %18 : vector<1x896xf32> to vector<4x896xf32>
    %23 = arith.mulf %2, %22 : vector<4x896xf32>
    %24 = vector.broadcast %21 : vector<1x896xf32> to vector<4x896xf32>
    %25 = arith.addf %23, %24 : vector<4x896xf32>
    %cst_12 = arith.constant 0.000000e+00 : f32
    %26 = vector.broadcast %cst_12 : f32 to vector<4x896xf32>
    %27 = arith.cmpf ogt, %25, %26 : vector<4x896xf32>
    %cst_13 = arith.constant 0.000000e+00 : f32
    %28 = vector.broadcast %cst_13 : f32 to vector<4x896xf32>
    %29 = arith.minimumf %25, %28 : vector<4x896xf32>
    %30 = math.exp %29 : vector<4x896xf32>
    %cst_14 = arith.constant 1.000000e+00 : f32
    %31 = vector.broadcast %cst_14 : f32 to vector<4x896xf32>
    %32 = arith.subf %30, %31 : vector<4x896xf32>
    %33 = arith.select %27, %25, %32 : vector<4x896xi1>, vector<4x896xf32>
    %c0_15 = arith.constant 0 : index
    %c0_16 = arith.constant 0 : index
    %34 = vector.load %arg5[%c0_15, %c0_16] : memref<4x896xf32, #tpu.memory_space<vmem>>, vector<4x896xf32>
    tpu.vector_store %arg5[%c0_15, %c0_16], %33 {strides = array<i32>} : memref<4x896xf32, #tpu.memory_space<vmem>>, vector<4x896xf32>,
    return
  }
  func.func @transform_0(%arg0: i32) -> (i32, i32) {
    %c0_i32 = arith.constant 0 : i32
    %c0_i32_0 = arith.constant 0 : i32
    %c0_i32_1 = arith.constant 0 : i32
    return %c0_i32, %c0_i32_0 : i32, i32
  }
  func.func @transform_1(%arg0: i32) -> (i32, i32) {
    %c0_i32 = arith.constant 0 : i32
    %c0_i32_0 = arith.constant 0 : i32
    return %c0_i32, %arg0 : i32, i32
  }
  func.func @transform_2(%arg0: i32) -> (i32, i32) {
    %c0_i32 = arith.constant 0 : i32
    %c0_i32_0 = arith.constant 0 : i32
    return %c0_i32, %arg0 : i32, i32
  }
  func.func @transform_3(%arg0: i32) -> (i32, i32) {
    %c0_i32 = arith.constant 0 : i32
    %c0_i32_0 = arith.constant 0 : i32
    return %c0_i32, %arg0 : i32, i32
  }
  func.func @transform_4(%arg0: i32) -> (i32, i32) {
    %c0_i32 = arith.constant 0 : i32
    %c0_i32_0 = arith.constant 0 : i32
    return %c0_i32, %arg0 : i32, i32
  }
}

module attributes {stable_mosaic.version = 11 : i64} {
  func.func @_gemm_kernel(%arg0: i32, %arg1: memref<200x128xf32, #tpu.memory_space<vmem>>, %arg2: memref<128x576xf32, #tpu.memory_space<vmem>>, %arg3: memref<200x576xf32, #tpu.memory_space<vmem>>) attributes {dimension_semantics = [#tpu.dimension_semantics<parallel>], iteration_bounds = array<i64: 1>, scalar_prefetch = 0 : i64, scratch_operands = 0 : i64, tpu.core_type = #tpu.core_type<tc>, window_params = [{transform_indices = @transform_0, window_bounds = array<i64: 200, 128>}, {pipeline_mode = #tpu.pipeline_mode<synchronous>, transform_indices = @transform_1, window_bounds = array<i64: 128, 576>}, {transform_indices = @transform_2, window_bounds = array<i64: 200, 576>}]} {
    %c0 = arith.constant 0 : index
    %c0_0 = arith.constant 0 : index
    %0 = vector.load %arg1[%c0, %c0_0] : memref<200x128xf32, #tpu.memory_space<vmem>>, vector<200x128xf32>
    %c0_1 = arith.constant 0 : index
    %c0_2 = arith.constant 0 : index
    %1 = vector.load %arg2[%c0_1, %c0_2] : memref<128x576xf32, #tpu.memory_space<vmem>>, vector<128x576xf32>
    %cst = arith.constant dense<0.000000e+00> : vector<200x576xf32>
    %2 = tpu.matmul %0, %1, %cst {dimension_numbers = #tpu.dot_dimension_numbers<[1], [0], [0], [1], [0, 0, 1, 1], [], []>} : vector<200x128xf32>, vector<128x576xf32>, vector<200x576xf32> -> vector<200x576xf32>
    %c0_3 = arith.constant 0 : index
    %c0_4 = arith.constant 0 : index
    %3 = vector.load %arg3[%c0_3, %c0_4] : memref<200x576xf32, #tpu.memory_space<vmem>>, vector<200x576xf32>
    tpu.vector_store %arg3[%c0_3, %c0_4], %2 {strides = array<i32>} : memref<200x576xf32, #tpu.memory_space<vmem>>, vector<200x576xf32>,
    return
  }
  func.func @transform_0(%arg0: i32) -> (i32, i32) {
    %c0_i32 = arith.constant 0 : i32
    %c0_i32_0 = arith.constant 0 : i32
    return %arg0, %c0_i32 : i32, i32
  }
  func.func @transform_1(%arg0: i32) -> (i32, i32) {
    %c0_i32 = arith.constant 0 : i32
    %c0_i32_0 = arith.constant 0 : i32
    %c0_i32_1 = arith.constant 0 : i32
    return %c0_i32, %c0_i32_0 : i32, i32
  }
  func.func @transform_2(%arg0: i32) -> (i32, i32) {
    %c0_i32 = arith.constant 0 : i32
    %c0_i32_0 = arith.constant 0 : i32
    return %arg0, %c0_i32 : i32, i32
  }
}

module attributes {stable_mosaic.version = 11 : i64} {
  func.func @_affine_relu_gemm_kernel(%arg0: i32, %arg1: memref<1x64xf32, #tpu.memory_space<vmem>>, %arg2: memref<1x64xf32, #tpu.memory_space<vmem>>, %arg3: memref<344x64xf32, #tpu.memory_space<vmem>>, %arg4: memref<64x288xf32, #tpu.memory_space<vmem>>, %arg5: memref<344x288xf32, #tpu.memory_space<vmem>>) attributes {dimension_semantics = [#tpu.dimension_semantics<parallel>], iteration_bounds = array<i64: 2>, scalar_prefetch = 0 : i64, scratch_operands = 0 : i64, tpu.core_type = #tpu.core_type<tc>, window_params = [{pipeline_mode = #tpu.pipeline_mode<synchronous>, transform_indices = @transform_0, window_bounds = array<i64: 1, 64>}, {pipeline_mode = #tpu.pipeline_mode<synchronous>, transform_indices = @transform_1, window_bounds = array<i64: 1, 64>}, {transform_indices = @transform_2, window_bounds = array<i64: 344, 64>}, {pipeline_mode = #tpu.pipeline_mode<synchronous>, transform_indices = @transform_3, window_bounds = array<i64: 64, 288>}, {transform_indices = @transform_4, window_bounds = array<i64: 344, 288>}]} {
    %c0 = arith.constant 0 : index
    %c0_0 = arith.constant 0 : index
    %0 = vector.load %arg3[%c0, %c0_0] : memref<344x64xf32, #tpu.memory_space<vmem>>, vector<344x64xf32>
    %c0_1 = arith.constant 0 : index
    %c0_2 = arith.constant 0 : index
    %1 = vector.load %arg1[%c0_1, %c0_2] : memref<1x64xf32, #tpu.memory_space<vmem>>, vector<1x64xf32>
    %2 = vector.broadcast %1 : vector<1x64xf32> to vector<344x64xf32>
    %3 = arith.mulf %0, %2 : vector<344x64xf32>
    %c0_3 = arith.constant 0 : index
    %c0_4 = arith.constant 0 : index
    %4 = vector.load %arg2[%c0_3, %c0_4] : memref<1x64xf32, #tpu.memory_space<vmem>>, vector<1x64xf32>
    %5 = vector.broadcast %4 : vector<1x64xf32> to vector<344x64xf32>
    %6 = arith.addf %3, %5 : vector<344x64xf32>
    %cst = arith.constant 0.000000e+00 : f32
    %7 = vector.broadcast %cst : f32 to vector<344x64xf32>
    %8 = arith.maximumf %6, %7 : vector<344x64xf32>
    %c0_5 = arith.constant 0 : index
    %c0_6 = arith.constant 0 : index
    %9 = vector.load %arg4[%c0_5, %c0_6] : memref<64x288xf32, #tpu.memory_space<vmem>>, vector<64x288xf32>
    %cst_7 = arith.constant dense<0.000000e+00> : vector<344x288xf32>
    %10 = tpu.matmul %8, %9, %cst_7 {dimension_numbers = #tpu.dot_dimension_numbers<[1], [0], [0], [1], [0, 0, 1, 1], [], []>} : vector<344x64xf32>, vector<64x288xf32>, vector<344x288xf32> -> vector<344x288xf32>
    %c0_8 = arith.constant 0 : index
    %c0_9 = arith.constant 0 : index
    %11 = vector.load %arg5[%c0_8, %c0_9] : memref<344x288xf32, #tpu.memory_space<vmem>>, vector<344x288xf32>
    tpu.vector_store %arg5[%c0_8, %c0_9], %10 {strides = array<i32>} : memref<344x288xf32, #tpu.memory_space<vmem>>, vector<344x288xf32>,
    return
  }
  func.func @transform_0(%arg0: i32) -> (i32, i32) {
    %c0_i32 = arith.constant 0 : i32
    %c0_i32_0 = arith.constant 0 : i32
    %c0_i32_1 = arith.constant 0 : i32
    return %c0_i32, %c0_i32_0 : i32, i32
  }
  func.func @transform_1(%arg0: i32) -> (i32, i32) {
    %c0_i32 = arith.constant 0 : i32
    %c0_i32_0 = arith.constant 0 : i32
    %c0_i32_1 = arith.constant 0 : i32
    return %c0_i32, %c0_i32_0 : i32, i32
  }
  func.func @transform_2(%arg0: i32) -> (i32, i32) {
    %c0_i32 = arith.constant 0 : i32
    %c0_i32_0 = arith.constant 0 : i32
    return %arg0, %c0_i32 : i32, i32
  }
  func.func @transform_3(%arg0: i32) -> (i32, i32) {
    %c0_i32 = arith.constant 0 : i32
    %c0_i32_0 = arith.constant 0 : i32
    %c0_i32_1 = arith.constant 0 : i32
    return %c0_i32, %c0_i32_0 : i32, i32
  }
  func.func @transform_4(%arg0: i32) -> (i32, i32) {
    %c0_i32 = arith.constant 0 : i32
    %c0_i32_0 = arith.constant 0 : i32
    return %arg0, %c0_i32 : i32, i32
  }
}

module attributes {stable_mosaic.version = 11 : i64} {
  func.func @_affine_relu_gemm_t_kernel(%arg0: i32, %arg1: memref<1x32xf32, #tpu.memory_space<vmem>>, %arg2: memref<1x32xf32, #tpu.memory_space<vmem>>, %arg3: memref<512x32xf32, #tpu.memory_space<vmem>>, %arg4: memref<4x32xf32, #tpu.memory_space<vmem>>, %arg5: memref<4x512xf32, #tpu.memory_space<vmem>>) attributes {dimension_semantics = [#tpu.dimension_semantics<parallel>], iteration_bounds = array<i64: 6>, scalar_prefetch = 0 : i64, scratch_operands = 0 : i64, tpu.core_type = #tpu.core_type<tc>, window_params = [{pipeline_mode = #tpu.pipeline_mode<synchronous>, transform_indices = @transform_0, window_bounds = array<i64: 1, 32>}, {pipeline_mode = #tpu.pipeline_mode<synchronous>, transform_indices = @transform_1, window_bounds = array<i64: 1, 32>}, {transform_indices = @transform_2, window_bounds = array<i64: 512, 32>}, {pipeline_mode = #tpu.pipeline_mode<synchronous>, transform_indices = @transform_3, window_bounds = array<i64: 4, 32>}, {transform_indices = @transform_4, window_bounds = array<i64: 4, 512>}]} {
    %c0 = arith.constant 0 : index
    %c0_0 = arith.constant 0 : index
    %0 = vector.load %arg3[%c0, %c0_0] : memref<512x32xf32, #tpu.memory_space<vmem>>, vector<512x32xf32>
    %c0_1 = arith.constant 0 : index
    %c0_2 = arith.constant 0 : index
    %1 = vector.load %arg1[%c0_1, %c0_2] : memref<1x32xf32, #tpu.memory_space<vmem>>, vector<1x32xf32>
    %2 = vector.broadcast %1 : vector<1x32xf32> to vector<512x32xf32>
    %3 = arith.mulf %0, %2 : vector<512x32xf32>
    %c0_3 = arith.constant 0 : index
    %c0_4 = arith.constant 0 : index
    %4 = vector.load %arg2[%c0_3, %c0_4] : memref<1x32xf32, #tpu.memory_space<vmem>>, vector<1x32xf32>
    %5 = vector.broadcast %4 : vector<1x32xf32> to vector<512x32xf32>
    %6 = arith.addf %3, %5 : vector<512x32xf32>
    %cst = arith.constant 0.000000e+00 : f32
    %7 = vector.broadcast %cst : f32 to vector<512x32xf32>
    %8 = arith.maximumf %6, %7 : vector<512x32xf32>
    %c0_5 = arith.constant 0 : index
    %c0_6 = arith.constant 0 : index
    %9 = vector.load %arg4[%c0_5, %c0_6] : memref<4x32xf32, #tpu.memory_space<vmem>>, vector<4x32xf32>
    %cst_7 = arith.constant dense<0.000000e+00> : vector<4x512xf32>
    %10 = tpu.matmul %9, %8, %cst_7 {dimension_numbers = #tpu.dot_dimension_numbers<[1], [1], [0], [0], [0, 0, 1, 0], [], []>} : vector<4x32xf32>, vector<512x32xf32>, vector<4x512xf32> -> vector<4x512xf32>
    %c0_8 = arith.constant 0 : index
    %c0_9 = arith.constant 0 : index
    %11 = vector.load %arg5[%c0_8, %c0_9] : memref<4x512xf32, #tpu.memory_space<vmem>>, vector<4x512xf32>
    tpu.vector_store %arg5[%c0_8, %c0_9], %10 {strides = array<i32>} : memref<4x512xf32, #tpu.memory_space<vmem>>, vector<4x512xf32>,
    return
  }
  func.func @transform_0(%arg0: i32) -> (i32, i32) {
    %c0_i32 = arith.constant 0 : i32
    %c0_i32_0 = arith.constant 0 : i32
    %c0_i32_1 = arith.constant 0 : i32
    return %c0_i32, %c0_i32_0 : i32, i32
  }
  func.func @transform_1(%arg0: i32) -> (i32, i32) {
    %c0_i32 = arith.constant 0 : i32
    %c0_i32_0 = arith.constant 0 : i32
    %c0_i32_1 = arith.constant 0 : i32
    return %c0_i32, %c0_i32_0 : i32, i32
  }
  func.func @transform_2(%arg0: i32) -> (i32, i32) {
    %c0_i32 = arith.constant 0 : i32
    %c0_i32_0 = arith.constant 0 : i32
    return %arg0, %c0_i32 : i32, i32
  }
  func.func @transform_3(%arg0: i32) -> (i32, i32) {
    %c0_i32 = arith.constant 0 : i32
    %c0_i32_0 = arith.constant 0 : i32
    %c0_i32_1 = arith.constant 0 : i32
    return %c0_i32, %c0_i32_0 : i32, i32
  }
  func.func @transform_4(%arg0: i32) -> (i32, i32) {
    %c0_i32 = arith.constant 0 : i32
    %c0_i32_0 = arith.constant 0 : i32
    return %c0_i32, %arg0 : i32, i32
  }
}

module attributes {stable_mosaic.version = 11 : i64} {
  func.func @_bias_sigmoid_kernel(%arg0: i32, %arg1: memref<8x784xf32, #tpu.memory_space<vmem>>, %arg2: memref<1x784xf32, #tpu.memory_space<vmem>>, %arg3: memref<8x784xf32, #tpu.memory_space<vmem>>) attributes {dimension_semantics = [#tpu.dimension_semantics<parallel>], iteration_bounds = array<i64: 1>, scalar_prefetch = 0 : i64, scratch_operands = 0 : i64, tpu.core_type = #tpu.core_type<tc>, window_params = [{transform_indices = @transform_0, window_bounds = array<i64: 8, 784>}, {pipeline_mode = #tpu.pipeline_mode<synchronous>, transform_indices = @transform_1, window_bounds = array<i64: 1, 784>}, {transform_indices = @transform_2, window_bounds = array<i64: 8, 784>}]} {
    %c0 = arith.constant 0 : index
    %c0_0 = arith.constant 0 : index
    %0 = vector.load %arg1[%c0, %c0_0] : memref<8x784xf32, #tpu.memory_space<vmem>>, vector<8x784xf32>
    %c0_1 = arith.constant 0 : index
    %c0_2 = arith.constant 0 : index
    %1 = vector.load %arg2[%c0_1, %c0_2] : memref<1x784xf32, #tpu.memory_space<vmem>>, vector<1x784xf32>
    %2 = vector.broadcast %1 : vector<1x784xf32> to vector<8x784xf32>
    %3 = arith.addf %0, %2 : vector<8x784xf32>
    %cst = arith.constant 0.000000e+00 : f32
    %4 = vector.broadcast %cst : f32 to vector<8x784xf32>
    %5 = arith.subf %4, %3 : vector<8x784xf32>
    %6 = math.exp %5 : vector<8x784xf32>
    %cst_3 = arith.constant 1.000000e+00 : f32
    %7 = vector.broadcast %cst_3 : f32 to vector<8x784xf32>
    %8 = arith.addf %7, %6 : vector<8x784xf32>
    %cst_4 = arith.constant 1.000000e+00 : f32
    %9 = vector.broadcast %cst_4 : f32 to vector<8x784xf32>
    %10 = arith.divf %9, %8 : vector<8x784xf32>
    %c0_5 = arith.constant 0 : index
    %c0_6 = arith.constant 0 : index
    %11 = vector.load %arg3[%c0_5, %c0_6] : memref<8x784xf32, #tpu.memory_space<vmem>>, vector<8x784xf32>
    tpu.vector_store %arg3[%c0_5, %c0_6], %10 {strides = array<i32>} : memref<8x784xf32, #tpu.memory_space<vmem>>, vector<8x784xf32>,
    return
  }
  func.func @transform_0(%arg0: i32) -> (i32, i32) {
    %c0_i32 = arith.constant 0 : i32
    %c0_i32_0 = arith.constant 0 : i32
    return %arg0, %c0_i32 : i32, i32
  }
  func.func @transform_1(%arg0: i32) -> (i32, i32) {
    %c0_i32 = arith.constant 0 : i32
    %c0_i32_0 = arith.constant 0 : i32
    %c0_i32_1 = arith.constant 0 : i32
    return %c0_i32, %c0_i32_0 : i32, i32
  }
  func.func @transform_2(%arg0: i32) -> (i32, i32) {
    %c0_i32 = arith.constant 0 : i32
    %c0_i32_0 = arith.constant 0 : i32
    return %arg0, %c0_i32 : i32, i32
  }
}

</mosaic_0001>

<llo_original>
// kernel: decoder_forward.5
$region0: #{decoder_forward.5}
  #allocation0 [shape = 'u32[]', space=smem, size = 0x4, offset = 0x4, fixed_abs, tag = 'smem constant byte address 0x4 - core index']
  #allocation1 [shape = 'u32[72,128]{1,0:T(1,128)}', space=vmem, size = 0x9000, scoped, tag = 'internal scratch']
  %s0 = inlined_call_operand.hbm [shape: f32[4,42], index: 0, kind: input, shape index: {}]
  %s1 = inlined_call_operand.hbm [shape: f32[42,6272], index: 1, kind: input, shape index: {}]
  %s2 = inlined_call_operand.hbm [shape: f32[1,6272], index: 2, kind: input, shape index: {}]
  %s3 = inlined_call_operand.hbm [shape: f32[1,6272], index: 3, kind: input, shape index: {}]
  %s4 = inlined_call_operand.vmem [shape: f32[4,6272], index: 4, kind: output, shape index: {}]
  %s5 = sld [smem:[#allocation0]]
  $region65: #{decoder_forward.5} parent=0
    _
  %s7 = ssub.s32 1, %s5
  %s8 = scalar_select 0, %s7, %s5
  $region1: #{decoder_forward.5} parent=0
    #allocation2 [shape = 'u8[2048]{0}', space=vmem, size = 0x800, scoped, tag = 'input window, operand 0, single buffered']
    #allocation3 [shape = 's32[2]{0}', space=sflag, size = 0x8, scoped, tag = 'scoped memory for decoder_forward.5']
    #allocation4 [shape = 'u8[344064]{0}', space=vmem, size = 0x54000, scoped, tag = 'input window, operand 1']
    #allocation5 [shape = 's32[2]{0}', space=sflag, size = 0x8, scoped, tag = 'scoped memory for decoder_forward.5']
    #allocation6 [shape = 'u8[7168]{0}', space=vmem, size = 0x1c00, scoped, tag = 'input window, operand 2']
    #allocation7 [shape = 'u8[7168]{0}', space=vmem, size = 0x1c00, scoped, tag = 'input window, operand 3']
    #allocation8 [shape = 's32[2]{0}', space=sflag, size = 0x8, scoped, tag = 'scoped memory for decoder_forward.5']
    %9 = vsyncpa [#allocation3], 0
    %10 = vsyncpa [#allocation5], 0
    %s11 = scalar_lea.sflag [#allocation5], 1
    %12 = vsyncpa %s11, 0
    %13 = vsyncpa [#allocation8], 0
    %s14 = scalar_lea.sflag [#allocation8], 1
    %15 = vsyncpa %s14, 0
    loop: start=0, step=1, limit=9
    $region2: #{decoder_forward.5} parent=1 // loop_pre_header
      _
    $region3: #{decoder_forward.5} parent=1 // loop_header
      %s17 = sphi 0, %s21
      %p18 = scmp.ge.s32.totalorder %s17, 9
      %s25 = sphi 0, %s25
      %s27 = sphi 0, %s25
      %s28 = sphi 0, %s27
      %s42 = sphi 0, %s28
      %s48 = sphi 0, %s50
      %s51 = sphi 0, %s48
      %s52 = sphi 0, %s51
      %s68 = sphi 0, %s52
      %s74 = sphi 0, %s76
      %s77 = sphi 0, %s74
      %s78 = sphi 0, %s77
      %s94 = sphi 0, %s78
      %s100 = sphi 0, %s102
      %s103 = sphi 0, %s100
      %s104 = sphi 0, %s103
      %s120 = sphi 0, %s104
      %s126 = sphi 0, %s128
      %s129 = sphi 0, %s126
      %s130 = sphi 0, %s129
      %s146 = sphi 0, %s130
    $region4: #{decoder_forward.5} parent=1 // loop_header_branch
      %20 = sbr.rel (%p18) target = $region8
    $region5: #{decoder_forward.5} parent=1 // loop_body
      %s22 = ssub.s32 %s17, 1
      %s23 = ssub.s32 %s17, 2
      %s24 = sadd.s32 %s17, 1
      %s26 = sadd.s32 %s25, 1
      %p29 = scmp.eq.s32.totalorder %s17, 6
      %p30 = scmp.ne.s32.totalorder %s25, %s27
      %p31 = scmp.eq.s32.totalorder %s17, 0
      %p32 = por %p30, %p31
      %p33 = scmp.ne.s32.totalorder %s25, %s27
      %p34 = scmp.eq.s32.totalorder %s22, 6
      %p35 = por %p33, %p34
      %p36 = scmp.ne.s32.totalorder %s27, %s28
      %p37 = scmp.eq.s32.totalorder %s22, 0
      %p38 = por %p36, %p37
      %p39 = scmp.ne.s32.totalorder %s27, %s28
      %p40 = scmp.eq.s32.totalorder %s23, 6
      %p41 = por %p39, %p40
      %p43 = scmp.ne.s32.totalorder %s28, %s42
      %p44 = scmp.eq.s32.totalorder %s23, 0
      %p45 = por %p43, %p44
      %s46 = ssub.s32 %s17, %s24
      %p47 = scmp.eq.s32.totalorder %s46, 0
      %s49 = sadd.s32 %s48, 1
      %s50 = scalar_select %p47, %s48, %s49
      %p53 = pneg %p47
      %p54 = scmp.eq.s32.totalorder %s17, 6
      %p55 = por %p53, %p54
      %p56 = scmp.ne.s32.totalorder %s48, %s51
      %p57 = scmp.eq.s32.totalorder %s17, 0
      %p58 = por %p56, %p57
      %p59 = scmp.ne.s32.totalorder %s48, %s51
      %p60 = scmp.eq.s32.totalorder %s22, 6
      %p61 = por %p59, %p60
      %p62 = scmp.ne.s32.totalorder %s51, %s52
      %p63 = scmp.eq.s32.totalorder %s22, 0
      %p64 = por %p62, %p63
      %p65 = scmp.ne.s32.totalorder %s51, %s52
      %p66 = scmp.eq.s32.totalorder %s23, 6
      %p67 = por %p65, %p66
      %p69 = scmp.ne.s32.totalorder %s52, %s68
      %p70 = scmp.eq.s32.totalorder %s23, 0
      %p71 = por %p69, %p70
      %s72 = ssub.s32 %s17, %s24
      %p73 = scmp.eq.s32.totalorder %s72, 0
      %s75 = sadd.s32 %s74, 1
      %s76 = scalar_select %p73, %s74, %s75
      %p79 = pneg %p73
      %p80 = scmp.eq.s32.totalorder %s17, 6
      %p81 = por %p79, %p80
      %p82 = scmp.ne.s32.totalorder %s74, %s77
      %p83 = scmp.eq.s32.totalorder %s17, 0
      %p84 = por %p82, %p83
      %p85 = scmp.ne.s32.totalorder %s74, %s77
      %p86 = scmp.eq.s32.totalorder %s22, 6
      %p87 = por %p85, %p86
      %p88 = scmp.ne.s32.totalorder %s77, %s78
      %p89 = scmp.eq.s32.totalorder %s22, 0
      %p90 = por %p88, %p89
      %p91 = scmp.ne.s32.totalorder %s77, %s78
      %p92 = scmp.eq.s32.totalorder %s23, 6
      %p93 = por %p91, %p92
      %p95 = scmp.ne.s32.totalorder %s78, %s94
      %p96 = scmp.eq.s32.totalorder %s23, 0
      %p97 = por %p95, %p96
      %s98 = ssub.s32 %s17, %s24
      %p99 = scmp.eq.s32.totalorder %s98, 0
      %s101 = sadd.s32 %s100, 1
      %s102 = scalar_select %p99, %s100, %s101
      %p105 = pneg %p99
      %p106 = scmp.eq.s32.totalorder %s17, 6
      %p107 = por %p105, %p106
      %p108 = scmp.ne.s32.totalorder %s100, %s103
      %p109 = scmp.eq.s32.totalorder %s17, 0
      %p110 = por %p108, %p109
      %p111 = scmp.ne.s32.totalorder %s100, %s103
      %p112 = scmp.eq.s32.totalorder %s22, 6
      %p113 = por %p111, %p112
      %p114 = scmp.ne.s32.totalorder %s103, %s104
      %p115 = scmp.eq.s32.totalorder %s22, 0
      %p116 = por %p114, %p115
      %p117 = scmp.ne.s32.totalorder %s103, %s104
      %p118 = scmp.eq.s32.totalorder %s23, 6
      %p119 = por %p117, %p118
      %p121 = scmp.ne.s32.totalorder %s104, %s120
      %p122 = scmp.eq.s32.totalorder %s23, 0
      %p123 = por %p121, %p122
      %s124 = ssub.s32 %s17, %s24
      %p125 = scmp.eq.s32.totalorder %s124, 0
      %s127 = sadd.s32 %s126, 1
      %s128 = scalar_select %p125, %s126, %s127
      %p131 = pneg %p125
      %p132 = scmp.eq.s32.totalorder %s17, 6
      %p133 = por %p131, %p132
      %p134 = scmp.ne.s32.totalorder %s126, %s129
      %p135 = scmp.eq.s32.totalorder %s17, 0
      %p136 = por %p134, %p135
      %p137 = scmp.ne.s32.totalorder %s126, %s129
      %p138 = scmp.eq.s32.totalorder %s22, 6
      %p139 = por %p137, %p138
      %p140 = scmp.ne.s32.totalorder %s129, %s130
      %p141 = scmp.eq.s32.totalorder %s22, 0
      %p142 = por %p140, %p141
      %p143 = scmp.ne.s32.totalorder %s129, %s130
      %p144 = scmp.eq.s32.totalorder %s23, 6
      %p145 = por %p143, %p144
      %p147 = scmp.ne.s32.totalorder %s130, %s146
      %p148 = scmp.eq.s32.totalorder %s23, 0
      %p149 = por %p147, %p148
      %p150 = scmp.le.s32.totalorder 1, %s17
      %p151 = scmp.lt.s32.totalorder %s17, 8
      %p152 = pnand %p150, %p151
      %p153 = pneg %p152
      // Predicated region
      $region9: #{decoder_forward.5} parent=5 // pred_check
        _
      $region10: #{decoder_forward.5} parent=5 // pred_check_branch
        %155 = sbr.rel (%p152) target = $region12
      $region11: #{decoder_forward.5} parent=5 // pred_region
        %s156 = ssub.s32 %s17, 1
        // Predicated region
        $region13: #{decoder_forward.5} parent=11 // pred_check
          %p157 = pneg %p38
        $region14: #{decoder_forward.5} parent=11 // pred_check_branch
          %159 = sbr.rel (%p157) target = $region16
        $region15: #{decoder_forward.5} parent=11 // pred_region
          %161 = vsyncadd [#allocation3], 0
          %s163 = sshll.u32 %s0, 4
          %s164 = int_to_ptr.hbm [resolvable:$true] %s163
          %s165 = sshll.u32 [#allocation2], 4
          %s166 = int_to_ptr.vmem [resolvable:$true] %s165
          %168 = dma.hbm_to_vmem [thread:$0]  %s164, 64, %s166, [#allocation3]
        $region16: #{decoder_forward.5} parent=11 // pred_fallthru
          _
      $region12: #{decoder_forward.5} parent=5 // pred_fallthru
        _
      %p169 = scmp.lt.s32.totalorder %s17, 7
      // Predicated region
      $region17: #{decoder_forward.5} parent=5 // pred_check
        %p170 = pneg %p169
      $region18: #{decoder_forward.5} parent=5 // pred_check_branch
        %172 = sbr.rel (%p170) target = $region20
      $region19: #{decoder_forward.5} parent=5 // pred_region
        // Predicated region
        $region21: #{decoder_forward.5} parent=19 // pred_check
          %p173 = pneg %p58
        $region22: #{decoder_forward.5} parent=19 // pred_check_branch
          %175 = sbr.rel (%p173) target = $region24
        $region23: #{decoder_forward.5} parent=19 // pred_region
          %s176 = sand.u32 %s17, 1
          %s177 = scalar_lea.sflag [#allocation5], %s176
          %s178 = sand.u32 %s48, 1
          %s179 = smul.addr %s178, 336
          %s180 = scalar_lea.vmem [#allocation4], %s179
          %s181 = smul.u32 7, %s17
          %183 = vsyncadd %s177, 0
          %s184 = smul.addr %s181, 8
          %s185 = scalar_lea.hbm %s1, %s184
          %s186 = sshll.u32 %s185, 4
          %s187 = int_to_ptr.hbm [resolvable:$true] %s186
          %s188 = sshll.u32 %s180, 4
          %s189 = int_to_ptr.vmem [resolvable:$true] %s188
          %194 = dma.hbm_to_vmem [thread:$0]  %s187, 5376, %s189, %s177, 6272, 896, 56
        $region24: #{decoder_forward.5} parent=19 // pred_fallthru
          _
        // Predicated region
        $region25: #{decoder_forward.5} parent=19 // pred_check
          %p195 = pneg %p84
        $region26: #{decoder_forward.5} parent=19 // pred_check_branch
          %197 = sbr.rel (%p195) target = $region28
        $region27: #{decoder_forward.5} parent=19 // pred_region
          %s198 = sand.u32 %s17, 1
          %s199 = scalar_lea.sflag [#allocation5], %s198
          %s200 = sand.u32 %s74, 1
          %s201 = smul.addr %s200, 7
          %s202 = scalar_lea.vmem [#allocation6], %s201
          %s203 = smul.u32 7, %s17
          %205 = vsyncadd %s199, 0
          %s206 = scalar_lea.hbm %s2, %s203
          %s208 = sshll.u32 %s206, 4
          %s209 = int_to_ptr.hbm [resolvable:$true] %s208
          %s210 = sshll.u32 %s202, 4
          %s211 = int_to_ptr.vmem [resolvable:$true] %s210
          %213 = dma.hbm_to_vmem [thread:$0]  %s209, 112, %s211, %s199
        $region28: #{decoder_forward.5} parent=19 // pred_fallthru
          _
        // Predicated region
        $region29: #{decoder_forward.5} parent=19 // pred_check
          %p214 = pneg %p110
        $region30: #{decoder_forward.5} parent=19 // pred_check_branch
          %216 = sbr.rel (%p214) target = $region32
        $region31: #{decoder_forward.5} parent=19 // pred_region
          %s217 = sand.u32 %s100, 1
          %s218 = scalar_lea.sflag [#allocation8], %s217
          %s219 = sand.u32 %s100, 1
          %s220 = smul.addr %s219, 7
          %s221 = scalar_lea.vmem [#allocation7], %s220
          %s222 = smul.u32 7, %s17
          %224 = vsyncadd %s218, 0
          %s225 = scalar_lea.hbm %s3, %s222
          %s227 = sshll.u32 %s225, 4
          %s228 = int_to_ptr.hbm [resolvable:$true] %s227
          %s229 = sshll.u32 %s221, 4
          %s230 = int_to_ptr.vmem [resolvable:$true] %s229
          %232 = dma.hbm_to_vmem [thread:$0]  %s228, 112, %s230, %s218
        $region32: #{decoder_forward.5} parent=19 // pred_fallthru
          _
      $region20: #{decoder_forward.5} parent=5 // pred_fallthru
        _
      %p233 = scmp.le.s32.totalorder 1, %s17
      %p234 = scmp.lt.s32.totalorder %s17, 8
      %p235 = pnand %p233, %p234
      %p236 = pneg %p235
      // Predicated region
      $region33: #{decoder_forward.5} parent=5 // pred_check
        _
      $region34: #{decoder_forward.5} parent=5 // pred_check_branch
        %238 = sbr.rel (%p235) target = $region36
      $region35: #{decoder_forward.5} parent=5 // pred_region
        %s239 = ssub.s32 %s17, 1
        // Predicated region
        $region37: #{decoder_forward.5} parent=35 // pred_check
          %p240 = pneg %p38
        $region38: #{decoder_forward.5} parent=35 // pred_check_branch
          %242 = sbr.rel (%p240) target = $region40
        $region39: #{decoder_forward.5} parent=35 // pred_region
          %244 = dma.done [#allocation3], 64
        $region40: #{decoder_forward.5} parent=35 // pred_fallthru
          _
        %s245 = sand.u32 %s22, 1
        %s246 = scalar_lea.sflag [#allocation5], %s245
        %s247 = sand.u32 %s51, 1
        %s248 = smul.addr %s247, 336
        %s249 = scalar_lea.vmem [#allocation4], %s248
        // Predicated region
        $region41: #{decoder_forward.5} parent=35 // pred_check
          %p250 = pneg %p64
        $region42: #{decoder_forward.5} parent=35 // pred_check_branch
          %252 = sbr.rel (%p250) target = $region44
        $region43: #{decoder_forward.5} parent=35 // pred_region
          %254 = dma.done %s246, 5376
        $region44: #{decoder_forward.5} parent=35 // pred_fallthru
          _
        %s255 = sand.u32 %s22, 1
        %s256 = scalar_lea.sflag [#allocation5], %s255
        %s257 = sand.u32 %s77, 1
        %s258 = smul.addr %s257, 7
        %s259 = scalar_lea.vmem [#allocation6], %s258
        // Predicated region
        $region45: #{decoder_forward.5} parent=35 // pred_check
          %p260 = pneg %p90
        $region46: #{decoder_forward.5} parent=35 // pred_check_branch
          %262 = sbr.rel (%p260) target = $region48
        $region47: #{decoder_forward.5} parent=35 // pred_region
          %264 = dma.done %s256, 112
        $region48: #{decoder_forward.5} parent=35 // pred_fallthru
          _
        %s265 = sand.u32 %s103, 1
        %s266 = scalar_lea.sflag [#allocation8], %s265
        %s267 = sand.u32 %s103, 1
        %s268 = smul.addr %s267, 7
        %s269 = scalar_lea.vmem [#allocation7], %s268
        // Predicated region
        $region49: #{decoder_forward.5} parent=35 // pred_check
          %p270 = pneg %p116
        $region50: #{decoder_forward.5} parent=35 // pred_check_branch
          %272 = sbr.rel (%p270) target = $region52
        $region51: #{decoder_forward.5} parent=35 // pred_region
          %274 = dma.done %s266, 112
        $region52: #{decoder_forward.5} parent=35 // pred_fallthru
          _
        %p275 = pneg %p38
        %p276 = pneg %p35
        %s277 = sand.u32 %s22, 1
        %s278 = scalar_lea.sflag [#allocation5], %s277
        %s279 = sand.u32 %s51, 1
        %s280 = smul.addr %s279, 336
        %s281 = scalar_lea.vmem [#allocation4], %s280
        %p282 = pneg %p64
        %p283 = pneg %p61
        %s284 = sand.u32 %s22, 1
        %s285 = scalar_lea.sflag [#allocation5], %s284
        %s286 = sand.u32 %s77, 1
        %s287 = smul.addr %s286, 7
        %s288 = scalar_lea.vmem [#allocation6], %s287
        %p289 = pneg %p90
        %p290 = pneg %p87
        %s291 = sand.u32 %s103, 1
        %s292 = scalar_lea.sflag [#allocation8], %s291
        %s293 = sand.u32 %s103, 1
        %s294 = smul.addr %s293, 7
        %s295 = scalar_lea.vmem [#allocation7], %s294
        %p296 = pneg %p116
        %p297 = pneg %p113
        %p298 = pneg %p142
        %p299 = pneg %p139
        %s300 = smul.u32 7, %s22
        %p301 = scmp.lt.s32.totalorder %s300, 48
        %s302 = scalar_select %p301, %s300, 48
        %s303 = smul.addr %s302, 4
        %s304 = scalar_lea.vmem %s4, %s303
        %s305 = smul.u32 7, %s22
        %s306 = smul.u32 7, %s22
        %s307 = smul.u32 7, %s22
        %s308 = smul.u32 7, %s22
        %p309 = scmp.lt.s32.totalorder %s308, 48
        %s310 = scalar_select %p309, %s308, 48
        %s311 = smul.addr %s310, 4
        %s312 = scalar_lea.vmem %s4, %s311
        %s313 = smul.u32 7, %s22
        %v314 = vld [vmem:[#allocation2] sm:$0xf]
        %v315 = vld [vmem:[%s249] sm:$0xff]
        %v316 = vld [vmem:[%s249 + $0x8] sm:$0xff]
        %v317 = vld [vmem:[%s249 + $0x10] sm:$0xff]
        %v318 = vld [vmem:[%s249 + $0x18] sm:$0xff]
        %v319 = vld [vmem:[%s249 + $0x20] sm:$0xff]
        %v320 = vld [vmem:[%s249 + $0x28] sm:$0xff]
        %v321 = vld [vmem:[%s249 + $0x30] sm:$0xff]
        %v322 = vld [vmem:[%s249 + $0x38] sm:$0xff]
        %v323 = vld [vmem:[%s249 + $0x40] sm:$0xff]
        %v324 = vld [vmem:[%s249 + $0x48] sm:$0xff]
        %v325 = vld [vmem:[%s249 + $0x50] sm:$0xff]
        %v326 = vld [vmem:[%s249 + $0x58] sm:$0xff]
        %v327 = vld [vmem:[%s249 + $0x60] sm:$0xff]
        %v328 = vld [vmem:[%s249 + $0x68] sm:$0xff]
        %v329 = vld [vmem:[%s249 + $0x70] sm:$0xff]
        %v330 = vld [vmem:[%s249 + $0x78] sm:$0xff]
        %v331 = vld [vmem:[%s249 + $0x80] sm:$0xff]
        %v332 = vld [vmem:[%s249 + $0x88] sm:$0xff]
        %v333 = vld [vmem:[%s249 + $0x90] sm:$0xff]
        %v334 = vld [vmem:[%s249 + $0x98] sm:$0xff]
        %v335 = vld [vmem:[%s249 + $0xa0] sm:$0xff]
        %v336 = vld [vmem:[%s249 + $0xa8] sm:$0xff]
        %v337 = vld [vmem:[%s249 + $0xb0] sm:$0xff]
        %v338 = vld [vmem:[%s249 + $0xb8] sm:$0xff]
        %v339 = vld [vmem:[%s249 + $0xc0] sm:$0xff]
        %v340 = vld [vmem:[%s249 + $0xc8] sm:$0xff]
        %v341 = vld [vmem:[%s249 + $0xd0] sm:$0xff]
        %v342 = vld [vmem:[%s249 + $0xd8] sm:$0xff]
        %v343 = vld [vmem:[%s249 + $0xe0] sm:$0xff]
        %v344 = vld [vmem:[%s249 + $0xe8] sm:$0xff]
        %v345 = vld [vmem:[%s249 + $0xf0] sm:$0xff]
        %v346 = vld [vmem:[%s249 + $0xf8] sm:$0xff]
        %v347 = vld [vmem:[%s249 + $0x100] sm:$0xff]
        %v348 = vld [vmem:[%s249 + $0x108] sm:$0xff]
        %v349 = vld [vmem:[%s249 + $0x110] sm:$0xff]
        %v350 = vld [vmem:[%s249 + $0x118] sm:$0x3]
        %v351 = vld [vmem:[%s249 + $0x120] sm:$0x3]
        %v352 = vld [vmem:[%s249 + $0x128] sm:$0x3]
        %v353 = vld [vmem:[%s249 + $0x130] sm:$0x3]
        %v354 = vld [vmem:[%s249 + $0x138] sm:$0x3]
        %v355 = vld [vmem:[%s249 + $0x140] sm:$0x3]
        %v356 = vld [vmem:[%s249 + $0x148] sm:$0x3]
        %vm357 = vcmask 343040
        %v359 = vsel %vm357, %v314, 0
        %vm361 = vcmask 1041408
        %v363 = vsel %vm361, %v350, 0
        %v366 = vsel %vm361, %v351, 0
        %v369 = vsel %vm361, %v352, 0
        %v372 = vsel %vm361, %v353, 0
        %v375 = vsel %vm361, %v354, 0
        %v378 = vsel %vm361, %v355, 0
        %v381 = vsel %vm361, %v356, 0
        %383 = vmatpush.msra.mxu0 0.0
        %384 = vmatpush.msra.mxu0 0.0
        %385 = vmatpush.msra.mxu0 0.0
        %386 = vmatpush.msra.mxu0 0.0
        %387 = vmatpush.msra.mxu0 0.0
        %388 = vmatpush.msra.mxu0 0.0
        %389 = vmatpush.msra.mxu0 0.0
        %390 = vmatpush.msra.mxu0 0.0
        %391 = vmatpush.msra.mxu0 0.0
        %392 = vmatpush.msra.mxu0 0.0
        %393 = vmatpush.msra.mxu0 %v363
        %394 = vmatpush.msra.mxu0 %v343
        %395 = vmatpush.msra.mxu0 %v336
        %396 = vmatpush.msra.mxu0 %v329
        %397 = vmatpush.msra.mxu0 %v322
        %398 = vmatpush.msra.mxu0 %v315
        %399 = vmatmul.f32.gmra.mxu0 %v359
        %v400 = vpop.f32.mrf.mxu0
        %v401 = vadd.f32 0.0, %v400
        %402 = vdwg.mxu0
        %403 = vmatpush.msra.mxu0 0.0
        %404 = vmatpush.msra.mxu0 0.0
        %405 = vmatpush.msra.mxu0 0.0
        %406 = vmatpush.msra.mxu0 0.0
        %407 = vmatpush.msra.mxu0 0.0
        %408 = vmatpush.msra.mxu0 0.0
        %409 = vmatpush.msra.mxu0 0.0
        %410 = vmatpush.msra.mxu0 0.0
        %411 = vmatpush.msra.mxu0 0.0
        %412 = vmatpush.msra.mxu0 0.0
        %413 = vmatpush.msra.mxu0 %v366
        %414 = vmatpush.msra.mxu0 %v344
        %415 = vmatpush.msra.mxu0 %v337
        %416 = vmatpush.msra.mxu0 %v330
        %417 = vmatpush.msra.mxu0 %v323
        %418 = vmatpush.msra.mxu0 %v316
        %419 = vmatmul.f32.gmra.mxu0 %v359
        %v420 = vpop.f32.mrf.mxu0
        %v421 = vadd.f32 0.0, %v420
        %422 = vdwg.mxu0
        %423 = vmatpush.msra.mxu0 0.0
        %424 = vmatpush.msra.mxu0 0.0
        %425 = vmatpush.msra.mxu0 0.0
        %426 = vmatpush.msra.mxu0 0.0
        %427 = vmatpush.msra.mxu0 0.0
        %428 = vmatpush.msra.mxu0 0.0
        %429 = vmatpush.msra.mxu0 0.0
        %430 = vmatpush.msra.mxu0 0.0
        %431 = vmatpush.msra.mxu0 0.0
        %432 = vmatpush.msra.mxu0 0.0
        %433 = vmatpush.msra.mxu0 %v369
        %434 = vmatpush.msra.mxu0 %v345
        %435 = vmatpush.msra.mxu0 %v338
        %436 = vmatpush.msra.mxu0 %v331
        %437 = vmatpush.msra.mxu0 %v324
        %438 = vmatpush.msra.mxu0 %v317
        %439 = vmatmul.f32.gmra.mxu0 %v359
        %v440 = vpop.f32.mrf.mxu0
        %v441 = vadd.f32 0.0, %v440
        %442 = vdwg.mxu0
        %443 = vmatpush.msra.mxu0 0.0
        %444 = vmatpush.msra.mxu0 0.0
        %445 = vmatpush.msra.mxu0 0.0
        %446 = vmatpush.msra.mxu0 0.0
        %447 = vmatpush.msra.mxu0 0.0
        %448 = vmatpush.msra.mxu0 0.0
        %449 = vmatpush.msra.mxu0 0.0
        %450 = vmatpush.msra.mxu0 0.0
        %451 = vmatpush.msra.mxu0 0.0
        %452 = vmatpush.msra.mxu0 0.0
        %453 = vmatpush.msra.mxu0 %v372
        %454 = vmatpush.msra.mxu0 %v346
        %455 = vmatpush.msra.mxu0 %v339
        %456 = vmatpush.msra.mxu0 %v332
        %457 = vmatpush.msra.mxu0 %v325
        %458 = vmatpush.msra.mxu0 %v318
        %459 = vmatmul.f32.gmra.mxu0 %v359
        %v460 = vpop.f32.mrf.mxu0
        %v461 = vadd.f32 0.0, %v460
        %462 = vdwg.mxu0
        %463 = vmatpush.msra.mxu0 0.0
        %464 = vmatpush.msra.mxu0 0.0
        %465 = vmatpush.msra.mxu0 0.0
        %466 = vmatpush.msra.mxu0 0.0
        %467 = vmatpush.msra.mxu0 0.0
        %468 = vmatpush.msra.mxu0 0.0
        %469 = vmatpush.msra.mxu0 0.0
        %470 = vmatpush.msra.mxu0 0.0
        %471 = vmatpush.msra.mxu0 0.0
        %472 = vmatpush.msra.mxu0 0.0
        %473 = vmatpush.msra.mxu0 %v375
        %474 = vmatpush.msra.mxu0 %v347
        %475 = vmatpush.msra.mxu0 %v340
        %476 = vmatpush.msra.mxu0 %v333
        %477 = vmatpush.msra.mxu0 %v326
        %478 = vmatpush.msra.mxu0 %v319
        %479 = vmatmul.f32.gmra.mxu0 %v359
        %v480 = vpop.f32.mrf.mxu0
        %v481 = vadd.f32 0.0, %v480
        %482 = vdwg.mxu0
        %483 = vmatpush.msra.mxu0 0.0
        %484 = vmatpush.msra.mxu0 0.0
        %485 = vmatpush.msra.mxu0 0.0
        %486 = vmatpush.msra.mxu0 0.0
        %487 = vmatpush.msra.mxu0 0.0
        %488 = vmatpush.msra.mxu0 0.0
        %489 = vmatpush.msra.mxu0 0.0
        %490 = vmatpush.msra.mxu0 0.0
        %491 = vmatpush.msra.mxu0 0.0
        %492 = vmatpush.msra.mxu0 0.0
        %493 = vmatpush.msra.mxu0 %v378
        %494 = vmatpush.msra.mxu0 %v348
        %495 = vmatpush.msra.mxu0 %v341
        %496 = vmatpush.msra.mxu0 %v334
        %497 = vmatpush.msra.mxu0 %v327
        %498 = vmatpush.msra.mxu0 %v320
        %499 = vmatmul.f32.gmra.mxu0 %v359
        %v500 = vpop.f32.mrf.mxu0
        %v501 = vadd.f32 0.0, %v500
        %502 = vdwg.mxu0
        %503 = vmatpush.msra.mxu0 0.0
        %504 = vmatpush.msra.mxu0 0.0
        %505 = vmatpush.msra.mxu0 0.0
        %506 = vmatpush.msra.mxu0 0.0
        %507 = vmatpush.msra.mxu0 0.0
        %508 = vmatpush.msra.mxu0 0.0
        %509 = vmatpush.msra.mxu0 0.0
        %510 = vmatpush.msra.mxu0 0.0
        %511 = vmatpush.msra.mxu0 0.0
        %512 = vmatpush.msra.mxu0 0.0
        %513 = vmatpush.msra.mxu0 %v381
        %514 = vmatpush.msra.mxu0 %v349
        %515 = vmatpush.msra.mxu0 %v342
        %516 = vmatpush.msra.mxu0 %v335
        %517 = vmatpush.msra.mxu0 %v328
        %518 = vmatpush.msra.mxu0 %v321
        %519 = vmatmul.f32.gmra.mxu0 %v359
        %v520 = vpop.f32.mrf.mxu0
        %v521 = vadd.f32 0.0, %v520
        %522 = vdwg.mxu0
        %vm523 = vcmask 1043456
        %v524 = vsel %vm523, %v401, 0.0
        %v525 = vrot.slane %v524, 4
        %v526 = vadd.f32 %v524, %v525
        %v527 = vrot.slane %v526, 2
        %v528 = vadd.f32 %v526, %v527
        %v529 = vrot.slane %v528, 1
        %v530 = vadd.f32 %v528, %v529
        %v531 = vsel %vm523, %v421, 0.0
        %v532 = vrot.slane %v531, 4
        %v533 = vadd.f32 %v531, %v532
        %v534 = vrot.slane %v533, 2
        %v535 = vadd.f32 %v533, %v534
        %v536 = vrot.slane %v535, 1
        %v537 = vadd.f32 %v535, %v536
        %v538 = vsel %vm523, %v441, 0.0
        %v539 = vrot.slane %v538, 4
        %v540 = vadd.f32 %v538, %v539
        %v541 = vrot.slane %v540, 2
        %v542 = vadd.f32 %v540, %v541
        %v543 = vrot.slane %v542, 1
        %v544 = vadd.f32 %v542, %v543
        %v545 = vsel %vm523, %v461, 0.0
        %v546 = vrot.slane %v545, 4
        %v547 = vadd.f32 %v545, %v546
        %v548 = vrot.slane %v547, 2
        %v549 = vadd.f32 %v547, %v548
        %v550 = vrot.slane %v549, 1
        %v551 = vadd.f32 %v549, %v550
        %v552 = vsel %vm523, %v481, 0.0
        %v553 = vrot.slane %v552, 4
        %v554 = vadd.f32 %v552, %v553
        %v555 = vrot.slane %v554, 2
        %v556 = vadd.f32 %v554, %v555
        %v557 = vrot.slane %v556, 1
        %v558 = vadd.f32 %v556, %v557
        %v559 = vsel %vm523, %v501, 0.0
        %v560 = vrot.slane %v559, 4
        %v561 = vadd.f32 %v559, %v560
        %v562 = vrot.slane %v561, 2
        %v563 = vadd.f32 %v561, %v562
        %v564 = vrot.slane %v563, 1
        %v565 = vadd.f32 %v563, %v564
        %v566 = vsel %vm523, %v521, 0.0
        %v567 = vrot.slane %v566, 4
        %v568 = vadd.f32 %v566, %v567
        %v569 = vrot.slane %v568, 2
        %v570 = vadd.f32 %v568, %v569
        %v571 = vrot.slane %v570, 1
        %v572 = vadd.f32 %v570, %v571
        %v573 = vmul.f32 %v530, 0.25
        %v574 = vmul.f32 %v537, 0.25
        %v575 = vmul.f32 %v544, 0.25
        %v576 = vmul.f32 %v551, 0.25
        %v577 = vmul.f32 %v558, 0.25
        %v578 = vmul.f32 %v565, 0.25
        %v579 = vmul.f32 %v572, 0.25
        %v580 = vmul.f32 %v401, %v401
        %v581 = vmul.f32 %v421, %v421
        %v582 = vmul.f32 %v441, %v441
        %v583 = vmul.f32 %v461, %v461
        %v584 = vmul.f32 %v481, %v481
        %v585 = vmul.f32 %v501, %v501
        %v586 = vmul.f32 %v521, %v521
        %v587 = vsel %vm523, %v580, 0.0
        %v588 = vrot.slane %v587, 4
        %v589 = vadd.f32 %v587, %v588
        %v590 = vrot.slane %v589, 2
        %v591 = vadd.f32 %v589, %v590
        %v592 = vrot.slane %v591, 1
        %v593 = vadd.f32 %v591, %v592
        %v594 = vsel %vm523, %v581, 0.0
        %v595 = vrot.slane %v594, 4
        %v596 = vadd.f32 %v594, %v595
        %v597 = vrot.slane %v596, 2
        %v598 = vadd.f32 %v596, %v597
        %v599 = vrot.slane %v598, 1
        %v600 = vadd.f32 %v598, %v599
        %v601 = vsel %vm523, %v582, 0.0
        %v602 = vrot.slane %v601, 4
        %v603 = vadd.f32 %v601, %v602
        %v604 = vrot.slane %v603, 2
        %v605 = vadd.f32 %v603, %v604
        %v606 = vrot.slane %v605, 1
        %v607 = vadd.f32 %v605, %v606
        %v608 = vsel %vm523, %v583, 0.0
        %v609 = vrot.slane %v608, 4
        %v610 = vadd.f32 %v608, %v609
        %v611 = vrot.slane %v610, 2
        %v612 = vadd.f32 %v610, %v611
        %v613 = vrot.slane %v612, 1
        %v614 = vadd.f32 %v612, %v613
        %v615 = vsel %vm523, %v584, 0.0
        %v616 = vrot.slane %v615, 4
        %v617 = vadd.f32 %v615, %v616
        %v618 = vrot.slane %v617, 2
        %v619 = vadd.f32 %v617, %v618
        %v620 = vrot.slane %v619, 1
        %v621 = vadd.f32 %v619, %v620
        %v622 = vsel %vm523, %v585, 0.0
        %v623 = vrot.slane %v622, 4
        %v624 = vadd.f32 %v622, %v623
        %v625 = vrot.slane %v624, 2
        %v626 = vadd.f32 %v624, %v625
        %v627 = vrot.slane %v626, 1
        %v628 = vadd.f32 %v626, %v627
        %v629 = vsel %vm523, %v586, 0.0
        %v630 = vrot.slane %v629, 4
        %v631 = vadd.f32 %v629, %v630
        %v632 = vrot.slane %v631, 2
        %v633 = vadd.f32 %v631, %v632
        %v634 = vrot.slane %v633, 1
        %v635 = vadd.f32 %v633, %v634
        %v636 = vmul.f32 %v593, 0.25
        %v637 = vmul.f32 %v600, 0.25
        %v638 = vmul.f32 %v607, 0.25
        %v639 = vmul.f32 %v614, 0.25
        %v640 = vmul.f32 %v621, 0.25
        %v641 = vmul.f32 %v628, 0.25
        %v642 = vmul.f32 %v635, 0.25
        %v643 = vmul.f32 %v573, %v573
        %v644 = vmul.f32 %v574, %v574
        %v645 = vmul.f32 %v575, %v575
        %v646 = vmul.f32 %v576, %v576
        %v647 = vmul.f32 %v577, %v577
        %v648 = vmul.f32 %v578, %v578
        %v649 = vmul.f32 %v579, %v579
        %v650 = vsub.f32 %v636, %v643
        %v651 = vsub.f32 %v637, %v644
        %v652 = vsub.f32 %v638, %v645
        %v653 = vsub.f32 %v639, %v646
        %v654 = vsub.f32 %v640, %v647
        %v655 = vsub.f32 %v641, %v648
        %v656 = vsub.f32 %v642, %v649
        %v657 = vld [vmem:[%s259] sm:$0xff]
        %v658 = vadd.f32 %v650, 1e-05
        %v659 = vadd.f32 %v651, 1e-05
        %v660 = vadd.f32 %v652, 1e-05
        %v661 = vadd.f32 %v653, 1e-05
        %v662 = vadd.f32 %v654, 1e-05
        %v663 = vadd.f32 %v655, 1e-05
        %v664 = vadd.f32 %v656, 1e-05
        %v665 = vrsqrt.pop %v658
        %v666 = vmul.f32 %v665, %v658
        %v667 = vmul.f32 %v666, %v665
        %v668 = vmul.f32 0.5, %v667
        %v669 = vsub.f32 1.5, %v668
        %v670 = vmul.f32 %v665, %v669
        %vm671 = vweird.f32 %v658
        %vm672 = vweird.f32 %v665
        %vm673 = vmor %vm671, %vm672
        %v674 = vsel %vm673, %v665, %v670
        %v675 = vrsqrt.pop %v659
        %v676 = vmul.f32 %v675, %v659
        %v677 = vmul.f32 %v676, %v675
        %v678 = vmul.f32 0.5, %v677
        %v679 = vsub.f32 1.5, %v678
        %v680 = vmul.f32 %v675, %v679
        %vm681 = vweird.f32 %v659
        %vm682 = vweird.f32 %v675
        %vm683 = vmor %vm681, %vm682
        %v684 = vsel %vm683, %v675, %v680
        %v685 = vrsqrt.pop %v660
        %v686 = vmul.f32 %v685, %v660
        %v687 = vmul.f32 %v686, %v685
        %v688 = vmul.f32 0.5, %v687
        %v689 = vsub.f32 1.5, %v688
        %v690 = vmul.f32 %v685, %v689
        %vm691 = vweird.f32 %v660
        %vm692 = vweird.f32 %v685
        %vm693 = vmor %vm691, %vm692
        %v694 = vsel %vm693, %v685, %v690
        %v695 = vrsqrt.pop %v661
        %v696 = vmul.f32 %v695, %v661
        %v697 = vmul.f32 %v696, %v695
        %v698 = vmul.f32 0.5, %v697
        %v699 = vsub.f32 1.5, %v698
        %v700 = vmul.f32 %v695, %v699
        %vm701 = vweird.f32 %v661
        %vm702 = vweird.f32 %v695
        %vm703 = vmor %vm701, %vm702
        %v704 = vsel %vm703, %v695, %v700
        %v705 = vrsqrt.pop %v662
        %v706 = vmul.f32 %v705, %v662
        %v707 = vmul.f32 %v706, %v705
        %v708 = vmul.f32 0.5, %v707
        %v709 = vsub.f32 1.5, %v708
        %v710 = vmul.f32 %v705, %v709
        %vm711 = vweird.f32 %v662
        %vm712 = vweird.f32 %v705
        %vm713 = vmor %vm711, %vm712
        %v714 = vsel %vm713, %v705, %v710
        %v715 = vrsqrt.pop %v663
        %v716 = vmul.f32 %v715, %v663
        %v717 = vmul.f32 %v716, %v715
        %v718 = vmul.f32 0.5, %v717
        %v719 = vsub.f32 1.5, %v718
        %v720 = vmul.f32 %v715, %v719
        %vm721 = vweird.f32 %v663
        %vm722 = vweird.f32 %v715
        %vm723 = vmor %vm721, %vm722
        %v724 = vsel %vm723, %v715, %v720
        %v725 = vrsqrt.pop %v664
        %v726 = vmul.f32 %v725, %v664
        %v727 = vmul.f32 %v726, %v725
        %v728 = vmul.f32 0.5, %v727
        %v729 = vsub.f32 1.5, %v728
        %v730 = vmul.f32 %v725, %v729
        %vm731 = vweird.f32 %v664
        %vm732 = vweird.f32 %v725
        %vm733 = vmor %vm731, %vm732
        %v734 = vsel %vm733, %v725, %v730
        %v742 = vrot.slane %v684, 7
        %v743 = vrot.slane %v694, 6
        %v744 = vrot.slane %v704, 5
        %v745 = vrot.slane %v714, 4
        %v746 = vrot.slane %v724, 3
        %v747 = vrot.slane %v734, 2
        %vm748 = vcmask 1040384
        %v749 = vsel %vm748, %v674, %v742
        %vm750 = vcmask 1042434
        %v751 = vsel %vm750, %v743, %v744
        %v752 = vsel %vm361, %v749, %v751
        %vm753 = vcmask 1044484
        %v754 = vsel %vm753, %v745, %v746
        %vm755 = vcmask 1045508
        %v756 = vsel %vm755, %v754, %v747
        %v757 = vsel %vm523, %v752, %v756
        %v759 = vmul.f32 %v657, %v757
        %v760 = vld [vmem:[%s269] sm:$0xff]
        %v762 = vperm.slane %v759, 0
        %v763 = vperm.slane %v759, 1
        %v764 = vperm.slane %v759, 2
        %v765 = vperm.slane %v759, 3
        %v766 = vperm.slane %v759, 4
        %v767 = vperm.slane %v759, 5
        %v768 = vperm.slane %v759, 6
        %v776 = vmul.f32 %v573, %v762
        %v777 = vmul.f32 %v574, %v763
        %v778 = vmul.f32 %v575, %v764
        %v779 = vmul.f32 %v576, %v765
        %v780 = vmul.f32 %v577, %v766
        %v781 = vmul.f32 %v578, %v767
        %v782 = vmul.f32 %v579, %v768
        %v790 = vrot.slane %v777, 7
        %v791 = vrot.slane %v778, 6
        %v792 = vrot.slane %v779, 5
        %v793 = vrot.slane %v780, 4
        %v794 = vrot.slane %v781, 3
        %v795 = vrot.slane %v782, 2
        %v796 = vsel %vm748, %v776, %v790
        %v797 = vsel %vm750, %v791, %v792
        %v798 = vsel %vm361, %v796, %v797
        %v799 = vsel %vm753, %v793, %v794
        %v800 = vsel %vm755, %v799, %v795
        %v801 = vsel %vm523, %v798, %v800
        %v803 = vsub.f32 %v760, %v801
        %v804 = vmul.f32 %v401, %v762
        %v805 = vmul.f32 %v421, %v763
        %v806 = vmul.f32 %v441, %v764
        %v807 = vmul.f32 %v461, %v765
        %v808 = vmul.f32 %v481, %v766
        %v809 = vmul.f32 %v501, %v767
        %v810 = vmul.f32 %v521, %v768
        %v812 = vperm.slane %v803, 0
        %v813 = vperm.slane %v803, 1
        %v814 = vperm.slane %v803, 2
        %v815 = vperm.slane %v803, 3
        %v816 = vperm.slane %v803, 4
        %v817 = vperm.slane %v803, 5
        %v818 = vperm.slane %v803, 6
        %v826 = vadd.f32 %v804, %v812
        %v827 = vadd.f32 %v805, %v813
        %v828 = vadd.f32 %v806, %v814
        %v829 = vadd.f32 %v807, %v815
        %v830 = vadd.f32 %v808, %v816
        %v831 = vadd.f32 %v809, %v817
        %v832 = vadd.f32 %v810, %v818
        %vm833 = vcmp.gt.f32.partialorder %v826, 0.0
        %vm834 = vcmp.gt.f32.partialorder %v827, 0.0
        %vm835 = vcmp.gt.f32.partialorder %v828, 0.0
        %vm836 = vcmp.gt.f32.partialorder %v829, 0.0
        %vm837 = vcmp.gt.f32.partialorder %v830, 0.0
        %vm838 = vcmp.gt.f32.partialorder %v831, 0.0
        %vm839 = vcmp.gt.f32.partialorder %v832, 0.0
        %v840 = vmin.f32 %v826, 0.0
        %v841 = vmin.f32 %v827, 0.0
        %v842 = vmin.f32 %v828, 0.0
        %v843 = vmin.f32 %v829, 0.0
        %v844 = vmin.f32 %v830, 0.0
        %v845 = vmin.f32 %v831, 0.0
        %v846 = vmin.f32 %v832, 0.0
        %v847 = vmul.f32 %v840, 1.442695
        %v848 = vpow.pop %v847
        %v849 = vmul.f32 %v841, 1.442695
        %v850 = vpow.pop %v849
        %v851 = vmul.f32 %v842, 1.442695
        %v852 = vpow.pop %v851
        %v853 = vmul.f32 %v843, 1.442695
        %v854 = vpow.pop %v853
        %v855 = vmul.f32 %v844, 1.442695
        %v856 = vpow.pop %v855
        %v857 = vmul.f32 %v845, 1.442695
        %v858 = vpow.pop %v857
        %v859 = vmul.f32 %v846, 1.442695
        %v860 = vpow.pop %v859
        %v861 = vsub.f32 %v848, 1.0
        %v862 = vsub.f32 %v850, 1.0
        %v863 = vsub.f32 %v852, 1.0
        %v864 = vsub.f32 %v854, 1.0
        %v865 = vsub.f32 %v856, 1.0
        %v866 = vsub.f32 %v858, 1.0
        %v867 = vsub.f32 %v860, 1.0
        %v868 = vsel %vm833, %v826, %v861
        %v869 = vsel %vm834, %v827, %v862
        %v870 = vsel %vm835, %v828, %v863
        %v871 = vsel %vm836, %v829, %v864
        %v872 = vsel %vm837, %v830, %v865
        %v873 = vsel %vm838, %v831, %v866
        %v874 = vsel %vm839, %v832, %v867
        %v881 = vrot.slane %v869, 4
        %v882 = vrot.slane %v871, 4
        %v883 = vrot.slane %v873, 4
        %v884 = vsel %vm523, %v868, %v881
        %v885 = vsel %vm523, %v870, %v882
        %v886 = vsel %vm523, %v872, %v883
        %890 = vst [vmem:[%s312] sm:$0xff] %v884
        %891 = vst [vmem:[%s312 + $0x8] sm:$0xff] %v885
        %892 = vst [vmem:[%s312 + $0x10] sm:$0xff] %v886
        %893 = vst [vmem:[%s312 + $0x18] sm:$0xf] %v874
        %s894 = smul.u32 7, %s22
        %p895 = scmp.lt.s32.totalorder %s894, 48
        %s896 = scalar_select %p895, %s894, 48
        %s897 = smul.addr %s896, 4
        %s898 = scalar_lea.vmem %s4, %s897
        // Predicated region
        $region53: #{decoder_forward.5} parent=35 // pred_check
          %p899 = pneg %p139
        $region54: #{decoder_forward.5} parent=35 // pred_check_branch
          %901 = sbr.rel (%p899) target = $region56
        $region55: #{decoder_forward.5} parent=35 // pred_region
          %s902 = smul.u32 7, %s22
        $region56: #{decoder_forward.5} parent=35 // pred_fallthru
          _
      $region36: #{decoder_forward.5} parent=5 // pred_fallthru
        _
      %p903 = scmp.le.s32.totalorder 2, %s17
      // Predicated region
      $region57: #{decoder_forward.5} parent=5 // pred_check
        %p904 = pneg %p903
      $region58: #{decoder_forward.5} parent=5 // pred_check_branch
        %906 = sbr.rel (%p904) target = $region60
      $region59: #{decoder_forward.5} parent=5 // pred_region
        %s907 = ssub.s32 %s17, 2
        // Predicated region
        $region61: #{decoder_forward.5} parent=59 // pred_check
          %p908 = pneg %p145
        $region62: #{decoder_forward.5} parent=59 // pred_check_branch
          %910 = sbr.rel (%p908) target = $region64
        $region63: #{decoder_forward.5} parent=59 // pred_region
          %s911 = smul.u32 7, %s23
          %p912 = scmp.lt.s32.totalorder %s911, 48
          %s913 = scalar_select %p912, %s911, 48
          %s914 = smul.addr %s913, 4
          %s915 = scalar_lea.vmem %s4, %s914
        $region64: #{decoder_forward.5} parent=59 // pred_fallthru
          _
      $region60: #{decoder_forward.5} parent=5 // pred_fallthru
        _
    $region6: #{decoder_forward.5} parent=1 // loop_footer
      %s21 = sadd.s32 1, %s17
    $region7: #{decoder_forward.5} parent=1 // loop_footer_branch
      %16 = sbr.rel target = $region3
    $region8: #{decoder_forward.5} parent=1 // loop_exit
      _
    %916 = vsyncpa [#allocation3], 1
    %s917 = scalar_lea.sflag [#allocation3], 1
    %918 = vsyncpa %s917, 1
    %919 = vsyncpa [#allocation5], 1
    %s920 = scalar_lea.sflag [#allocation5], 1
    %921 = vsyncpa %s920, 1
    %922 = vsyncpa [#allocation8], 1
    %s923 = scalar_lea.sflag [#allocation8], 1
    %924 = vsyncpa %s923, 1

// kernel: decoder_forward.6
$region0: #{decoder_forward.6}
  #allocation0 [shape = 'u32[]', space=smem, size = 0x4, offset = 0x4, fixed_abs, tag = 'smem constant byte address 0x4 - core index']
  #allocation1 [shape = 'u32[72,128]{1,0:T(1,128)}', space=vmem, size = 0x9000, scoped, tag = 'internal scratch']
  %s0 = inlined_call_operand.vmem [shape: f32[200,128], index: 0, kind: input, shape index: {}]
  %s1 = inlined_call_operand.vmem [shape: f32[128,576], index: 1, kind: input, shape index: {}]
  %s2 = inlined_call_operand.vmem [shape: f32[200,576], index: 2, kind: output, shape index: {}]
  %s3 = sld [smem:[#allocation0]]
  $region18: #{decoder_forward.6} parent=0
    _
  %s5 = ssub.s32 1, %s3
  %s6 = scalar_select 0, %s5, %s3
  // Predicated region
  $region2: #{decoder_forward.6} parent=0 // pred_check
    _
  $region3: #{decoder_forward.6} parent=0 // pred_check_branch
    %8 = sbr.rel (0) target = $region5
  $region4: #{decoder_forward.6} parent=0 // pred_region
    _
  $region5: #{decoder_forward.6} parent=0 // pred_fallthru
    _
  // Predicated region
  $region6: #{decoder_forward.6} parent=0 // pred_check
    _
  $region7: #{decoder_forward.6} parent=0 // pred_check_branch
    %10 = sbr.rel (0) target = $region9
  $region8: #{decoder_forward.6} parent=0 // pred_region
    _
  $region9: #{decoder_forward.6} parent=0 // pred_fallthru
    _
  %v11 = vld [vmem:[%s0] sm:$0xff]
  %v12 = vld [vmem:[%s0 + $0x8] sm:$0xff]
  %v13 = vld [vmem:[%s0 + $0x10] sm:$0xff]
  %v14 = vld [vmem:[%s0 + $0x18] sm:$0xff]
  %v15 = vld [vmem:[%s0 + $0x20] sm:$0xff]
  %v16 = vld [vmem:[%s0 + $0x28] sm:$0xff]
  %v17 = vld [vmem:[%s0 + $0x30] sm:$0xff]
  %v18 = vld [vmem:[%s0 + $0x38] sm:$0xff]
  %v19 = vld [vmem:[%s0 + $0x40] sm:$0xff]
  %v20 = vld [vmem:[%s0 + $0x48] sm:$0xff]
  %v21 = vld [vmem:[%s0 + $0x50] sm:$0xff]
  %v22 = vld [vmem:[%s0 + $0x58] sm:$0xff]
  %v23 = vld [vmem:[%s0 + $0x60] sm:$0xff]
  %v24 = vld [vmem:[%s0 + $0x68] sm:$0xff]
  %v25 = vld [vmem:[%s0 + $0x70] sm:$0xff]
  %v26 = vld [vmem:[%s0 + $0x78] sm:$0xff]
  %v27 = vld [vmem:[%s0 + $0x80] sm:$0xff]
  %v28 = vld [vmem:[%s0 + $0x88] sm:$0xff]
  %v29 = vld [vmem:[%s0 + $0x90] sm:$0xff]
  %v30 = vld [vmem:[%s0 + $0x98] sm:$0xff]
  %v31 = vld [vmem:[%s0 + $0xa0] sm:$0xff]
  %v32 = vld [vmem:[%s0 + $0xa8] sm:$0xff]
  %v33 = vld [vmem:[%s0 + $0xb0] sm:$0xff]
  %v34 = vld [vmem:[%s0 + $0xb8] sm:$0xff]
  %v35 = vld [vmem:[%s0 + $0xc0] sm:$0xff]
  %v36 = vld [vmem:[%s1] sm:$0xff]
  %v37 = vld [vmem:[%s1 + $0x8] sm:$0xff]
  %v38 = vld [vmem:[%s1 + $0x10] sm:$0xff]
  %v39 = vld [vmem:[%s1 + $0x18] sm:$0xff]
  %v40 = vld [vmem:[%s1 + $0x20] sm:$0xff]
  %v41 = vld [vmem:[%s1 + $0x28] sm:$0xff]
  %v42 = vld [vmem:[%s1 + $0x30] sm:$0xff]
  %v43 = vld [vmem:[%s1 + $0x38] sm:$0xff]
  %v44 = vld [vmem:[%s1 + $0x40] sm:$0xff]
  %v45 = vld [vmem:[%s1 + $0x48] sm:$0xff]
  %v46 = vld [vmem:[%s1 + $0x50] sm:$0xff]
  %v47 = vld [vmem:[%s1 + $0x58] sm:$0xff]
  %v48 = vld [vmem:[%s1 + $0x60] sm:$0xff]
  %v49 = vld [vmem:[%s1 + $0x68] sm:$0xff]
  %v50 = vld [vmem:[%s1 + $0x70] sm:$0xff]
  %v51 = vld [vmem:[%s1 + $0x78] sm:$0xff]
  %v52 = vld [vmem:[%s1 + $0x80] sm:$0xff]
  %v53 = vld [vmem:[%s1 + $0x88] sm:$0xff]
  %v54 = vld [vmem:[%s1 + $0x90] sm:$0xff]
  %v55 = vld [vmem:[%s1 + $0x98] sm:$0xff]
  %v56 = vld [vmem:[%s1 + $0xa0] sm:$0xff]
  %v57 = vld [vmem:[%s1 + $0xa8] sm:$0xff]
  %v58 = vld [vmem:[%s1 + $0xb0] sm:$0xff]
  %v59 = vld [vmem:[%s1 + $0xb8] sm:$0xff]
  %v60 = vld [vmem:[%s1 + $0xc0] sm:$0xff]
  %v61 = vld [vmem:[%s1 + $0xc8] sm:$0xff]
  %v62 = vld [vmem:[%s1 + $0xd0] sm:$0xff]
  %v63 = vld [vmem:[%s1 + $0xd8] sm:$0xff]
  %v64 = vld [vmem:[%s1 + $0xe0] sm:$0xff]
  %v65 = vld [vmem:[%s1 + $0xe8] sm:$0xff]
  %v66 = vld [vmem:[%s1 + $0xf0] sm:$0xff]
  %v67 = vld [vmem:[%s1 + $0xf8] sm:$0xff]
  %v68 = vld [vmem:[%s1 + $0x100] sm:$0xff]
  %v69 = vld [vmem:[%s1 + $0x108] sm:$0xff]
  %v70 = vld [vmem:[%s1 + $0x110] sm:$0xff]
  %v71 = vld [vmem:[%s1 + $0x118] sm:$0xff]
  %v72 = vld [vmem:[%s1 + $0x120] sm:$0xff]
  %v73 = vld [vmem:[%s1 + $0x128] sm:$0xff]
  %v74 = vld [vmem:[%s1 + $0x130] sm:$0xff]
  %v75 = vld [vmem:[%s1 + $0x138] sm:$0xff]
  %v76 = vld [vmem:[%s1 + $0x140] sm:$0xff]
  %v77 = vld [vmem:[%s1 + $0x148] sm:$0xff]
  %v78 = vld [vmem:[%s1 + $0x150] sm:$0xff]
  %v79 = vld [vmem:[%s1 + $0x158] sm:$0xff]
  %v80 = vld [vmem:[%s1 + $0x160] sm:$0xff]
  %v81 = vld [vmem:[%s1 + $0x168] sm:$0xff]
  %v82 = vld [vmem:[%s1 + $0x170] sm:$0xff]
  %v83 = vld [vmem:[%s1 + $0x178] sm:$0xff]
  %v84 = vld [vmem:[%s1 + $0x180] sm:$0xff]
  %v85 = vld [vmem:[%s1 + $0x188] sm:$0xff]
  %v86 = vld [vmem:[%s1 + $0x190] sm:$0xff]
  %v87 = vld [vmem:[%s1 + $0x198] sm:$0xff]
  %v88 = vld [vmem:[%s1 + $0x1a0] sm:$0xff]
  %v89 = vld [vmem:[%s1 + $0x1a8] sm:$0xff]
  %v90 = vld [vmem:[%s1 + $0x1b0] sm:$0xff]
  %v91 = vld [vmem:[%s1 + $0x1b8] sm:$0xff]
  %v92 = vld [vmem:[%s1 + $0x1c0] sm:$0xff]
  %v93 = vld [vmem:[%s1 + $0x1c8] sm:$0xff]
  %v94 = vld [vmem:[%s1 + $0x1d0] sm:$0xff]
  %v95 = vld [vmem:[%s1 + $0x1d8] sm:$0xff]
  %v96 = vld [vmem:[%s1 + $0x1e0] sm:$0xff]
  %v97 = vld [vmem:[%s1 + $0x1e8] sm:$0xff]
  %v98 = vld [vmem:[%s1 + $0x1f0] sm:$0xff]
  %v99 = vld [vmem:[%s1 + $0x1f8] sm:$0xff]
  %v100 = vld [vmem:[%s1 + $0x200] sm:$0xff]
  %v101 = vld [vmem:[%s1 + $0x208] sm:$0xff]
  %v102 = vld [vmem:[%s1 + $0x210] sm:$0xff]
  %v103 = vld [vmem:[%s1 + $0x218] sm:$0xff]
  %v104 = vld [vmem:[%s1 + $0x220] sm:$0xff]
  %v105 = vld [vmem:[%s1 + $0x228] sm:$0xff]
  %v106 = vld [vmem:[%s1 + $0x230] sm:$0xff]
  %v107 = vld [vmem:[%s1 + $0x238] sm:$0xff]
  %v108 = vld [vmem:[%s1 + $0x240] sm:$0xff]
  %v109 = vld [vmem:[%s1 + $0x248] sm:$0xff]
  %v110 = vld [vmem:[%s1 + $0x250] sm:$0xff]
  %v111 = vld [vmem:[%s1 + $0x258] sm:$0xff]
  %v112 = vld [vmem:[%s1 + $0x260] sm:$0xff]
  %v113 = vld [vmem:[%s1 + $0x268] sm:$0xff]
  %v114 = vld [vmem:[%s1 + $0x270] sm:$0xff]
  %v115 = vld [vmem:[%s1 + $0x278] sm:$0xff]
  %116 = vmatpush.msra.mxu0 %v111
  %117 = vmatpush.msra.mxu0 %v106
  %118 = vmatpush.msra.mxu0 %v101
  %119 = vmatpush.msra.mxu0 %v96
  %120 = vmatpush.msra.mxu0 %v91
  %121 = vmatpush.msra.mxu0 %v86
  %122 = vmatpush.msra.mxu0 %v81
  %123 = vmatpush.msra.mxu0 %v76
  %124 = vmatpush.msra.mxu0 %v71
  %125 = vmatpush.msra.mxu0 %v66
  %126 = vmatpush.msra.mxu0 %v61
  %127 = vmatpush.msra.mxu0 %v56
  %128 = vmatpush.msra.mxu0 %v51
  %129 = vmatpush.msra.mxu0 %v46
  %130 = vmatpush.msra.mxu0 %v41
  %131 = vmatpush.msra.mxu0 %v36
  %132 = vmatmul.f32.gmra.mxu0 %v11
  %v133 = vpop.f32.mrf.mxu0
  %v134 = vadd.f32 0.0, %v133
  %135 = vmatmul.f32.gmra.mxu0 %v12
  %v136 = vpop.f32.mrf.mxu0
  %v137 = vadd.f32 0.0, %v136
  %138 = vmatmul.f32.gmra.mxu0 %v13
  %v139 = vpop.f32.mrf.mxu0
  %v140 = vadd.f32 0.0, %v139
  %141 = vmatmul.f32.gmra.mxu0 %v14
  %v142 = vpop.f32.mrf.mxu0
  %v143 = vadd.f32 0.0, %v142
  %144 = vmatmul.f32.gmra.mxu0 %v15
  %v145 = vpop.f32.mrf.mxu0
  %v146 = vadd.f32 0.0, %v145
  %147 = vmatmul.f32.gmra.mxu0 %v16
  %v148 = vpop.f32.mrf.mxu0
  %v149 = vadd.f32 0.0, %v148
  %150 = vmatmul.f32.gmra.mxu0 %v17
  %v151 = vpop.f32.mrf.mxu0
  %v152 = vadd.f32 0.0, %v151
  %153 = vmatmul.f32.gmra.mxu0 %v18
  %v154 = vpop.f32.mrf.mxu0
  %v155 = vadd.f32 0.0, %v154
  %156 = vmatmul.f32.gmra.mxu0 %v19
  %v157 = vpop.f32.mrf.mxu0
  %v158 = vadd.f32 0.0, %v157
  %159 = vmatmul.f32.gmra.mxu0 %v20
  %v160 = vpop.f32.mrf.mxu0
  %v161 = vadd.f32 0.0, %v160
  %162 = vmatmul.f32.gmra.mxu0 %v21
  %v163 = vpop.f32.mrf.mxu0
  %v164 = vadd.f32 0.0, %v163
  %165 = vmatmul.f32.gmra.mxu0 %v22
  %v166 = vpop.f32.mrf.mxu0
  %v167 = vadd.f32 0.0, %v166
  %168 = vmatmul.f32.gmra.mxu0 %v23
  %v169 = vpop.f32.mrf.mxu0
  %v170 = vadd.f32 0.0, %v169
  %171 = vmatmul.f32.gmra.mxu0 %v24
  %v172 = vpop.f32.mrf.mxu0
  %v173 = vadd.f32 0.0, %v172
  %174 = vmatmul.f32.gmra.mxu0 %v25
  %v175 = vpop.f32.mrf.mxu0
  %v176 = vadd.f32 0.0, %v175
  %177 = vmatmul.f32.gmra.mxu0 %v26
  %v178 = vpop.f32.mrf.mxu0
  %v179 = vadd.f32 0.0, %v178
  %180 = vmatmul.f32.gmra.mxu0 %v27
  %v181 = vpop.f32.mrf.mxu0
  %v182 = vadd.f32 0.0, %v181
  %183 = vmatmul.f32.gmra.mxu0 %v28
  %v184 = vpop.f32.mrf.mxu0
  %v185 = vadd.f32 0.0, %v184
  %186 = vmatmul.f32.gmra.mxu0 %v29
  %v187 = vpop.f32.mrf.mxu0
  %v188 = vadd.f32 0.0, %v187
  %189 = vmatmul.f32.gmra.mxu0 %v30
  %v190 = vpop.f32.mrf.mxu0
  %v191 = vadd.f32 0.0, %v190
  %192 = vmatmul.f32.gmra.mxu0 %v31
  %v193 = vpop.f32.mrf.mxu0
  %v194 = vadd.f32 0.0, %v193
  %195 = vmatmul.f32.gmra.mxu0 %v32
  %v196 = vpop.f32.mrf.mxu0
  %v197 = vadd.f32 0.0, %v196
  %198 = vmatmul.f32.gmra.mxu0 %v33
  %v199 = vpop.f32.mrf.mxu0
  %v200 = vadd.f32 0.0, %v199
  %201 = vmatmul.f32.gmra.mxu0 %v34
  %v202 = vpop.f32.mrf.mxu0
  %v203 = vadd.f32 0.0, %v202
  %204 = vmatmul.f32.gmra.mxu0 %v35
  %v205 = vpop.f32.mrf.mxu0
  %v206 = vadd.f32 0.0, %v205
  %207 = vdwg.mxu0
  %208 = vmatpush.msra.mxu0 %v112
  %209 = vmatpush.msra.mxu0 %v107
  %210 = vmatpush.msra.mxu0 %v102
  %211 = vmatpush.msra.mxu0 %v97
  %212 = vmatpush.msra.mxu0 %v92
  %213 = vmatpush.msra.mxu0 %v87
  %214 = vmatpush.msra.mxu0 %v82
  %215 = vmatpush.msra.mxu0 %v77
  %216 = vmatpush.msra.mxu0 %v72
  %217 = vmatpush.msra.mxu0 %v67
  %218 = vmatpush.msra.mxu0 %v62
  %219 = vmatpush.msra.mxu0 %v57
  %220 = vmatpush.msra.mxu0 %v52
  %221 = vmatpush.msra.mxu0 %v47
  %222 = vmatpush.msra.mxu0 %v42
  %223 = vmatpush.msra.mxu0 %v37
  %224 = vmatmul.f32.gmra.mxu0 %v11
  %v225 = vpop.f32.mrf.mxu0
  %v226 = vadd.f32 0.0, %v225
  %227 = vmatmul.f32.gmra.mxu0 %v12
  %v228 = vpop.f32.mrf.mxu0
  %v229 = vadd.f32 0.0, %v228
  %230 = vmatmul.f32.gmra.mxu0 %v13
  %v231 = vpop.f32.mrf.mxu0
  %v232 = vadd.f32 0.0, %v231
  %233 = vmatmul.f32.gmra.mxu0 %v14
  %v234 = vpop.f32.mrf.mxu0
  %v235 = vadd.f32 0.0, %v234
  %236 = vmatmul.f32.gmra.mxu0 %v15
  %v237 = vpop.f32.mrf.mxu0
  %v238 = vadd.f32 0.0, %v237
  %239 = vmatmul.f32.gmra.mxu0 %v16
  %v240 = vpop.f32.mrf.mxu0
  %v241 = vadd.f32 0.0, %v240
  %242 = vmatmul.f32.gmra.mxu0 %v17
  %v243 = vpop.f32.mrf.mxu0
  %v244 = vadd.f32 0.0, %v243
  %245 = vmatmul.f32.gmra.mxu0 %v18
  %v246 = vpop.f32.mrf.mxu0
  %v247 = vadd.f32 0.0, %v246
  %248 = vmatmul.f32.gmra.mxu0 %v19
  %v249 = vpop.f32.mrf.mxu0
  %v250 = vadd.f32 0.0, %v249
  %251 = vmatmul.f32.gmra.mxu0 %v20
  %v252 = vpop.f32.mrf.mxu0
  %v253 = vadd.f32 0.0, %v252
  %254 = vmatmul.f32.gmra.mxu0 %v21
  %v255 = vpop.f32.mrf.mxu0
  %v256 = vadd.f32 0.0, %v255
  %257 = vmatmul.f32.gmra.mxu0 %v22
  %v258 = vpop.f32.mrf.mxu0
  %v259 = vadd.f32 0.0, %v258
  %260 = vmatmul.f32.gmra.mxu0 %v23
  %v261 = vpop.f32.mrf.mxu0
  %v262 = vadd.f32 0.0, %v261
  %263 = vmatmul.f32.gmra.mxu0 %v24
  %v264 = vpop.f32.mrf.mxu0
  %v265 = vadd.f32 0.0, %v264
  %266 = vmatmul.f32.gmra.mxu0 %v25
  %v267 = vpop.f32.mrf.mxu0
  %v268 = vadd.f32 0.0, %v267
  %269 = vmatmul.f32.gmra.mxu0 %v26
  %v270 = vpop.f32.mrf.mxu0
  %v271 = vadd.f32 0.0, %v270
  %272 = vmatmul.f32.gmra.mxu0 %v27
  %v273 = vpop.f32.mrf.mxu0
  %v274 = vadd.f32 0.0, %v273
  %275 = vmatmul.f32.gmra.mxu0 %v28
  %v276 = vpop.f32.mrf.mxu0
  %v277 = vadd.f32 0.0, %v276
  %278 = vmatmul.f32.gmra.mxu0 %v29
  %v279 = vpop.f32.mrf.mxu0
  %v280 = vadd.f32 0.0, %v279
  %281 = vmatmul.f32.gmra.mxu0 %v30
  %v282 = vpop.f32.mrf.mxu0
  %v283 = vadd.f32 0.0, %v282
  %284 = vmatmul.f32.gmra.mxu0 %v31
  %v285 = vpop.f32.mrf.mxu0
  %v286 = vadd.f32 0.0, %v285
  %287 = vmatmul.f32.gmra.mxu0 %v32
  %v288 = vpop.f32.mrf.mxu0
  %v289 = vadd.f32 0.0, %v288
  %290 = vmatmul.f32.gmra.mxu0 %v33
  %v291 = vpop.f32.mrf.mxu0
  %v292 = vadd.f32 0.0, %v291
  %293 = vmatmul.f32.gmra.mxu0 %v34
  %v294 = vpop.f32.mrf.mxu0
  %v295 = vadd.f32 0.0, %v294
  %296 = vmatmul.f32.gmra.mxu0 %v35
  %v297 = vpop.f32.mrf.mxu0
  %v298 = vadd.f32 0.0, %v297
  %299 = vdwg.mxu0
  %300 = vmatpush.msra.mxu0 %v113
  %301 = vmatpush.msra.mxu0 %v108
  %302 = vmatpush.msra.mxu0 %v103
  %303 = vmatpush.msra.mxu0 %v98
  %304 = vmatpush.msra.mxu0 %v93
  %305 = vmatpush.msra.mxu0 %v88
  %306 = vmatpush.msra.mxu0 %v83
  %307 = vmatpush.msra.mxu0 %v78
  %308 = vmatpush.msra.mxu0 %v73
  %309 = vmatpush.msra.mxu0 %v68
  %310 = vmatpush.msra.mxu0 %v63
  %311 = vmatpush.msra.mxu0 %v58
  %312 = vmatpush.msra.mxu0 %v53
  %313 = vmatpush.msra.mxu0 %v48
  %314 = vmatpush.msra.mxu0 %v43
  %315 = vmatpush.msra.mxu0 %v38
  %316 = vmatmul.f32.gmra.mxu0 %v11
  %v317 = vpop.f32.mrf.mxu0
  %v318 = vadd.f32 0.0, %v317
  %319 = vmatmul.f32.gmra.mxu0 %v12
  %v320 = vpop.f32.mrf.mxu0
  %v321 = vadd.f32 0.0, %v320
  %322 = vmatmul.f32.gmra.mxu0 %v13
  %v323 = vpop.f32.mrf.mxu0
  %v324 = vadd.f32 0.0, %v323
  %325 = vmatmul.f32.gmra.mxu0 %v14
  %v326 = vpop.f32.mrf.mxu0
  %v327 = vadd.f32 0.0, %v326
  %328 = vmatmul.f32.gmra.mxu0 %v15
  %v329 = vpop.f32.mrf.mxu0
  %v330 = vadd.f32 0.0, %v329
  %331 = vmatmul.f32.gmra.mxu0 %v16
  %v332 = vpop.f32.mrf.mxu0
  %v333 = vadd.f32 0.0, %v332
  %334 = vmatmul.f32.gmra.mxu0 %v17
  %v335 = vpop.f32.mrf.mxu0
  %v336 = vadd.f32 0.0, %v335
  %337 = vmatmul.f32.gmra.mxu0 %v18
  %v338 = vpop.f32.mrf.mxu0
  %v339 = vadd.f32 0.0, %v338
  %340 = vmatmul.f32.gmra.mxu0 %v19
  %v341 = vpop.f32.mrf.mxu0
  %v342 = vadd.f32 0.0, %v341
  %343 = vmatmul.f32.gmra.mxu0 %v20
  %v344 = vpop.f32.mrf.mxu0
  %v345 = vadd.f32 0.0, %v344
  %346 = vmatmul.f32.gmra.mxu0 %v21
  %v347 = vpop.f32.mrf.mxu0
  %v348 = vadd.f32 0.0, %v347
  %349 = vmatmul.f32.gmra.mxu0 %v22
  %v350 = vpop.f32.mrf.mxu0
  %v351 = vadd.f32 0.0, %v350
  %352 = vmatmul.f32.gmra.mxu0 %v23
  %v353 = vpop.f32.mrf.mxu0
  %v354 = vadd.f32 0.0, %v353
  %355 = vmatmul.f32.gmra.mxu0 %v24
  %v356 = vpop.f32.mrf.mxu0
  %v357 = vadd.f32 0.0, %v356
  %358 = vmatmul.f32.gmra.mxu0 %v25
  %v359 = vpop.f32.mrf.mxu0
  %v360 = vadd.f32 0.0, %v359
  %361 = vmatmul.f32.gmra.mxu0 %v26
  %v362 = vpop.f32.mrf.mxu0
  %v363 = vadd.f32 0.0, %v362
  %364 = vmatmul.f32.gmra.mxu0 %v27
  %v365 = vpop.f32.mrf.mxu0
  %v366 = vadd.f32 0.0, %v365
  %367 = vmatmul.f32.gmra.mxu0 %v28
  %v368 = vpop.f32.mrf.mxu0
  %v369 = vadd.f32 0.0, %v368
  %370 = vmatmul.f32.gmra.mxu0 %v29
  %v371 = vpop.f32.mrf.mxu0
  %v372 = vadd.f32 0.0, %v371
  %373 = vmatmul.f32.gmra.mxu0 %v30
  %v374 = vpop.f32.mrf.mxu0
  %v375 = vadd.f32 0.0, %v374
  %376 = vmatmul.f32.gmra.mxu0 %v31
  %v377 = vpop.f32.mrf.mxu0
  %v378 = vadd.f32 0.0, %v377
  %379 = vmatmul.f32.gmra.mxu0 %v32
  %v380 = vpop.f32.mrf.mxu0
  %v381 = vadd.f32 0.0, %v380
  %382 = vmatmul.f32.gmra.mxu0 %v33
  %v383 = vpop.f32.mrf.mxu0
  %v384 = vadd.f32 0.0, %v383
  %385 = vmatmul.f32.gmra.mxu0 %v34
  %v386 = vpop.f32.mrf.mxu0
  %v387 = vadd.f32 0.0, %v386
  %388 = vmatmul.f32.gmra.mxu0 %v35
  %v389 = vpop.f32.mrf.mxu0
  %v390 = vadd.f32 0.0, %v389
  %391 = vdwg.mxu0
  %392 = vmatpush.msra.mxu0 %v114
  %393 = vmatpush.msra.mxu0 %v109
  %394 = vmatpush.msra.mxu0 %v104
  %395 = vmatpush.msra.mxu0 %v99
  %396 = vmatpush.msra.mxu0 %v94
  %397 = vmatpush.msra.mxu0 %v89
  %398 = vmatpush.msra.mxu0 %v84
  %399 = vmatpush.msra.mxu0 %v79
  %400 = vmatpush.msra.mxu0 %v74
  %401 = vmatpush.msra.mxu0 %v69
  %402 = vmatpush.msra.mxu0 %v64
  %403 = vmatpush.msra.mxu0 %v59
  %404 = vmatpush.msra.mxu0 %v54
  %405 = vmatpush.msra.mxu0 %v49
  %406 = vmatpush.msra.mxu0 %v44
  %407 = vmatpush.msra.mxu0 %v39
  %408 = vmatmul.f32.gmra.mxu0 %v11
  %v409 = vpop.f32.mrf.mxu0
  %v410 = vadd.f32 0.0, %v409
  %411 = vmatmul.f32.gmra.mxu0 %v12
  %v412 = vpop.f32.mrf.mxu0
  %v413 = vadd.f32 0.0, %v412
  %414 = vmatmul.f32.gmra.mxu0 %v13
  %v415 = vpop.f32.mrf.mxu0
  %v416 = vadd.f32 0.0, %v415
  %417 = vmatmul.f32.gmra.mxu0 %v14
  %v418 = vpop.f32.mrf.mxu0
  %v419 = vadd.f32 0.0, %v418
  %420 = vmatmul.f32.gmra.mxu0 %v15
  %v421 = vpop.f32.mrf.mxu0
  %v422 = vadd.f32 0.0, %v421
  %423 = vmatmul.f32.gmra.mxu0 %v16
  %v424 = vpop.f32.mrf.mxu0
  %v425 = vadd.f32 0.0, %v424
  %426 = vmatmul.f32.gmra.mxu0 %v17
  %v427 = vpop.f32.mrf.mxu0
  %v428 = vadd.f32 0.0, %v427
  %429 = vmatmul.f32.gmra.mxu0 %v18
  %v430 = vpop.f32.mrf.mxu0
  %v431 = vadd.f32 0.0, %v430
  %432 = vmatmul.f32.gmra.mxu0 %v19
  %v433 = vpop.f32.mrf.mxu0
  %v434 = vadd.f32 0.0, %v433
  %435 = vmatmul.f32.gmra.mxu0 %v20
  %v436 = vpop.f32.mrf.mxu0
  %v437 = vadd.f32 0.0, %v436
  %438 = vmatmul.f32.gmra.mxu0 %v21
  %v439 = vpop.f32.mrf.mxu0
  %v440 = vadd.f32 0.0, %v439
  %441 = vmatmul.f32.gmra.mxu0 %v22
  %v442 = vpop.f32.mrf.mxu0
  %v443 = vadd.f32 0.0, %v442
  %444 = vmatmul.f32.gmra.mxu0 %v23
  %v445 = vpop.f32.mrf.mxu0
  %v446 = vadd.f32 0.0, %v445
  %447 = vmatmul.f32.gmra.mxu0 %v24
  %v448 = vpop.f32.mrf.mxu0
  %v449 = vadd.f32 0.0, %v448
  %450 = vmatmul.f32.gmra.mxu0 %v25
  %v451 = vpop.f32.mrf.mxu0
  %v452 = vadd.f32 0.0, %v451
  %453 = vmatmul.f32.gmra.mxu0 %v26
  %v454 = vpop.f32.mrf.mxu0
  %v455 = vadd.f32 0.0, %v454
  %456 = vmatmul.f32.gmra.mxu0 %v27
  %v457 = vpop.f32.mrf.mxu0
  %v458 = vadd.f32 0.0, %v457
  %459 = vmatmul.f32.gmra.mxu0 %v28
  %v460 = vpop.f32.mrf.mxu0
  %v461 = vadd.f32 0.0, %v460
  %462 = vmatmul.f32.gmra.mxu0 %v29
  %v463 = vpop.f32.mrf.mxu0
  %v464 = vadd.f32 0.0, %v463
  %465 = vmatmul.f32.gmra.mxu0 %v30
  %v466 = vpop.f32.mrf.mxu0
  %v467 = vadd.f32 0.0, %v466
  %468 = vmatmul.f32.gmra.mxu0 %v31
  %v469 = vpop.f32.mrf.mxu0
  %v470 = vadd.f32 0.0, %v469
  %471 = vmatmul.f32.gmra.mxu0 %v32
  %v472 = vpop.f32.mrf.mxu0
  %v473 = vadd.f32 0.0, %v472
  %474 = vmatmul.f32.gmra.mxu0 %v33
  %v475 = vpop.f32.mrf.mxu0
  %v476 = vadd.f32 0.0, %v475
  %477 = vmatmul.f32.gmra.mxu0 %v34
  %v478 = vpop.f32.mrf.mxu0
  %v479 = vadd.f32 0.0, %v478
  %480 = vmatmul.f32.gmra.mxu0 %v35
  %v481 = vpop.f32.mrf.mxu0
  %v482 = vadd.f32 0.0, %v481
  %483 = vdwg.mxu0
  %484 = vmatpush.msra.mxu0 %v115
  %485 = vmatpush.msra.mxu0 %v110
  %486 = vmatpush.msra.mxu0 %v105
  %487 = vmatpush.msra.mxu0 %v100
  %488 = vmatpush.msra.mxu0 %v95
  %489 = vmatpush.msra.mxu0 %v90
  %490 = vmatpush.msra.mxu0 %v85
  %491 = vmatpush.msra.mxu0 %v80
  %492 = vmatpush.msra.mxu0 %v75
  %493 = vmatpush.msra.mxu0 %v70
  %494 = vmatpush.msra.mxu0 %v65
  %495 = vmatpush.msra.mxu0 %v60
  %496 = vmatpush.msra.mxu0 %v55
  %497 = vmatpush.msra.mxu0 %v50
  %498 = vmatpush.msra.mxu0 %v45
  %499 = vmatpush.msra.mxu0 %v40
  %500 = vmatmul.f32.gmra.mxu0 %v11
  %v501 = vpop.f32.mrf.mxu0
  %v502 = vadd.f32 0.0, %v501
  %503 = vmatmul.f32.gmra.mxu0 %v12
  %v504 = vpop.f32.mrf.mxu0
  %v505 = vadd.f32 0.0, %v504
  %506 = vmatmul.f32.gmra.mxu0 %v13
  %v507 = vpop.f32.mrf.mxu0
  %v508 = vadd.f32 0.0, %v507
  %509 = vmatmul.f32.gmra.mxu0 %v14
  %v510 = vpop.f32.mrf.mxu0
  %v511 = vadd.f32 0.0, %v510
  %512 = vmatmul.f32.gmra.mxu0 %v15
  %v513 = vpop.f32.mrf.mxu0
  %v514 = vadd.f32 0.0, %v513
  %515 = vmatmul.f32.gmra.mxu0 %v16
  %v516 = vpop.f32.mrf.mxu0
  %v517 = vadd.f32 0.0, %v516
  %518 = vmatmul.f32.gmra.mxu0 %v17
  %v519 = vpop.f32.mrf.mxu0
  %v520 = vadd.f32 0.0, %v519
  %521 = vmatmul.f32.gmra.mxu0 %v18
  %v522 = vpop.f32.mrf.mxu0
  %v523 = vadd.f32 0.0, %v522
  %524 = vmatmul.f32.gmra.mxu0 %v19
  %v525 = vpop.f32.mrf.mxu0
  %v526 = vadd.f32 0.0, %v525
  %527 = vmatmul.f32.gmra.mxu0 %v20
  %v528 = vpop.f32.mrf.mxu0
  %v529 = vadd.f32 0.0, %v528
  %530 = vmatmul.f32.gmra.mxu0 %v21
  %v531 = vpop.f32.mrf.mxu0
  %v532 = vadd.f32 0.0, %v531
  %533 = vmatmul.f32.gmra.mxu0 %v22
  %v534 = vpop.f32.mrf.mxu0
  %v535 = vadd.f32 0.0, %v534
  %536 = vmatmul.f32.gmra.mxu0 %v23
  %v537 = vpop.f32.mrf.mxu0
  %v538 = vadd.f32 0.0, %v537
  %539 = vmatmul.f32.gmra.mxu0 %v24
  %v540 = vpop.f32.mrf.mxu0
  %v541 = vadd.f32 0.0, %v540
  %542 = vmatmul.f32.gmra.mxu0 %v25
  %v543 = vpop.f32.mrf.mxu0
  %v544 = vadd.f32 0.0, %v543
  %545 = vmatmul.f32.gmra.mxu0 %v26
  %v546 = vpop.f32.mrf.mxu0
  %v547 = vadd.f32 0.0, %v546
  %548 = vmatmul.f32.gmra.mxu0 %v27
  %v549 = vpop.f32.mrf.mxu0
  %v550 = vadd.f32 0.0, %v549
  %551 = vmatmul.f32.gmra.mxu0 %v28
  %v552 = vpop.f32.mrf.mxu0
  %v553 = vadd.f32 0.0, %v552
  %554 = vmatmul.f32.gmra.mxu0 %v29
  %v555 = vpop.f32.mrf.mxu0
  %v556 = vadd.f32 0.0, %v555
  %557 = vmatmul.f32.gmra.mxu0 %v30
  %v558 = vpop.f32.mrf.mxu0
  %v559 = vadd.f32 0.0, %v558
  %560 = vmatmul.f32.gmra.mxu0 %v31
  %v561 = vpop.f32.mrf.mxu0
  %v562 = vadd.f32 0.0, %v561
  %563 = vmatmul.f32.gmra.mxu0 %v32
  %v564 = vpop.f32.mrf.mxu0
  %v565 = vadd.f32 0.0, %v564
  %566 = vmatmul.f32.gmra.mxu0 %v33
  %v567 = vpop.f32.mrf.mxu0
  %v568 = vadd.f32 0.0, %v567
  %569 = vmatmul.f32.gmra.mxu0 %v34
  %v570 = vpop.f32.mrf.mxu0
  %v571 = vadd.f32 0.0, %v570
  %572 = vmatmul.f32.gmra.mxu0 %v35
  %v573 = vpop.f32.mrf.mxu0
  %v574 = vadd.f32 0.0, %v573
  %575 = vdwg.mxu0
  %576 = vst [vmem:[%s2] sm:$0xff] %v134
  %577 = vst [vmem:[%s2 + $0x8] sm:$0xff] %v226
  %578 = vst [vmem:[%s2 + $0x10] sm:$0xff] %v318
  %579 = vst [vmem:[%s2 + $0x18] sm:$0xff] %v410
  %vm580 = vcmask 523264
  %581 = vst.msk [vmem:[%s2 + $0x20] sm:$0xff] %vm580, %v502
  %582 = vst [vmem:[%s2 + $0x28] sm:$0xff] %v137
  %583 = vst [vmem:[%s2 + $0x30] sm:$0xff] %v229
  %584 = vst [vmem:[%s2 + $0x38] sm:$0xff] %v321
  %585 = vst [vmem:[%s2 + $0x40] sm:$0xff] %v413
  %586 = vst.msk [vmem:[%s2 + $0x48] sm:$0xff] %vm580, %v505
  %587 = vst [vmem:[%s2 + $0x50] sm:$0xff] %v140
  %588 = vst [vmem:[%s2 + $0x58] sm:$0xff] %v232
  %589 = vst [vmem:[%s2 + $0x60] sm:$0xff] %v324
  %590 = vst [vmem:[%s2 + $0x68] sm:$0xff] %v416
  %591 = vst.msk [vmem:[%s2 + $0x70] sm:$0xff] %vm580, %v508
  %592 = vst [vmem:[%s2 + $0x78] sm:$0xff] %v143
  %593 = vst [vmem:[%s2 + $0x80] sm:$0xff] %v235
  %594 = vst [vmem:[%s2 + $0x88] sm:$0xff] %v327
  %595 = vst [vmem:[%s2 + $0x90] sm:$0xff] %v419
  %596 = vst.msk [vmem:[%s2 + $0x98] sm:$0xff] %vm580, %v511
  %597 = vst [vmem:[%s2 + $0xa0] sm:$0xff] %v146
  %598 = vst [vmem:[%s2 + $0xa8] sm:$0xff] %v238
  %599 = vst [vmem:[%s2 + $0xb0] sm:$0xff] %v330
  %600 = vst [vmem:[%s2 + $0xb8] sm:$0xff] %v422
  %601 = vst.msk [vmem:[%s2 + $0xc0] sm:$0xff] %vm580, %v514
  %602 = vst [vmem:[%s2 + $0xc8] sm:$0xff] %v149
  %603 = vst [vmem:[%s2 + $0xd0] sm:$0xff] %v241
  %604 = vst [vmem:[%s2 + $0xd8] sm:$0xff] %v333
  %605 = vst [vmem:[%s2 + $0xe0] sm:$0xff] %v425
  %606 = vst.msk [vmem:[%s2 + $0xe8] sm:$0xff] %vm580, %v517
  %607 = vst [vmem:[%s2 + $0xf0] sm:$0xff] %v152
  %608 = vst [vmem:[%s2 + $0xf8] sm:$0xff] %v244
  %609 = vst [vmem:[%s2 + $0x100] sm:$0xff] %v336
  %610 = vst [vmem:[%s2 + $0x108] sm:$0xff] %v428
  %611 = vst.msk [vmem:[%s2 + $0x110] sm:$0xff] %vm580, %v520
  %612 = vst [vmem:[%s2 + $0x118] sm:$0xff] %v155
  %613 = vst [vmem:[%s2 + $0x120] sm:$0xff] %v247
  %614 = vst [vmem:[%s2 + $0x128] sm:$0xff] %v339
  %615 = vst [vmem:[%s2 + $0x130] sm:$0xff] %v431
  %616 = vst.msk [vmem:[%s2 + $0x138] sm:$0xff] %vm580, %v523
  %617 = vst [vmem:[%s2 + $0x140] sm:$0xff] %v158
  %618 = vst [vmem:[%s2 + $0x148] sm:$0xff] %v250
  %619 = vst [vmem:[%s2 + $0x150] sm:$0xff] %v342
  %620 = vst [vmem:[%s2 + $0x158] sm:$0xff] %v434
  %621 = vst.msk [vmem:[%s2 + $0x160] sm:$0xff] %vm580, %v526
  %622 = vst [vmem:[%s2 + $0x168] sm:$0xff] %v161
  %623 = vst [vmem:[%s2 + $0x170] sm:$0xff] %v253
  %624 = vst [vmem:[%s2 + $0x178] sm:$0xff] %v345
  %625 = vst [vmem:[%s2 + $0x180] sm:$0xff] %v437
  %626 = vst.msk [vmem:[%s2 + $0x188] sm:$0xff] %vm580, %v529
  %627 = vst [vmem:[%s2 + $0x190] sm:$0xff] %v164
  %628 = vst [vmem:[%s2 + $0x198] sm:$0xff] %v256
  %629 = vst [vmem:[%s2 + $0x1a0] sm:$0xff] %v348
  %630 = vst [vmem:[%s2 + $0x1a8] sm:$0xff] %v440
  %631 = vst.msk [vmem:[%s2 + $0x1b0] sm:$0xff] %vm580, %v532
  %632 = vst [vmem:[%s2 + $0x1b8] sm:$0xff] %v167
  %633 = vst [vmem:[%s2 + $0x1c0] sm:$0xff] %v259
  %634 = vst [vmem:[%s2 + $0x1c8] sm:$0xff] %v351
  %635 = vst [vmem:[%s2 + $0x1d0] sm:$0xff] %v443
  %636 = vst.msk [vmem:[%s2 + $0x1d8] sm:$0xff] %vm580, %v535
  %637 = vst [vmem:[%s2 + $0x1e0] sm:$0xff] %v170
  %638 = vst [vmem:[%s2 + $0x1e8] sm:$0xff] %v262
  %639 = vst [vmem:[%s2 + $0x1f0] sm:$0xff] %v354
  %640 = vst [vmem:[%s2 + $0x1f8] sm:$0xff] %v446
  %641 = vst.msk [vmem:[%s2 + $0x200] sm:$0xff] %vm580, %v538
  %642 = vst [vmem:[%s2 + $0x208] sm:$0xff] %v173
  %643 = vst [vmem:[%s2 + $0x210] sm:$0xff] %v265
  %644 = vst [vmem:[%s2 + $0x218] sm:$0xff] %v357
  %645 = vst [vmem:[%s2 + $0x220] sm:$0xff] %v449
  %646 = vst.msk [vmem:[%s2 + $0x228] sm:$0xff] %vm580, %v541
  %647 = vst [vmem:[%s2 + $0x230] sm:$0xff] %v176
  %648 = vst [vmem:[%s2 + $0x238] sm:$0xff] %v268
  %649 = vst [vmem:[%s2 + $0x240] sm:$0xff] %v360
  %650 = vst [vmem:[%s2 + $0x248] sm:$0xff] %v452
  %651 = vst.msk [vmem:[%s2 + $0x250] sm:$0xff] %vm580, %v544
  %652 = vst [vmem:[%s2 + $0x258] sm:$0xff] %v179
  %653 = vst [vmem:[%s2 + $0x260] sm:$0xff] %v271
  %654 = vst [vmem:[%s2 + $0x268] sm:$0xff] %v363
  %655 = vst [vmem:[%s2 + $0x270] sm:$0xff] %v455
  %656 = vst.msk [vmem:[%s2 + $0x278] sm:$0xff] %vm580, %v547
  %657 = vst [vmem:[%s2 + $0x280] sm:$0xff] %v182
  %658 = vst [vmem:[%s2 + $0x288] sm:$0xff] %v274
  %659 = vst [vmem:[%s2 + $0x290] sm:$0xff] %v366
  %660 = vst [vmem:[%s2 + $0x298] sm:$0xff] %v458
  %661 = vst.msk [vmem:[%s2 + $0x2a0] sm:$0xff] %vm580, %v550
  %662 = vst [vmem:[%s2 + $0x2a8] sm:$0xff] %v185
  %663 = vst [vmem:[%s2 + $0x2b0] sm:$0xff] %v277
  %664 = vst [vmem:[%s2 + $0x2b8] sm:$0xff] %v369
  %665 = vst [vmem:[%s2 + $0x2c0] sm:$0xff] %v461
  %666 = vst.msk [vmem:[%s2 + $0x2c8] sm:$0xff] %vm580, %v553
  %667 = vst [vmem:[%s2 + $0x2d0] sm:$0xff] %v188
  %668 = vst [vmem:[%s2 + $0x2d8] sm:$0xff] %v280
  %669 = vst [vmem:[%s2 + $0x2e0] sm:$0xff] %v372
  %670 = vst [vmem:[%s2 + $0x2e8] sm:$0xff] %v464
  %671 = vst.msk [vmem:[%s2 + $0x2f0] sm:$0xff] %vm580, %v556
  %672 = vst [vmem:[%s2 + $0x2f8] sm:$0xff] %v191
  %673 = vst [vmem:[%s2 + $0x300] sm:$0xff] %v283
  %674 = vst [vmem:[%s2 + $0x308] sm:$0xff] %v375
  %675 = vst [vmem:[%s2 + $0x310] sm:$0xff] %v467
  %676 = vst.msk [vmem:[%s2 + $0x318] sm:$0xff] %vm580, %v559
  %677 = vst [vmem:[%s2 + $0x320] sm:$0xff] %v194
  %678 = vst [vmem:[%s2 + $0x328] sm:$0xff] %v286
  %679 = vst [vmem:[%s2 + $0x330] sm:$0xff] %v378
  %680 = vst [vmem:[%s2 + $0x338] sm:$0xff] %v470
  %681 = vst.msk [vmem:[%s2 + $0x340] sm:$0xff] %vm580, %v562
  %682 = vst [vmem:[%s2 + $0x348] sm:$0xff] %v197
  %683 = vst [vmem:[%s2 + $0x350] sm:$0xff] %v289
  %684 = vst [vmem:[%s2 + $0x358] sm:$0xff] %v381
  %685 = vst [vmem:[%s2 + $0x360] sm:$0xff] %v473
  %686 = vst.msk [vmem:[%s2 + $0x368] sm:$0xff] %vm580, %v565
  %687 = vst [vmem:[%s2 + $0x370] sm:$0xff] %v200
  %688 = vst [vmem:[%s2 + $0x378] sm:$0xff] %v292
  %689 = vst [vmem:[%s2 + $0x380] sm:$0xff] %v384
  %690 = vst [vmem:[%s2 + $0x388] sm:$0xff] %v476
  %691 = vst.msk [vmem:[%s2 + $0x390] sm:$0xff] %vm580, %v568
  %692 = vst [vmem:[%s2 + $0x398] sm:$0xff] %v203
  %693 = vst [vmem:[%s2 + $0x3a0] sm:$0xff] %v295
  %694 = vst [vmem:[%s2 + $0x3a8] sm:$0xff] %v387
  %695 = vst [vmem:[%s2 + $0x3b0] sm:$0xff] %v479
  %696 = vst.msk [vmem:[%s2 + $0x3b8] sm:$0xff] %vm580, %v571
  %697 = vst [vmem:[%s2 + $0x3c0] sm:$0xff] %v206
  %698 = vst [vmem:[%s2 + $0x3c8] sm:$0xff] %v298
  %699 = vst [vmem:[%s2 + $0x3d0] sm:$0xff] %v390
  %700 = vst [vmem:[%s2 + $0x3d8] sm:$0xff] %v482
  %701 = vst.msk [vmem:[%s2 + $0x3e0] sm:$0xff] %vm580, %v574
  // Predicated region
  $region10: #{decoder_forward.6} parent=0 // pred_check
    _
  $region11: #{decoder_forward.6} parent=0 // pred_check_branch
    %703 = sbr.rel (0) target = $region13
  $region12: #{decoder_forward.6} parent=0 // pred_region
    _
  $region13: #{decoder_forward.6} parent=0 // pred_fallthru
    _
  // Predicated region
  $region14: #{decoder_forward.6} parent=0 // pred_check
    _
  $region15: #{decoder_forward.6} parent=0 // pred_check_branch
    %705 = sbr.rel (0) target = $region17
  $region16: #{decoder_forward.6} parent=0 // pred_region
    _
  $region17: #{decoder_forward.6} parent=0 // pred_fallthru
    _

// kernel: decoder_forward.7
$region0: #{decoder_forward.7}
  #allocation0 [shape = 'u32[]', space=smem, size = 0x4, offset = 0x4, fixed_abs, tag = 'smem constant byte address 0x4 - core index']
  #allocation1 [shape = 'u32[72,128]{1,0:T(1,128)}', space=vmem, size = 0x9000, scoped, tag = 'internal scratch']
  %s0 = inlined_call_operand.vmem [shape: f32[1,64], index: 0, kind: input, shape index: {}]
  %s1 = inlined_call_operand.vmem [shape: f32[1,64], index: 1, kind: input, shape index: {}]
  %s2 = inlined_call_operand.vmem [shape: f32[688,64], index: 2, kind: input, shape index: {}]
  %s3 = inlined_call_operand.vmem [shape: f32[64,288], index: 3, kind: input, shape index: {}]
  %s4 = inlined_call_operand.vmem [shape: f32[688,288], index: 4, kind: output, shape index: {}]
  %s5 = sld [smem:[#allocation0]]
  $region49: #{decoder_forward.7} parent=0
    _
  %s7 = ssub.s32 1, %s5
  %s8 = scalar_select 0, %s7, %s5
  loop: start=0, step=1, limit=4
  $region2: #{decoder_forward.7} parent=0 // loop_pre_header
    _
  $region3: #{decoder_forward.7} parent=0 // loop_header
    %s10 = sphi 0, %s14
    %p11 = scmp.ge.s32.totalorder %s10, 4
    %s18 = sphi 0, %s18
    %s20 = sphi 0, %s18
    %s21 = sphi 0, %s20
    %s35 = sphi 0, %s21
    %s39 = sphi 0, %s39
    %s41 = sphi 0, %s39
    %s42 = sphi 0, %s41
    %s56 = sphi 0, %s42
    %s62 = sphi 0, %s64
    %s65 = sphi 0, %s62
    %s66 = sphi 0, %s65
    %s82 = sphi 0, %s66
    %s86 = sphi 0, %s86
    %s88 = sphi 0, %s86
    %s89 = sphi 0, %s88
    %s103 = sphi 0, %s89
    %s109 = sphi 0, %s111
    %s112 = sphi 0, %s109
    %s113 = sphi 0, %s112
    %s129 = sphi 0, %s113
  $region4: #{decoder_forward.7} parent=0 // loop_header_branch
    %13 = sbr.rel (%p11) target = $region8
  $region5: #{decoder_forward.7} parent=0 // loop_body
    %s15 = ssub.s32 %s10, 1
    %s16 = ssub.s32 %s10, 2
    %s17 = sadd.s32 %s10, 1
    %s19 = sadd.s32 %s18, 1
    %p22 = scmp.eq.s32.totalorder %s10, 1
    %p23 = scmp.ne.s32.totalorder %s18, %s20
    %p24 = scmp.eq.s32.totalorder %s10, 0
    %p25 = por %p23, %p24
    %p26 = scmp.ne.s32.totalorder %s18, %s20
    %p27 = scmp.eq.s32.totalorder %s15, 1
    %p28 = por %p26, %p27
    %p29 = scmp.ne.s32.totalorder %s20, %s21
    %p30 = scmp.eq.s32.totalorder %s15, 0
    %p31 = por %p29, %p30
    %p32 = scmp.ne.s32.totalorder %s20, %s21
    %p33 = scmp.eq.s32.totalorder %s16, 1
    %p34 = por %p32, %p33
    %p36 = scmp.ne.s32.totalorder %s21, %s35
    %p37 = scmp.eq.s32.totalorder %s16, 0
    %p38 = por %p36, %p37
    %s40 = sadd.s32 %s39, 1
    %p43 = scmp.eq.s32.totalorder %s10, 1
    %p44 = scmp.ne.s32.totalorder %s39, %s41
    %p45 = scmp.eq.s32.totalorder %s10, 0
    %p46 = por %p44, %p45
    %p47 = scmp.ne.s32.totalorder %s39, %s41
    %p48 = scmp.eq.s32.totalorder %s15, 1
    %p49 = por %p47, %p48
    %p50 = scmp.ne.s32.totalorder %s41, %s42
    %p51 = scmp.eq.s32.totalorder %s15, 0
    %p52 = por %p50, %p51
    %p53 = scmp.ne.s32.totalorder %s41, %s42
    %p54 = scmp.eq.s32.totalorder %s16, 1
    %p55 = por %p53, %p54
    %p57 = scmp.ne.s32.totalorder %s42, %s56
    %p58 = scmp.eq.s32.totalorder %s16, 0
    %p59 = por %p57, %p58
    %s60 = ssub.s32 %s10, %s17
    %p61 = scmp.eq.s32.totalorder %s60, 0
    %s63 = sadd.s32 %s62, 1
    %s64 = scalar_select %p61, %s62, %s63
    %p67 = pneg %p61
    %p68 = scmp.eq.s32.totalorder %s10, 1
    %p69 = por %p67, %p68
    %p70 = scmp.ne.s32.totalorder %s62, %s65
    %p71 = scmp.eq.s32.totalorder %s10, 0
    %p72 = por %p70, %p71
    %p73 = scmp.ne.s32.totalorder %s62, %s65
    %p74 = scmp.eq.s32.totalorder %s15, 1
    %p75 = por %p73, %p74
    %p76 = scmp.ne.s32.totalorder %s65, %s66
    %p77 = scmp.eq.s32.totalorder %s15, 0
    %p78 = por %p76, %p77
    %p79 = scmp.ne.s32.totalorder %s65, %s66
    %p80 = scmp.eq.s32.totalorder %s16, 1
    %p81 = por %p79, %p80
    %p83 = scmp.ne.s32.totalorder %s66, %s82
    %p84 = scmp.eq.s32.totalorder %s16, 0
    %p85 = por %p83, %p84
    %s87 = sadd.s32 %s86, 1
    %p90 = scmp.eq.s32.totalorder %s10, 1
    %p91 = scmp.ne.s32.totalorder %s86, %s88
    %p92 = scmp.eq.s32.totalorder %s10, 0
    %p93 = por %p91, %p92
    %p94 = scmp.ne.s32.totalorder %s86, %s88
    %p95 = scmp.eq.s32.totalorder %s15, 1
    %p96 = por %p94, %p95
    %p97 = scmp.ne.s32.totalorder %s88, %s89
    %p98 = scmp.eq.s32.totalorder %s15, 0
    %p99 = por %p97, %p98
    %p100 = scmp.ne.s32.totalorder %s88, %s89
    %p101 = scmp.eq.s32.totalorder %s16, 1
    %p102 = por %p100, %p101
    %p104 = scmp.ne.s32.totalorder %s89, %s103
    %p105 = scmp.eq.s32.totalorder %s16, 0
    %p106 = por %p104, %p105
    %s107 = ssub.s32 %s10, %s17
    %p108 = scmp.eq.s32.totalorder %s107, 0
    %s110 = sadd.s32 %s109, 1
    %s111 = scalar_select %p108, %s109, %s110
    %p114 = pneg %p108
    %p115 = scmp.eq.s32.totalorder %s10, 1
    %p116 = por %p114, %p115
    %p117 = scmp.ne.s32.totalorder %s109, %s112
    %p118 = scmp.eq.s32.totalorder %s10, 0
    %p119 = por %p117, %p118
    %p120 = scmp.ne.s32.totalorder %s109, %s112
    %p121 = scmp.eq.s32.totalorder %s15, 1
    %p122 = por %p120, %p121
    %p123 = scmp.ne.s32.totalorder %s112, %s113
    %p124 = scmp.eq.s32.totalorder %s15, 0
    %p125 = por %p123, %p124
    %p126 = scmp.ne.s32.totalorder %s112, %s113
    %p127 = scmp.eq.s32.totalorder %s16, 1
    %p128 = por %p126, %p127
    %p130 = scmp.ne.s32.totalorder %s113, %s129
    %p131 = scmp.eq.s32.totalorder %s16, 0
    %p132 = por %p130, %p131
    %p133 = scmp.le.s32.totalorder 1, %s10
    %p134 = scmp.lt.s32.totalorder %s10, 3
    %p135 = pnand %p133, %p134
    %p136 = pneg %p135
    // Predicated region
    $region9: #{decoder_forward.7} parent=5 // pred_check
      _
    $region10: #{decoder_forward.7} parent=5 // pred_check_branch
      %138 = sbr.rel (%p135) target = $region12
    $region11: #{decoder_forward.7} parent=5 // pred_region
      %s139 = ssub.s32 %s10, 1
      // Predicated region
      $region13: #{decoder_forward.7} parent=11 // pred_check
        %p140 = pneg %p31
      $region14: #{decoder_forward.7} parent=11 // pred_check_branch
        %142 = sbr.rel (%p140) target = $region16
      $region15: #{decoder_forward.7} parent=11 // pred_region
        _
      $region16: #{decoder_forward.7} parent=11 // pred_fallthru
        _
      // Predicated region
      $region17: #{decoder_forward.7} parent=11 // pred_check
        %p143 = pneg %p52
      $region18: #{decoder_forward.7} parent=11 // pred_check_branch
        %145 = sbr.rel (%p143) target = $region20
      $region19: #{decoder_forward.7} parent=11 // pred_region
        _
      $region20: #{decoder_forward.7} parent=11 // pred_fallthru
        _
      // Predicated region
      $region21: #{decoder_forward.7} parent=11 // pred_check
        %p146 = pneg %p99
      $region22: #{decoder_forward.7} parent=11 // pred_check_branch
        %148 = sbr.rel (%p146) target = $region24
      $region23: #{decoder_forward.7} parent=11 // pred_region
        _
      $region24: #{decoder_forward.7} parent=11 // pred_fallthru
        _
    $region12: #{decoder_forward.7} parent=5 // pred_fallthru
      _
    %p149 = scmp.lt.s32.totalorder %s10, 2
    // Predicated region
    $region25: #{decoder_forward.7} parent=5 // pred_check
      %p150 = pneg %p149
    $region26: #{decoder_forward.7} parent=5 // pred_check_branch
      %152 = sbr.rel (%p150) target = $region28
    $region27: #{decoder_forward.7} parent=5 // pred_region
      // Predicated region
      $region29: #{decoder_forward.7} parent=27 // pred_check
        %p153 = pneg %p72
      $region30: #{decoder_forward.7} parent=27 // pred_check_branch
        %155 = sbr.rel (%p153) target = $region32
      $region31: #{decoder_forward.7} parent=27 // pred_region
        %s156 = smul.u32 43, %s10
        %p157 = scmp.lt.s32.totalorder %s156, 85
        %s158 = scalar_select %p157, %s156, 85
        %s159 = smul.addr %s158, 8
        %s160 = scalar_lea.vmem %s2, %s159
        %s161 = smul.u32 43, %s10
      $region32: #{decoder_forward.7} parent=27 // pred_fallthru
        _
    $region28: #{decoder_forward.7} parent=5 // pred_fallthru
      _
    %p162 = scmp.le.s32.totalorder 1, %s10
    %p163 = scmp.lt.s32.totalorder %s10, 3
    %p164 = pnand %p162, %p163
    %p165 = pneg %p164
    // Predicated region
    $region33: #{decoder_forward.7} parent=5 // pred_check
      _
    $region34: #{decoder_forward.7} parent=5 // pred_check_branch
      %167 = sbr.rel (%p164) target = $region36
    $region35: #{decoder_forward.7} parent=5 // pred_region
      %s168 = ssub.s32 %s10, 1
      %p169 = pneg %p31
      %p170 = pneg %p28
      %p171 = pneg %p52
      %p172 = pneg %p49
      %s173 = smul.u32 43, %s15
      %p174 = scmp.lt.s32.totalorder %s173, 85
      %s175 = scalar_select %p174, %s173, 85
      %s176 = smul.addr %s175, 8
      %s177 = scalar_lea.vmem %s2, %s176
      %p178 = pneg %p78
      %p179 = pneg %p75
      %p180 = pneg %p99
      %p181 = pneg %p96
      %p182 = pneg %p125
      %p183 = pneg %p122
      %s184 = smul.u32 43, %s15
      %p185 = scmp.lt.s32.totalorder %s184, 85
      %s186 = scalar_select %p185, %s184, 85
      %s187 = smul.addr %s186, 3
      %s188 = smul.addr %s187, 8
      %s189 = scalar_lea.vmem %s4, %s188
      %s190 = smul.u32 43, %s15
      %p191 = scmp.lt.s32.totalorder %s190, 85
      %s192 = scalar_select %p191, %s190, 85
      %s193 = smul.addr %s192, 8
      %s194 = scalar_lea.vmem %s2, %s193
      %s195 = smul.u32 43, %s15
      %s196 = smul.u32 43, %s15
      %p197 = scmp.lt.s32.totalorder %s196, 85
      %s198 = scalar_select %p197, %s196, 85
      %s199 = smul.addr %s198, 3
      %s200 = smul.addr %s199, 8
      %s201 = scalar_lea.vmem %s4, %s200
      %s202 = smul.u32 43, %s15
      %v203 = vld [vmem:[%s194] sm:$0xff]
      %v204 = vld [vmem:[%s194 + $0x8] sm:$0xff]
      %v205 = vld [vmem:[%s194 + $0x10] sm:$0xff]
      %v206 = vld [vmem:[%s194 + $0x18] sm:$0xff]
      %v207 = vld [vmem:[%s194 + $0x20] sm:$0xff]
      %v208 = vld [vmem:[%s194 + $0x28] sm:$0xff]
      %v209 = vld [vmem:[%s194 + $0x30] sm:$0xff]
      %v210 = vld [vmem:[%s194 + $0x38] sm:$0xff]
      %v211 = vld [vmem:[%s194 + $0x40] sm:$0xff]
      %v212 = vld [vmem:[%s194 + $0x48] sm:$0xff]
      %v213 = vld [vmem:[%s194 + $0x50] sm:$0xff]
      %v214 = vld [vmem:[%s194 + $0x58] sm:$0xff]
      %v215 = vld [vmem:[%s194 + $0x60] sm:$0xff]
      %v216 = vld [vmem:[%s194 + $0x68] sm:$0xff]
      %v217 = vld [vmem:[%s194 + $0x70] sm:$0xff]
      %v218 = vld [vmem:[%s194 + $0x78] sm:$0xff]
      %v219 = vld [vmem:[%s194 + $0x80] sm:$0xff]
      %v220 = vld [vmem:[%s194 + $0x88] sm:$0xff]
      %v221 = vld [vmem:[%s194 + $0x90] sm:$0xff]
      %v222 = vld [vmem:[%s194 + $0x98] sm:$0xff]
      %v223 = vld [vmem:[%s194 + $0xa0] sm:$0xff]
      %v224 = vld [vmem:[%s194 + $0xa8] sm:$0xff]
      %v225 = vld [vmem:[%s194 + $0xb0] sm:$0xff]
      %v226 = vld [vmem:[%s194 + $0xb8] sm:$0xff]
      %v227 = vld [vmem:[%s194 + $0xc0] sm:$0xff]
      %v228 = vld [vmem:[%s194 + $0xc8] sm:$0xff]
      %v229 = vld [vmem:[%s194 + $0xd0] sm:$0xff]
      %v230 = vld [vmem:[%s194 + $0xd8] sm:$0xff]
      %v231 = vld [vmem:[%s194 + $0xe0] sm:$0xff]
      %v232 = vld [vmem:[%s194 + $0xe8] sm:$0xff]
      %v233 = vld [vmem:[%s194 + $0xf0] sm:$0xff]
      %v234 = vld [vmem:[%s194 + $0xf8] sm:$0xff]
      %v235 = vld [vmem:[%s194 + $0x100] sm:$0xff]
      %v236 = vld [vmem:[%s194 + $0x108] sm:$0xff]
      %v237 = vld [vmem:[%s194 + $0x110] sm:$0xff]
      %v238 = vld [vmem:[%s194 + $0x118] sm:$0xff]
      %v239 = vld [vmem:[%s194 + $0x120] sm:$0xff]
      %v240 = vld [vmem:[%s194 + $0x128] sm:$0xff]
      %v241 = vld [vmem:[%s194 + $0x130] sm:$0xff]
      %v242 = vld [vmem:[%s194 + $0x138] sm:$0xff]
      %v243 = vld [vmem:[%s194 + $0x140] sm:$0xff]
      %v244 = vld [vmem:[%s194 + $0x148] sm:$0xff]
      %v245 = vld [vmem:[%s194 + $0x150] sm:$0xff]
      %v246 = vld [vmem:[%s0] sm:$0x1]
      %v248 = vperm.slane %v246, 0
      %v250 = vmul.f32 %v203, %v248
      %v251 = vmul.f32 %v204, %v248
      %v252 = vmul.f32 %v205, %v248
      %v253 = vmul.f32 %v206, %v248
      %v254 = vmul.f32 %v207, %v248
      %v255 = vmul.f32 %v208, %v248
      %v256 = vmul.f32 %v209, %v248
      %v257 = vmul.f32 %v210, %v248
      %v258 = vmul.f32 %v211, %v248
      %v259 = vmul.f32 %v212, %v248
      %v260 = vmul.f32 %v213, %v248
      %v261 = vmul.f32 %v214, %v248
      %v262 = vmul.f32 %v215, %v248
      %v263 = vmul.f32 %v216, %v248
      %v264 = vmul.f32 %v217, %v248
      %v265 = vmul.f32 %v218, %v248
      %v266 = vmul.f32 %v219, %v248
      %v267 = vmul.f32 %v220, %v248
      %v268 = vmul.f32 %v221, %v248
      %v269 = vmul.f32 %v222, %v248
      %v270 = vmul.f32 %v223, %v248
      %v271 = vmul.f32 %v224, %v248
      %v272 = vmul.f32 %v225, %v248
      %v273 = vmul.f32 %v226, %v248
      %v274 = vmul.f32 %v227, %v248
      %v275 = vmul.f32 %v228, %v248
      %v276 = vmul.f32 %v229, %v248
      %v277 = vmul.f32 %v230, %v248
      %v278 = vmul.f32 %v231, %v248
      %v279 = vmul.f32 %v232, %v248
      %v280 = vmul.f32 %v233, %v248
      %v281 = vmul.f32 %v234, %v248
      %v282 = vmul.f32 %v235, %v248
      %v283 = vmul.f32 %v236, %v248
      %v284 = vmul.f32 %v237, %v248
      %v285 = vmul.f32 %v238, %v248
      %v286 = vmul.f32 %v239, %v248
      %v287 = vmul.f32 %v240, %v248
      %v288 = vmul.f32 %v241, %v248
      %v289 = vmul.f32 %v242, %v248
      %v290 = vmul.f32 %v243, %v248
      %v291 = vmul.f32 %v244, %v248
      %v292 = vmul.f32 %v245, %v248
      %v293 = vld [vmem:[%s1] sm:$0x1]
      %v295 = vperm.slane %v293, 0
      %v297 = vadd.f32 %v250, %v295
      %v298 = vadd.f32 %v251, %v295
      %v299 = vadd.f32 %v252, %v295
      %v300 = vadd.f32 %v253, %v295
      %v301 = vadd.f32 %v254, %v295
      %v302 = vadd.f32 %v255, %v295
      %v303 = vadd.f32 %v256, %v295
      %v304 = vadd.f32 %v257, %v295
      %v305 = vadd.f32 %v258, %v295
      %v306 = vadd.f32 %v259, %v295
      %v307 = vadd.f32 %v260, %v295
      %v308 = vadd.f32 %v261, %v295
      %v309 = vadd.f32 %v262, %v295
      %v310 = vadd.f32 %v263, %v295
      %v311 = vadd.f32 %v264, %v295
      %v312 = vadd.f32 %v265, %v295
      %v313 = vadd.f32 %v266, %v295
      %v314 = vadd.f32 %v267, %v295
      %v315 = vadd.f32 %v268, %v295
      %v316 = vadd.f32 %v269, %v295
      %v317 = vadd.f32 %v270, %v295
      %v318 = vadd.f32 %v271, %v295
      %v319 = vadd.f32 %v272, %v295
      %v320 = vadd.f32 %v273, %v295
      %v321 = vadd.f32 %v274, %v295
      %v322 = vadd.f32 %v275, %v295
      %v323 = vadd.f32 %v276, %v295
      %v324 = vadd.f32 %v277, %v295
      %v325 = vadd.f32 %v278, %v295
      %v326 = vadd.f32 %v279, %v295
      %v327 = vadd.f32 %v280, %v295
      %v328 = vadd.f32 %v281, %v295
      %v329 = vadd.f32 %v282, %v295
      %v330 = vadd.f32 %v283, %v295
      %v331 = vadd.f32 %v284, %v295
      %v332 = vadd.f32 %v285, %v295
      %v333 = vadd.f32 %v286, %v295
      %v334 = vadd.f32 %v287, %v295
      %v335 = vadd.f32 %v288, %v295
      %v336 = vadd.f32 %v289, %v295
      %v337 = vadd.f32 %v290, %v295
      %v338 = vadd.f32 %v291, %v295
      %v339 = vadd.f32 %v292, %v295
      %v340 = vmax.f32 %v297, 0.0
      %v341 = vmax.f32 %v298, 0.0
      %v342 = vmax.f32 %v299, 0.0
      %v343 = vmax.f32 %v300, 0.0
      %v344 = vmax.f32 %v301, 0.0
      %v345 = vmax.f32 %v302, 0.0
      %v346 = vmax.f32 %v303, 0.0
      %v347 = vmax.f32 %v304, 0.0
      %v348 = vmax.f32 %v305, 0.0
      %v349 = vmax.f32 %v306, 0.0
      %v350 = vmax.f32 %v307, 0.0
      %v351 = vmax.f32 %v308, 0.0
      %v352 = vmax.f32 %v309, 0.0
      %v353 = vmax.f32 %v310, 0.0
      %v354 = vmax.f32 %v311, 0.0
      %v355 = vmax.f32 %v312, 0.0
      %v356 = vmax.f32 %v313, 0.0
      %v357 = vmax.f32 %v314, 0.0
      %v358 = vmax.f32 %v315, 0.0
      %v359 = vmax.f32 %v316, 0.0
      %v360 = vmax.f32 %v317, 0.0
      %v361 = vmax.f32 %v318, 0.0
      %v362 = vmax.f32 %v319, 0.0
      %v363 = vmax.f32 %v320, 0.0
      %v364 = vmax.f32 %v321, 0.0
      %v365 = vmax.f32 %v322, 0.0
      %v366 = vmax.f32 %v323, 0.0
      %v367 = vmax.f32 %v324, 0.0
      %v368 = vmax.f32 %v325, 0.0
      %v369 = vmax.f32 %v326, 0.0
      %v370 = vmax.f32 %v327, 0.0
      %v371 = vmax.f32 %v328, 0.0
      %v372 = vmax.f32 %v329, 0.0
      %v373 = vmax.f32 %v330, 0.0
      %v374 = vmax.f32 %v331, 0.0
      %v375 = vmax.f32 %v332, 0.0
      %v376 = vmax.f32 %v333, 0.0
      %v377 = vmax.f32 %v334, 0.0
      %v378 = vmax.f32 %v335, 0.0
      %v379 = vmax.f32 %v336, 0.0
      %v380 = vmax.f32 %v337, 0.0
      %v381 = vmax.f32 %v338, 0.0
      %v382 = vmax.f32 %v339, 0.0
      %v383 = vld [vmem:[%s3] sm:$0xff]
      %v384 = vld [vmem:[%s3 + $0x8] sm:$0xff]
      %v385 = vld [vmem:[%s3 + $0x10] sm:$0xff]
      %v386 = vld [vmem:[%s3 + $0x18] sm:$0xff]
      %v387 = vld [vmem:[%s3 + $0x20] sm:$0xff]
      %v388 = vld [vmem:[%s3 + $0x28] sm:$0xff]
      %v389 = vld [vmem:[%s3 + $0x30] sm:$0xff]
      %v390 = vld [vmem:[%s3 + $0x38] sm:$0xff]
      %v391 = vld [vmem:[%s3 + $0x40] sm:$0xff]
      %v392 = vld [vmem:[%s3 + $0x48] sm:$0xff]
      %v393 = vld [vmem:[%s3 + $0x50] sm:$0xff]
      %v394 = vld [vmem:[%s3 + $0x58] sm:$0xff]
      %v395 = vld [vmem:[%s3 + $0x60] sm:$0xff]
      %v396 = vld [vmem:[%s3 + $0x68] sm:$0xff]
      %v397 = vld [vmem:[%s3 + $0x70] sm:$0xff]
      %v398 = vld [vmem:[%s3 + $0x78] sm:$0xff]
      %v399 = vld [vmem:[%s3 + $0x80] sm:$0xff]
      %v400 = vld [vmem:[%s3 + $0x88] sm:$0xff]
      %v401 = vld [vmem:[%s3 + $0x90] sm:$0xff]
      %v402 = vld [vmem:[%s3 + $0x98] sm:$0xff]
      %v403 = vld [vmem:[%s3 + $0xa0] sm:$0xff]
      %v404 = vld [vmem:[%s3 + $0xa8] sm:$0xff]
      %v405 = vld [vmem:[%s3 + $0xb0] sm:$0xff]
      %v406 = vld [vmem:[%s3 + $0xb8] sm:$0xff]
      %vm407 = vcmask 523264
      %v409 = vsel %vm407, %v340, 0
      %v412 = vsel %vm407, %v341, 0
      %v415 = vsel %vm407, %v342, 0
      %v418 = vsel %vm407, %v343, 0
      %v421 = vsel %vm407, %v344, 0
      %v424 = vsel %vm407, %v345, 0
      %v427 = vsel %vm407, %v346, 0
      %v430 = vsel %vm407, %v347, 0
      %v433 = vsel %vm407, %v348, 0
      %v436 = vsel %vm407, %v349, 0
      %v439 = vsel %vm407, %v350, 0
      %v442 = vsel %vm407, %v351, 0
      %v445 = vsel %vm407, %v352, 0
      %v448 = vsel %vm407, %v353, 0
      %v451 = vsel %vm407, %v354, 0
      %v454 = vsel %vm407, %v355, 0
      %v457 = vsel %vm407, %v356, 0
      %v460 = vsel %vm407, %v357, 0
      %v463 = vsel %vm407, %v358, 0
      %v466 = vsel %vm407, %v359, 0
      %v469 = vsel %vm407, %v360, 0
      %v472 = vsel %vm407, %v361, 0
      %v475 = vsel %vm407, %v362, 0
      %v478 = vsel %vm407, %v363, 0
      %v481 = vsel %vm407, %v364, 0
      %v484 = vsel %vm407, %v365, 0
      %v487 = vsel %vm407, %v366, 0
      %v490 = vsel %vm407, %v367, 0
      %v493 = vsel %vm407, %v368, 0
      %v496 = vsel %vm407, %v369, 0
      %v499 = vsel %vm407, %v370, 0
      %v502 = vsel %vm407, %v371, 0
      %v505 = vsel %vm407, %v372, 0
      %v508 = vsel %vm407, %v373, 0
      %v511 = vsel %vm407, %v374, 0
      %v514 = vsel %vm407, %v375, 0
      %v517 = vsel %vm407, %v376, 0
      %v520 = vsel %vm407, %v377, 0
      %v523 = vsel %vm407, %v378, 0
      %v526 = vsel %vm407, %v379, 0
      %v529 = vsel %vm407, %v380, 0
      %v532 = vsel %vm407, %v381, 0
      %v535 = vsel %vm407, %v382, 0
      %537 = vmatpush.msra.mxu0 0.0
      %538 = vmatpush.msra.mxu0 0.0
      %539 = vmatpush.msra.mxu0 0.0
      %540 = vmatpush.msra.mxu0 0.0
      %541 = vmatpush.msra.mxu0 0.0
      %542 = vmatpush.msra.mxu0 0.0
      %543 = vmatpush.msra.mxu0 0.0
      %544 = vmatpush.msra.mxu0 0.0
      %545 = vmatpush.msra.mxu0 %v404
      %546 = vmatpush.msra.mxu0 %v401
      %547 = vmatpush.msra.mxu0 %v398
      %548 = vmatpush.msra.mxu0 %v395
      %549 = vmatpush.msra.mxu0 %v392
      %550 = vmatpush.msra.mxu0 %v389
      %551 = vmatpush.msra.mxu0 %v386
      %552 = vmatpush.msra.mxu0 %v383
      %553 = vmatmul.f32.gmra.mxu0 %v409
      %v554 = vpop.f32.mrf.mxu0
      %v555 = vadd.f32 0.0, %v554
      %556 = vmatmul.f32.gmra.mxu0 %v412
      %v557 = vpop.f32.mrf.mxu0
      %v558 = vadd.f32 0.0, %v557
      %559 = vmatmul.f32.gmra.mxu0 %v415
      %v560 = vpop.f32.mrf.mxu0
      %v561 = vadd.f32 0.0, %v560
      %562 = vmatmul.f32.gmra.mxu0 %v418
      %v563 = vpop.f32.mrf.mxu0
      %v564 = vadd.f32 0.0, %v563
      %565 = vmatmul.f32.gmra.mxu0 %v421
      %v566 = vpop.f32.mrf.mxu0
      %v567 = vadd.f32 0.0, %v566
      %568 = vmatmul.f32.gmra.mxu0 %v424
      %v569 = vpop.f32.mrf.mxu0
      %v570 = vadd.f32 0.0, %v569
      %571 = vmatmul.f32.gmra.mxu0 %v427
      %v572 = vpop.f32.mrf.mxu0
      %v573 = vadd.f32 0.0, %v572
      %574 = vmatmul.f32.gmra.mxu0 %v430
      %v575 = vpop.f32.mrf.mxu0
      %v576 = vadd.f32 0.0, %v575
      %577 = vmatmul.f32.gmra.mxu0 %v433
      %v578 = vpop.f32.mrf.mxu0
      %v579 = vadd.f32 0.0, %v578
      %580 = vmatmul.f32.gmra.mxu0 %v436
      %v581 = vpop.f32.mrf.mxu0
      %v582 = vadd.f32 0.0, %v581
      %583 = vmatmul.f32.gmra.mxu0 %v439
      %v584 = vpop.f32.mrf.mxu0
      %v585 = vadd.f32 0.0, %v584
      %586 = vmatmul.f32.gmra.mxu0 %v442
      %v587 = vpop.f32.mrf.mxu0
      %v588 = vadd.f32 0.0, %v587
      %589 = vmatmul.f32.gmra.mxu0 %v445
      %v590 = vpop.f32.mrf.mxu0
      %v591 = vadd.f32 0.0, %v590
      %592 = vmatmul.f32.gmra.mxu0 %v448
      %v593 = vpop.f32.mrf.mxu0
      %v594 = vadd.f32 0.0, %v593
      %595 = vmatmul.f32.gmra.mxu0 %v451
      %v596 = vpop.f32.mrf.mxu0
      %v597 = vadd.f32 0.0, %v596
      %598 = vmatmul.f32.gmra.mxu0 %v454
      %v599 = vpop.f32.mrf.mxu0
      %v600 = vadd.f32 0.0, %v599
      %601 = vmatmul.f32.gmra.mxu0 %v457
      %v602 = vpop.f32.mrf.mxu0
      %v603 = vadd.f32 0.0, %v602
      %604 = vmatmul.f32.gmra.mxu0 %v460
      %v605 = vpop.f32.mrf.mxu0
      %v606 = vadd.f32 0.0, %v605
      %607 = vmatmul.f32.gmra.mxu0 %v463
      %v608 = vpop.f32.mrf.mxu0
      %v609 = vadd.f32 0.0, %v608
      %610 = vmatmul.f32.gmra.mxu0 %v466
      %v611 = vpop.f32.mrf.mxu0
      %v612 = vadd.f32 0.0, %v611
      %613 = vmatmul.f32.gmra.mxu0 %v469
      %v614 = vpop.f32.mrf.mxu0
      %v615 = vadd.f32 0.0, %v614
      %616 = vmatmul.f32.gmra.mxu0 %v472
      %v617 = vpop.f32.mrf.mxu0
      %v618 = vadd.f32 0.0, %v617
      %619 = vmatmul.f32.gmra.mxu0 %v475
      %v620 = vpop.f32.mrf.mxu0
      %v621 = vadd.f32 0.0, %v620
      %622 = vmatmul.f32.gmra.mxu0 %v478
      %v623 = vpop.f32.mrf.mxu0
      %v624 = vadd.f32 0.0, %v623
      %625 = vmatmul.f32.gmra.mxu0 %v481
      %v626 = vpop.f32.mrf.mxu0
      %v627 = vadd.f32 0.0, %v626
      %628 = vmatmul.f32.gmra.mxu0 %v484
      %v629 = vpop.f32.mrf.mxu0
      %v630 = vadd.f32 0.0, %v629
      %631 = vmatmul.f32.gmra.mxu0 %v487
      %v632 = vpop.f32.mrf.mxu0
      %v633 = vadd.f32 0.0, %v632
      %634 = vmatmul.f32.gmra.mxu0 %v490
      %v635 = vpop.f32.mrf.mxu0
      %v636 = vadd.f32 0.0, %v635
      %637 = vmatmul.f32.gmra.mxu0 %v493
      %v638 = vpop.f32.mrf.mxu0
      %v639 = vadd.f32 0.0, %v638
      %640 = vmatmul.f32.gmra.mxu0 %v496
      %v641 = vpop.f32.mrf.mxu0
      %v642 = vadd.f32 0.0, %v641
      %643 = vmatmul.f32.gmra.mxu0 %v499
      %v644 = vpop.f32.mrf.mxu0
      %v645 = vadd.f32 0.0, %v644
      %646 = vmatmul.f32.gmra.mxu0 %v502
      %v647 = vpop.f32.mrf.mxu0
      %v648 = vadd.f32 0.0, %v647
      %649 = vmatmul.f32.gmra.mxu0 %v505
      %v650 = vpop.f32.mrf.mxu0
      %v651 = vadd.f32 0.0, %v650
      %652 = vmatmul.f32.gmra.mxu0 %v508
      %v653 = vpop.f32.mrf.mxu0
      %v654 = vadd.f32 0.0, %v653
      %655 = vmatmul.f32.gmra.mxu0 %v511
      %v656 = vpop.f32.mrf.mxu0
      %v657 = vadd.f32 0.0, %v656
      %658 = vmatmul.f32.gmra.mxu0 %v514
      %v659 = vpop.f32.mrf.mxu0
      %v660 = vadd.f32 0.0, %v659
      %661 = vmatmul.f32.gmra.mxu0 %v517
      %v662 = vpop.f32.mrf.mxu0
      %v663 = vadd.f32 0.0, %v662
      %664 = vmatmul.f32.gmra.mxu0 %v520
      %v665 = vpop.f32.mrf.mxu0
      %v666 = vadd.f32 0.0, %v665
      %667 = vmatmul.f32.gmra.mxu0 %v523
      %v668 = vpop.f32.mrf.mxu0
      %v669 = vadd.f32 0.0, %v668
      %670 = vmatmul.f32.gmra.mxu0 %v526
      %v671 = vpop.f32.mrf.mxu0
      %v672 = vadd.f32 0.0, %v671
      %673 = vmatmul.f32.gmra.mxu0 %v529
      %v674 = vpop.f32.mrf.mxu0
      %v675 = vadd.f32 0.0, %v674
      %676 = vmatmul.f32.gmra.mxu0 %v532
      %v677 = vpop.f32.mrf.mxu0
      %v678 = vadd.f32 0.0, %v677
      %679 = vmatmul.f32.gmra.mxu0 %v535
      %v680 = vpop.f32.mrf.mxu0
      %v681 = vadd.f32 0.0, %v680
      %682 = vdwg.mxu0
      %683 = vmatpush.msra.mxu0 0.0
      %684 = vmatpush.msra.mxu0 0.0
      %685 = vmatpush.msra.mxu0 0.0
      %686 = vmatpush.msra.mxu0 0.0
      %687 = vmatpush.msra.mxu0 0.0
      %688 = vmatpush.msra.mxu0 0.0
      %689 = vmatpush.msra.mxu0 0.0
      %690 = vmatpush.msra.mxu0 0.0
      %691 = vmatpush.msra.mxu0 %v405
      %692 = vmatpush.msra.mxu0 %v402
      %693 = vmatpush.msra.mxu0 %v399
      %694 = vmatpush.msra.mxu0 %v396
      %695 = vmatpush.msra.mxu0 %v393
      %696 = vmatpush.msra.mxu0 %v390
      %697 = vmatpush.msra.mxu0 %v387
      %698 = vmatpush.msra.mxu0 %v384
      %699 = vmatmul.f32.gmra.mxu0 %v409
      %v700 = vpop.f32.mrf.mxu0
      %v701 = vadd.f32 0.0, %v700
      %702 = vmatmul.f32.gmra.mxu0 %v412
      %v703 = vpop.f32.mrf.mxu0
      %v704 = vadd.f32 0.0, %v703
      %705 = vmatmul.f32.gmra.mxu0 %v415
      %v706 = vpop.f32.mrf.mxu0
      %v707 = vadd.f32 0.0, %v706
      %708 = vmatmul.f32.gmra.mxu0 %v418
      %v709 = vpop.f32.mrf.mxu0
      %v710 = vadd.f32 0.0, %v709
      %711 = vmatmul.f32.gmra.mxu0 %v421
      %v712 = vpop.f32.mrf.mxu0
      %v713 = vadd.f32 0.0, %v712
      %714 = vmatmul.f32.gmra.mxu0 %v424
      %v715 = vpop.f32.mrf.mxu0
      %v716 = vadd.f32 0.0, %v715
      %717 = vmatmul.f32.gmra.mxu0 %v427
      %v718 = vpop.f32.mrf.mxu0
      %v719 = vadd.f32 0.0, %v718
      %720 = vmatmul.f32.gmra.mxu0 %v430
      %v721 = vpop.f32.mrf.mxu0
      %v722 = vadd.f32 0.0, %v721
      %723 = vmatmul.f32.gmra.mxu0 %v433
      %v724 = vpop.f32.mrf.mxu0
      %v725 = vadd.f32 0.0, %v724
      %726 = vmatmul.f32.gmra.mxu0 %v436
      %v727 = vpop.f32.mrf.mxu0
      %v728 = vadd.f32 0.0, %v727
      %729 = vmatmul.f32.gmra.mxu0 %v439
      %v730 = vpop.f32.mrf.mxu0
      %v731 = vadd.f32 0.0, %v730
      %732 = vmatmul.f32.gmra.mxu0 %v442
      %v733 = vpop.f32.mrf.mxu0
      %v734 = vadd.f32 0.0, %v733
      %735 = vmatmul.f32.gmra.mxu0 %v445
      %v736 = vpop.f32.mrf.mxu0
      %v737 = vadd.f32 0.0, %v736
      %738 = vmatmul.f32.gmra.mxu0 %v448
      %v739 = vpop.f32.mrf.mxu0
      %v740 = vadd.f32 0.0, %v739
      %741 = vmatmul.f32.gmra.mxu0 %v451
      %v742 = vpop.f32.mrf.mxu0
      %v743 = vadd.f32 0.0, %v742
      %744 = vmatmul.f32.gmra.mxu0 %v454
      %v745 = vpop.f32.mrf.mxu0
      %v746 = vadd.f32 0.0, %v745
      %747 = vmatmul.f32.gmra.mxu0 %v457
      %v748 = vpop.f32.mrf.mxu0
      %v749 = vadd.f32 0.0, %v748
      %750 = vmatmul.f32.gmra.mxu0 %v460
      %v751 = vpop.f32.mrf.mxu0
      %v752 = vadd.f32 0.0, %v751
      %753 = vmatmul.f32.gmra.mxu0 %v463
      %v754 = vpop.f32.mrf.mxu0
      %v755 = vadd.f32 0.0, %v754
      %756 = vmatmul.f32.gmra.mxu0 %v466
      %v757 = vpop.f32.mrf.mxu0
      %v758 = vadd.f32 0.0, %v757
      %759 = vmatmul.f32.gmra.mxu0 %v469
      %v760 = vpop.f32.mrf.mxu0
      %v761 = vadd.f32 0.0, %v760
      %762 = vmatmul.f32.gmra.mxu0 %v472
      %v763 = vpop.f32.mrf.mxu0
      %v764 = vadd.f32 0.0, %v763
      %765 = vmatmul.f32.gmra.mxu0 %v475
      %v766 = vpop.f32.mrf.mxu0
      %v767 = vadd.f32 0.0, %v766
      %768 = vmatmul.f32.gmra.mxu0 %v478
      %v769 = vpop.f32.mrf.mxu0
      %v770 = vadd.f32 0.0, %v769
      %771 = vmatmul.f32.gmra.mxu0 %v481
      %v772 = vpop.f32.mrf.mxu0
      %v773 = vadd.f32 0.0, %v772
      %774 = vmatmul.f32.gmra.mxu0 %v484
      %v775 = vpop.f32.mrf.mxu0
      %v776 = vadd.f32 0.0, %v775
      %777 = vmatmul.f32.gmra.mxu0 %v487
      %v778 = vpop.f32.mrf.mxu0
      %v779 = vadd.f32 0.0, %v778
      %780 = vmatmul.f32.gmra.mxu0 %v490
      %v781 = vpop.f32.mrf.mxu0
      %v782 = vadd.f32 0.0, %v781
      %783 = vmatmul.f32.gmra.mxu0 %v493
      %v784 = vpop.f32.mrf.mxu0
      %v785 = vadd.f32 0.0, %v784
      %786 = vmatmul.f32.gmra.mxu0 %v496
      %v787 = vpop.f32.mrf.mxu0
      %v788 = vadd.f32 0.0, %v787
      %789 = vmatmul.f32.gmra.mxu0 %v499
      %v790 = vpop.f32.mrf.mxu0
      %v791 = vadd.f32 0.0, %v790
      %792 = vmatmul.f32.gmra.mxu0 %v502
      %v793 = vpop.f32.mrf.mxu0
      %v794 = vadd.f32 0.0, %v793
      %795 = vmatmul.f32.gmra.mxu0 %v505
      %v796 = vpop.f32.mrf.mxu0
      %v797 = vadd.f32 0.0, %v796
      %798 = vmatmul.f32.gmra.mxu0 %v508
      %v799 = vpop.f32.mrf.mxu0
      %v800 = vadd.f32 0.0, %v799
      %801 = vmatmul.f32.gmra.mxu0 %v511
      %v802 = vpop.f32.mrf.mxu0
      %v803 = vadd.f32 0.0, %v802
      %804 = vmatmul.f32.gmra.mxu0 %v514
      %v805 = vpop.f32.mrf.mxu0
      %v806 = vadd.f32 0.0, %v805
      %807 = vmatmul.f32.gmra.mxu0 %v517
      %v808 = vpop.f32.mrf.mxu0
      %v809 = vadd.f32 0.0, %v808
      %810 = vmatmul.f32.gmra.mxu0 %v520
      %v811 = vpop.f32.mrf.mxu0
      %v812 = vadd.f32 0.0, %v811
      %813 = vmatmul.f32.gmra.mxu0 %v523
      %v814 = vpop.f32.mrf.mxu0
      %v815 = vadd.f32 0.0, %v814
      %816 = vmatmul.f32.gmra.mxu0 %v526
      %v817 = vpop.f32.mrf.mxu0
      %v818 = vadd.f32 0.0, %v817
      %819 = vmatmul.f32.gmra.mxu0 %v529
      %v820 = vpop.f32.mrf.mxu0
      %v821 = vadd.f32 0.0, %v820
      %822 = vmatmul.f32.gmra.mxu0 %v532
      %v823 = vpop.f32.mrf.mxu0
      %v824 = vadd.f32 0.0, %v823
      %825 = vmatmul.f32.gmra.mxu0 %v535
      %v826 = vpop.f32.mrf.mxu0
      %v827 = vadd.f32 0.0, %v826
      %828 = vdwg.mxu0
      %829 = vmatpush.msra.mxu0 0.0
      %830 = vmatpush.msra.mxu0 0.0
      %831 = vmatpush.msra.mxu0 0.0
      %832 = vmatpush.msra.mxu0 0.0
      %833 = vmatpush.msra.mxu0 0.0
      %834 = vmatpush.msra.mxu0 0.0
      %835 = vmatpush.msra.mxu0 0.0
      %836 = vmatpush.msra.mxu0 0.0
      %837 = vmatpush.msra.mxu0 %v406
      %838 = vmatpush.msra.mxu0 %v403
      %839 = vmatpush.msra.mxu0 %v400
      %840 = vmatpush.msra.mxu0 %v397
      %841 = vmatpush.msra.mxu0 %v394
      %842 = vmatpush.msra.mxu0 %v391
      %843 = vmatpush.msra.mxu0 %v388
      %844 = vmatpush.msra.mxu0 %v385
      %845 = vmatmul.f32.gmra.mxu0 %v409
      %v846 = vpop.f32.mrf.mxu0
      %v847 = vadd.f32 0.0, %v846
      %848 = vmatmul.f32.gmra.mxu0 %v412
      %v849 = vpop.f32.mrf.mxu0
      %v850 = vadd.f32 0.0, %v849
      %851 = vmatmul.f32.gmra.mxu0 %v415
      %v852 = vpop.f32.mrf.mxu0
      %v853 = vadd.f32 0.0, %v852
      %854 = vmatmul.f32.gmra.mxu0 %v418
      %v855 = vpop.f32.mrf.mxu0
      %v856 = vadd.f32 0.0, %v855
      %857 = vmatmul.f32.gmra.mxu0 %v421
      %v858 = vpop.f32.mrf.mxu0
      %v859 = vadd.f32 0.0, %v858
      %860 = vmatmul.f32.gmra.mxu0 %v424
      %v861 = vpop.f32.mrf.mxu0
      %v862 = vadd.f32 0.0, %v861
      %863 = vmatmul.f32.gmra.mxu0 %v427
      %v864 = vpop.f32.mrf.mxu0
      %v865 = vadd.f32 0.0, %v864
      %866 = vmatmul.f32.gmra.mxu0 %v430
      %v867 = vpop.f32.mrf.mxu0
      %v868 = vadd.f32 0.0, %v867
      %869 = vmatmul.f32.gmra.mxu0 %v433
      %v870 = vpop.f32.mrf.mxu0
      %v871 = vadd.f32 0.0, %v870
      %872 = vmatmul.f32.gmra.mxu0 %v436
      %v873 = vpop.f32.mrf.mxu0
      %v874 = vadd.f32 0.0, %v873
      %875 = vmatmul.f32.gmra.mxu0 %v439
      %v876 = vpop.f32.mrf.mxu0
      %v877 = vadd.f32 0.0, %v876
      %878 = vmatmul.f32.gmra.mxu0 %v442
      %v879 = vpop.f32.mrf.mxu0
      %v880 = vadd.f32 0.0, %v879
      %881 = vmatmul.f32.gmra.mxu0 %v445
      %v882 = vpop.f32.mrf.mxu0
      %v883 = vadd.f32 0.0, %v882
      %884 = vmatmul.f32.gmra.mxu0 %v448
      %v885 = vpop.f32.mrf.mxu0
      %v886 = vadd.f32 0.0, %v885
      %887 = vmatmul.f32.gmra.mxu0 %v451
      %v888 = vpop.f32.mrf.mxu0
      %v889 = vadd.f32 0.0, %v888
      %890 = vmatmul.f32.gmra.mxu0 %v454
      %v891 = vpop.f32.mrf.mxu0
      %v892 = vadd.f32 0.0, %v891
      %893 = vmatmul.f32.gmra.mxu0 %v457
      %v894 = vpop.f32.mrf.mxu0
      %v895 = vadd.f32 0.0, %v894
      %896 = vmatmul.f32.gmra.mxu0 %v460
      %v897 = vpop.f32.mrf.mxu0
      %v898 = vadd.f32 0.0, %v897
      %899 = vmatmul.f32.gmra.mxu0 %v463
      %v900 = vpop.f32.mrf.mxu0
      %v901 = vadd.f32 0.0, %v900
      %902 = vmatmul.f32.gmra.mxu0 %v466
      %v903 = vpop.f32.mrf.mxu0
      %v904 = vadd.f32 0.0, %v903
      %905 = vmatmul.f32.gmra.mxu0 %v469
      %v906 = vpop.f32.mrf.mxu0
      %v907 = vadd.f32 0.0, %v906
      %908 = vmatmul.f32.gmra.mxu0 %v472
      %v909 = vpop.f32.mrf.mxu0
      %v910 = vadd.f32 0.0, %v909
      %911 = vmatmul.f32.gmra.mxu0 %v475
      %v912 = vpop.f32.mrf.mxu0
      %v913 = vadd.f32 0.0, %v912
      %914 = vmatmul.f32.gmra.mxu0 %v478
      %v915 = vpop.f32.mrf.mxu0
      %v916 = vadd.f32 0.0, %v915
      %917 = vmatmul.f32.gmra.mxu0 %v481
      %v918 = vpop.f32.mrf.mxu0
      %v919 = vadd.f32 0.0, %v918
      %920 = vmatmul.f32.gmra.mxu0 %v484
      %v921 = vpop.f32.mrf.mxu0
      %v922 = vadd.f32 0.0, %v921
      %923 = vmatmul.f32.gmra.mxu0 %v487
      %v924 = vpop.f32.mrf.mxu0
      %v925 = vadd.f32 0.0, %v924
      %926 = vmatmul.f32.gmra.mxu0 %v490
      %v927 = vpop.f32.mrf.mxu0
      %v928 = vadd.f32 0.0, %v927
      %929 = vmatmul.f32.gmra.mxu0 %v493
      %v930 = vpop.f32.mrf.mxu0
      %v931 = vadd.f32 0.0, %v930
      %932 = vmatmul.f32.gmra.mxu0 %v496
      %v933 = vpop.f32.mrf.mxu0
      %v934 = vadd.f32 0.0, %v933
      %935 = vmatmul.f32.gmra.mxu0 %v499
      %v936 = vpop.f32.mrf.mxu0
      %v937 = vadd.f32 0.0, %v936
      %938 = vmatmul.f32.gmra.mxu0 %v502
      %v939 = vpop.f32.mrf.mxu0
      %v940 = vadd.f32 0.0, %v939
      %941 = vmatmul.f32.gmra.mxu0 %v505
      %v942 = vpop.f32.mrf.mxu0
      %v943 = vadd.f32 0.0, %v942
      %944 = vmatmul.f32.gmra.mxu0 %v508
      %v945 = vpop.f32.mrf.mxu0
      %v946 = vadd.f32 0.0, %v945
      %947 = vmatmul.f32.gmra.mxu0 %v511
      %v948 = vpop.f32.mrf.mxu0
      %v949 = vadd.f32 0.0, %v948
      %950 = vmatmul.f32.gmra.mxu0 %v514
      %v951 = vpop.f32.mrf.mxu0
      %v952 = vadd.f32 0.0, %v951
      %953 = vmatmul.f32.gmra.mxu0 %v517
      %v954 = vpop.f32.mrf.mxu0
      %v955 = vadd.f32 0.0, %v954
      %956 = vmatmul.f32.gmra.mxu0 %v520
      %v957 = vpop.f32.mrf.mxu0
      %v958 = vadd.f32 0.0, %v957
      %959 = vmatmul.f32.gmra.mxu0 %v523
      %v960 = vpop.f32.mrf.mxu0
      %v961 = vadd.f32 0.0, %v960
      %962 = vmatmul.f32.gmra.mxu0 %v526
      %v963 = vpop.f32.mrf.mxu0
      %v964 = vadd.f32 0.0, %v963
      %965 = vmatmul.f32.gmra.mxu0 %v529
      %v966 = vpop.f32.mrf.mxu0
      %v967 = vadd.f32 0.0, %v966
      %968 = vmatmul.f32.gmra.mxu0 %v532
      %v969 = vpop.f32.mrf.mxu0
      %v970 = vadd.f32 0.0, %v969
      %971 = vmatmul.f32.gmra.mxu0 %v535
      %v972 = vpop.f32.mrf.mxu0
      %v973 = vadd.f32 0.0, %v972
      %974 = vdwg.mxu0
      %975 = vst [vmem:[%s201] sm:$0xff] %v555
      %976 = vst [vmem:[%s201 + $0x8] sm:$0xff] %v701
      %vm977 = vcmask 261120
      %978 = vst.msk [vmem:[%s201 + $0x10] sm:$0xff] %vm977, %v847
      %979 = vst [vmem:[%s201 + $0x18] sm:$0xff] %v558
      %980 = vst [vmem:[%s201 + $0x20] sm:$0xff] %v704
      %981 = vst.msk [vmem:[%s201 + $0x28] sm:$0xff] %vm977, %v850
      %982 = vst [vmem:[%s201 + $0x30] sm:$0xff] %v561
      %983 = vst [vmem:[%s201 + $0x38] sm:$0xff] %v707
      %984 = vst.msk [vmem:[%s201 + $0x40] sm:$0xff] %vm977, %v853
      %985 = vst [vmem:[%s201 + $0x48] sm:$0xff] %v564
      %986 = vst [vmem:[%s201 + $0x50] sm:$0xff] %v710
      %987 = vst.msk [vmem:[%s201 + $0x58] sm:$0xff] %vm977, %v856
      %988 = vst [vmem:[%s201 + $0x60] sm:$0xff] %v567
      %989 = vst [vmem:[%s201 + $0x68] sm:$0xff] %v713
      %990 = vst.msk [vmem:[%s201 + $0x70] sm:$0xff] %vm977, %v859
      %991 = vst [vmem:[%s201 + $0x78] sm:$0xff] %v570
      %992 = vst [vmem:[%s201 + $0x80] sm:$0xff] %v716
      %993 = vst.msk [vmem:[%s201 + $0x88] sm:$0xff] %vm977, %v862
      %994 = vst [vmem:[%s201 + $0x90] sm:$0xff] %v573
      %995 = vst [vmem:[%s201 + $0x98] sm:$0xff] %v719
      %996 = vst.msk [vmem:[%s201 + $0xa0] sm:$0xff] %vm977, %v865
      %997 = vst [vmem:[%s201 + $0xa8] sm:$0xff] %v576
      %998 = vst [vmem:[%s201 + $0xb0] sm:$0xff] %v722
      %999 = vst.msk [vmem:[%s201 + $0xb8] sm:$0xff] %vm977, %v868
      %1000 = vst [vmem:[%s201 + $0xc0] sm:$0xff] %v579
      %1001 = vst [vmem:[%s201 + $0xc8] sm:$0xff] %v725
      %1002 = vst.msk [vmem:[%s201 + $0xd0] sm:$0xff] %vm977, %v871
      %1003 = vst [vmem:[%s201 + $0xd8] sm:$0xff] %v582
      %1004 = vst [vmem:[%s201 + $0xe0] sm:$0xff] %v728
      %1005 = vst.msk [vmem:[%s201 + $0xe8] sm:$0xff] %vm977, %v874
      %1006 = vst [vmem:[%s201 + $0xf0] sm:$0xff] %v585
      %1007 = vst [vmem:[%s201 + $0xf8] sm:$0xff] %v731
      %1008 = vst.msk [vmem:[%s201 + $0x100] sm:$0xff] %vm977, %v877
      %1009 = vst [vmem:[%s201 + $0x108] sm:$0xff] %v588
      %1010 = vst [vmem:[%s201 + $0x110] sm:$0xff] %v734
      %1011 = vst.msk [vmem:[%s201 + $0x118] sm:$0xff] %vm977, %v880
      %1012 = vst [vmem:[%s201 + $0x120] sm:$0xff] %v591
      %1013 = vst [vmem:[%s201 + $0x128] sm:$0xff] %v737
      %1014 = vst.msk [vmem:[%s201 + $0x130] sm:$0xff] %vm977, %v883
      %1015 = vst [vmem:[%s201 + $0x138] sm:$0xff] %v594
      %1016 = vst [vmem:[%s201 + $0x140] sm:$0xff] %v740
      %1017 = vst.msk [vmem:[%s201 + $0x148] sm:$0xff] %vm977, %v886
      %1018 = vst [vmem:[%s201 + $0x150] sm:$0xff] %v597
      %1019 = vst [vmem:[%s201 + $0x158] sm:$0xff] %v743
      %1020 = vst.msk [vmem:[%s201 + $0x160] sm:$0xff] %vm977, %v889
      %1021 = vst [vmem:[%s201 + $0x168] sm:$0xff] %v600
      %1022 = vst [vmem:[%s201 + $0x170] sm:$0xff] %v746
      %1023 = vst.msk [vmem:[%s201 + $0x178] sm:$0xff] %vm977, %v892
      %1024 = vst [vmem:[%s201 + $0x180] sm:$0xff] %v603
      %1025 = vst [vmem:[%s201 + $0x188] sm:$0xff] %v749
      %1026 = vst.msk [vmem:[%s201 + $0x190] sm:$0xff] %vm977, %v895
      %1027 = vst [vmem:[%s201 + $0x198] sm:$0xff] %v606
      %1028 = vst [vmem:[%s201 + $0x1a0] sm:$0xff] %v752
      %1029 = vst.msk [vmem:[%s201 + $0x1a8] sm:$0xff] %vm977, %v898
      %1030 = vst [vmem:[%s201 + $0x1b0] sm:$0xff] %v609
      %1031 = vst [vmem:[%s201 + $0x1b8] sm:$0xff] %v755
      %1032 = vst.msk [vmem:[%s201 + $0x1c0] sm:$0xff] %vm977, %v901
      %1033 = vst [vmem:[%s201 + $0x1c8] sm:$0xff] %v612
      %1034 = vst [vmem:[%s201 + $0x1d0] sm:$0xff] %v758
      %1035 = vst.msk [vmem:[%s201 + $0x1d8] sm:$0xff] %vm977, %v904
      %1036 = vst [vmem:[%s201 + $0x1e0] sm:$0xff] %v615
      %1037 = vst [vmem:[%s201 + $0x1e8] sm:$0xff] %v761
      %1038 = vst.msk [vmem:[%s201 + $0x1f0] sm:$0xff] %vm977, %v907
      %1039 = vst [vmem:[%s201 + $0x1f8] sm:$0xff] %v618
      %1040 = vst [vmem:[%s201 + $0x200] sm:$0xff] %v764
      %1041 = vst.msk [vmem:[%s201 + $0x208] sm:$0xff] %vm977, %v910
      %1042 = vst [vmem:[%s201 + $0x210] sm:$0xff] %v621
      %1043 = vst [vmem:[%s201 + $0x218] sm:$0xff] %v767
      %1044 = vst.msk [vmem:[%s201 + $0x220] sm:$0xff] %vm977, %v913
      %1045 = vst [vmem:[%s201 + $0x228] sm:$0xff] %v624
      %1046 = vst [vmem:[%s201 + $0x230] sm:$0xff] %v770
      %1047 = vst.msk [vmem:[%s201 + $0x238] sm:$0xff] %vm977, %v916
      %1048 = vst [vmem:[%s201 + $0x240] sm:$0xff] %v627
      %1049 = vst [vmem:[%s201 + $0x248] sm:$0xff] %v773
      %1050 = vst.msk [vmem:[%s201 + $0x250] sm:$0xff] %vm977, %v919
      %1051 = vst [vmem:[%s201 + $0x258] sm:$0xff] %v630
      %1052 = vst [vmem:[%s201 + $0x260] sm:$0xff] %v776
      %1053 = vst.msk [vmem:[%s201 + $0x268] sm:$0xff] %vm977, %v922
      %1054 = vst [vmem:[%s201 + $0x270] sm:$0xff] %v633
      %1055 = vst [vmem:[%s201 + $0x278] sm:$0xff] %v779
      %1056 = vst.msk [vmem:[%s201 + $0x280] sm:$0xff] %vm977, %v925
      %1057 = vst [vmem:[%s201 + $0x288] sm:$0xff] %v636
      %1058 = vst [vmem:[%s201 + $0x290] sm:$0xff] %v782
      %1059 = vst.msk [vmem:[%s201 + $0x298] sm:$0xff] %vm977, %v928
      %1060 = vst [vmem:[%s201 + $0x2a0] sm:$0xff] %v639
      %1061 = vst [vmem:[%s201 + $0x2a8] sm:$0xff] %v785
      %1062 = vst.msk [vmem:[%s201 + $0x2b0] sm:$0xff] %vm977, %v931
      %1063 = vst [vmem:[%s201 + $0x2b8] sm:$0xff] %v642
      %1064 = vst [vmem:[%s201 + $0x2c0] sm:$0xff] %v788
      %1065 = vst.msk [vmem:[%s201 + $0x2c8] sm:$0xff] %vm977, %v934
      %1066 = vst [vmem:[%s201 + $0x2d0] sm:$0xff] %v645
      %1067 = vst [vmem:[%s201 + $0x2d8] sm:$0xff] %v791
      %1068 = vst.msk [vmem:[%s201 + $0x2e0] sm:$0xff] %vm977, %v937
      %1069 = vst [vmem:[%s201 + $0x2e8] sm:$0xff] %v648
      %1070 = vst [vmem:[%s201 + $0x2f0] sm:$0xff] %v794
      %1071 = vst.msk [vmem:[%s201 + $0x2f8] sm:$0xff] %vm977, %v940
      %1072 = vst [vmem:[%s201 + $0x300] sm:$0xff] %v651
      %1073 = vst [vmem:[%s201 + $0x308] sm:$0xff] %v797
      %1074 = vst.msk [vmem:[%s201 + $0x310] sm:$0xff] %vm977, %v943
      %1075 = vst [vmem:[%s201 + $0x318] sm:$0xff] %v654
      %1076 = vst [vmem:[%s201 + $0x320] sm:$0xff] %v800
      %1077 = vst.msk [vmem:[%s201 + $0x328] sm:$0xff] %vm977, %v946
      %1078 = vst [vmem:[%s201 + $0x330] sm:$0xff] %v657
      %1079 = vst [vmem:[%s201 + $0x338] sm:$0xff] %v803
      %1080 = vst.msk [vmem:[%s201 + $0x340] sm:$0xff] %vm977, %v949
      %1081 = vst [vmem:[%s201 + $0x348] sm:$0xff] %v660
      %1082 = vst [vmem:[%s201 + $0x350] sm:$0xff] %v806
      %1083 = vst.msk [vmem:[%s201 + $0x358] sm:$0xff] %vm977, %v952
      %1084 = vst [vmem:[%s201 + $0x360] sm:$0xff] %v663
      %1085 = vst [vmem:[%s201 + $0x368] sm:$0xff] %v809
      %1086 = vst.msk [vmem:[%s201 + $0x370] sm:$0xff] %vm977, %v955
      %1087 = vst [vmem:[%s201 + $0x378] sm:$0xff] %v666
      %1088 = vst [vmem:[%s201 + $0x380] sm:$0xff] %v812
      %1089 = vst.msk [vmem:[%s201 + $0x388] sm:$0xff] %vm977, %v958
      %1090 = vst [vmem:[%s201 + $0x390] sm:$0xff] %v669
      %1091 = vst [vmem:[%s201 + $0x398] sm:$0xff] %v815
      %1092 = vst.msk [vmem:[%s201 + $0x3a0] sm:$0xff] %vm977, %v961
      %1093 = vst [vmem:[%s201 + $0x3a8] sm:$0xff] %v672
      %1094 = vst [vmem:[%s201 + $0x3b0] sm:$0xff] %v818
      %1095 = vst.msk [vmem:[%s201 + $0x3b8] sm:$0xff] %vm977, %v964
      %1096 = vst [vmem:[%s201 + $0x3c0] sm:$0xff] %v675
      %1097 = vst [vmem:[%s201 + $0x3c8] sm:$0xff] %v821
      %1098 = vst.msk [vmem:[%s201 + $0x3d0] sm:$0xff] %vm977, %v967
      %1099 = vst [vmem:[%s201 + $0x3d8] sm:$0xff] %v678
      %1100 = vst [vmem:[%s201 + $0x3e0] sm:$0xff] %v824
      %1101 = vst.msk [vmem:[%s201 + $0x3e8] sm:$0xff] %vm977, %v970
      %1102 = vst [vmem:[%s201 + $0x3f0] sm:$0xff] %v681
      %1103 = vst [vmem:[%s201 + $0x3f8] sm:$0xff] %v827
      %1104 = vst.msk [vmem:[%s201 + $0x400] sm:$0xff] %vm977, %v973
      %s1105 = smul.u32 43, %s15
      %p1106 = scmp.lt.s32.totalorder %s1105, 85
      %s1107 = scalar_select %p1106, %s1105, 85
      %s1108 = smul.addr %s1107, 3
      %s1109 = smul.addr %s1108, 8
      %s1110 = scalar_lea.vmem %s4, %s1109
      // Predicated region
      $region37: #{decoder_forward.7} parent=35 // pred_check
        %p1111 = pneg %p122
      $region38: #{decoder_forward.7} parent=35 // pred_check_branch
        %1113 = sbr.rel (%p1111) target = $region40
      $region39: #{decoder_forward.7} parent=35 // pred_region
        %s1114 = smul.u32 43, %s15
      $region40: #{decoder_forward.7} parent=35 // pred_fallthru
        _
    $region36: #{decoder_forward.7} parent=5 // pred_fallthru
      _
    %p1115 = scmp.le.s32.totalorder 2, %s10
    // Predicated region
    $region41: #{decoder_forward.7} parent=5 // pred_check
      %p1116 = pneg %p1115
    $region42: #{decoder_forward.7} parent=5 // pred_check_branch
      %1118 = sbr.rel (%p1116) target = $region44
    $region43: #{decoder_forward.7} parent=5 // pred_region
      %s1119 = ssub.s32 %s10, 2
      // Predicated region
      $region45: #{decoder_forward.7} parent=43 // pred_check
        %p1120 = pneg %p128
      $region46: #{decoder_forward.7} parent=43 // pred_check_branch
        %1122 = sbr.rel (%p1120) target = $region48
      $region47: #{decoder_forward.7} parent=43 // pred_region
        %s1123 = smul.u32 43, %s16
        %p1124 = scmp.lt.s32.totalorder %s1123, 85
        %s1125 = scalar_select %p1124, %s1123, 85
        %s1126 = smul.addr %s1125, 3
        %s1127 = smul.addr %s1126, 8
        %s1128 = scalar_lea.vmem %s4, %s1127
      $region48: #{decoder_forward.7} parent=43 // pred_fallthru
        _
    $region44: #{decoder_forward.7} parent=5 // pred_fallthru
      _
  $region6: #{decoder_forward.7} parent=0 // loop_footer
    %s14 = sadd.s32 1, %s10
  $region7: #{decoder_forward.7} parent=0 // loop_footer_branch
    %9 = sbr.rel target = $region3
  $region8: #{decoder_forward.7} parent=0 // loop_exit
    _

// kernel: decoder_forward.8
$region0: #{decoder_forward.8}
  #allocation0 [shape = 'u32[]', space=smem, size = 0x4, offset = 0x4, fixed_abs, tag = 'smem constant byte address 0x4 - core index']
  #allocation1 [shape = 'u32[72,128]{1,0:T(1,128)}', space=vmem, size = 0x9000, scoped, tag = 'internal scratch']
  %s0 = inlined_call_operand.vmem [shape: f32[1,32], index: 0, kind: input, shape index: {}]
  %s1 = inlined_call_operand.vmem [shape: f32[1,32], index: 1, kind: input, shape index: {}]
  %s2 = inlined_call_operand.vmem [shape: f32[3072,32], index: 2, kind: input, shape index: {}]
  %s3 = inlined_call_operand.vmem [shape: f32[4,32], index: 3, kind: input, shape index: {}]
  %s4 = inlined_call_operand.vmem [shape: f32[4,3072], index: 4, kind: output, shape index: {}]
  %s5 = sld [smem:[#allocation0]]
  $region49: #{decoder_forward.8} parent=0
    _
  %s7 = ssub.s32 1, %s5
  %s8 = scalar_select 0, %s7, %s5
  loop: start=0, step=1, limit=8
  $region2: #{decoder_forward.8} parent=0 // loop_pre_header
    _
  $region3: #{decoder_forward.8} parent=0 // loop_header
    %s10 = sphi 0, %s14
    %p11 = scmp.ge.s32.totalorder %s10, 8
    %s18 = sphi 0, %s18
    %s20 = sphi 0, %s18
    %s21 = sphi 0, %s20
    %s35 = sphi 0, %s21
    %s39 = sphi 0, %s39
    %s41 = sphi 0, %s39
    %s42 = sphi 0, %s41
    %s56 = sphi 0, %s42
    %s62 = sphi 0, %s64
    %s65 = sphi 0, %s62
    %s66 = sphi 0, %s65
    %s82 = sphi 0, %s66
    %s86 = sphi 0, %s86
    %s88 = sphi 0, %s86
    %s89 = sphi 0, %s88
    %s103 = sphi 0, %s89
    %s109 = sphi 0, %s111
    %s112 = sphi 0, %s109
    %s113 = sphi 0, %s112
    %s129 = sphi 0, %s113
  $region4: #{decoder_forward.8} parent=0 // loop_header_branch
    %13 = sbr.rel (%p11) target = $region8
  $region5: #{decoder_forward.8} parent=0 // loop_body
    %s15 = ssub.s32 %s10, 1
    %s16 = ssub.s32 %s10, 2
    %s17 = sadd.s32 %s10, 1
    %s19 = sadd.s32 %s18, 1
    %p22 = scmp.eq.s32.totalorder %s10, 5
    %p23 = scmp.ne.s32.totalorder %s18, %s20
    %p24 = scmp.eq.s32.totalorder %s10, 0
    %p25 = por %p23, %p24
    %p26 = scmp.ne.s32.totalorder %s18, %s20
    %p27 = scmp.eq.s32.totalorder %s15, 5
    %p28 = por %p26, %p27
    %p29 = scmp.ne.s32.totalorder %s20, %s21
    %p30 = scmp.eq.s32.totalorder %s15, 0
    %p31 = por %p29, %p30
    %p32 = scmp.ne.s32.totalorder %s20, %s21
    %p33 = scmp.eq.s32.totalorder %s16, 5
    %p34 = por %p32, %p33
    %p36 = scmp.ne.s32.totalorder %s21, %s35
    %p37 = scmp.eq.s32.totalorder %s16, 0
    %p38 = por %p36, %p37
    %s40 = sadd.s32 %s39, 1
    %p43 = scmp.eq.s32.totalorder %s10, 5
    %p44 = scmp.ne.s32.totalorder %s39, %s41
    %p45 = scmp.eq.s32.totalorder %s10, 0
    %p46 = por %p44, %p45
    %p47 = scmp.ne.s32.totalorder %s39, %s41
    %p48 = scmp.eq.s32.totalorder %s15, 5
    %p49 = por %p47, %p48
    %p50 = scmp.ne.s32.totalorder %s41, %s42
    %p51 = scmp.eq.s32.totalorder %s15, 0
    %p52 = por %p50, %p51
    %p53 = scmp.ne.s32.totalorder %s41, %s42
    %p54 = scmp.eq.s32.totalorder %s16, 5
    %p55 = por %p53, %p54
    %p57 = scmp.ne.s32.totalorder %s42, %s56
    %p58 = scmp.eq.s32.totalorder %s16, 0
    %p59 = por %p57, %p58
    %s60 = ssub.s32 %s10, %s17
    %p61 = scmp.eq.s32.totalorder %s60, 0
    %s63 = sadd.s32 %s62, 1
    %s64 = scalar_select %p61, %s62, %s63
    %p67 = pneg %p61
    %p68 = scmp.eq.s32.totalorder %s10, 5
    %p69 = por %p67, %p68
    %p70 = scmp.ne.s32.totalorder %s62, %s65
    %p71 = scmp.eq.s32.totalorder %s10, 0
    %p72 = por %p70, %p71
    %p73 = scmp.ne.s32.totalorder %s62, %s65
    %p74 = scmp.eq.s32.totalorder %s15, 5
    %p75 = por %p73, %p74
    %p76 = scmp.ne.s32.totalorder %s65, %s66
    %p77 = scmp.eq.s32.totalorder %s15, 0
    %p78 = por %p76, %p77
    %p79 = scmp.ne.s32.totalorder %s65, %s66
    %p80 = scmp.eq.s32.totalorder %s16, 5
    %p81 = por %p79, %p80
    %p83 = scmp.ne.s32.totalorder %s66, %s82
    %p84 = scmp.eq.s32.totalorder %s16, 0
    %p85 = por %p83, %p84
    %s87 = sadd.s32 %s86, 1
    %p90 = scmp.eq.s32.totalorder %s10, 5
    %p91 = scmp.ne.s32.totalorder %s86, %s88
    %p92 = scmp.eq.s32.totalorder %s10, 0
    %p93 = por %p91, %p92
    %p94 = scmp.ne.s32.totalorder %s86, %s88
    %p95 = scmp.eq.s32.totalorder %s15, 5
    %p96 = por %p94, %p95
    %p97 = scmp.ne.s32.totalorder %s88, %s89
    %p98 = scmp.eq.s32.totalorder %s15, 0
    %p99 = por %p97, %p98
    %p100 = scmp.ne.s32.totalorder %s88, %s89
    %p101 = scmp.eq.s32.totalorder %s16, 5
    %p102 = por %p100, %p101
    %p104 = scmp.ne.s32.totalorder %s89, %s103
    %p105 = scmp.eq.s32.totalorder %s16, 0
    %p106 = por %p104, %p105
    %s107 = ssub.s32 %s10, %s17
    %p108 = scmp.eq.s32.totalorder %s107, 0
    %s110 = sadd.s32 %s109, 1
    %s111 = scalar_select %p108, %s109, %s110
    %p114 = pneg %p108
    %p115 = scmp.eq.s32.totalorder %s10, 5
    %p116 = por %p114, %p115
    %p117 = scmp.ne.s32.totalorder %s109, %s112
    %p118 = scmp.eq.s32.totalorder %s10, 0
    %p119 = por %p117, %p118
    %p120 = scmp.ne.s32.totalorder %s109, %s112
    %p121 = scmp.eq.s32.totalorder %s15, 5
    %p122 = por %p120, %p121
    %p123 = scmp.ne.s32.totalorder %s112, %s113
    %p124 = scmp.eq.s32.totalorder %s15, 0
    %p125 = por %p123, %p124
    %p126 = scmp.ne.s32.totalorder %s112, %s113
    %p127 = scmp.eq.s32.totalorder %s16, 5
    %p128 = por %p126, %p127
    %p130 = scmp.ne.s32.totalorder %s113, %s129
    %p131 = scmp.eq.s32.totalorder %s16, 0
    %p132 = por %p130, %p131
    %p133 = scmp.le.s32.totalorder 1, %s10
    %p134 = scmp.lt.s32.totalorder %s10, 7
    %p135 = pnand %p133, %p134
    %p136 = pneg %p135
    // Predicated region
    $region9: #{decoder_forward.8} parent=5 // pred_check
      _
    $region10: #{decoder_forward.8} parent=5 // pred_check_branch
      %138 = sbr.rel (%p135) target = $region12
    $region11: #{decoder_forward.8} parent=5 // pred_region
      %s139 = ssub.s32 %s10, 1
      // Predicated region
      $region13: #{decoder_forward.8} parent=11 // pred_check
        %p140 = pneg %p31
      $region14: #{decoder_forward.8} parent=11 // pred_check_branch
        %142 = sbr.rel (%p140) target = $region16
      $region15: #{decoder_forward.8} parent=11 // pred_region
        _
      $region16: #{decoder_forward.8} parent=11 // pred_fallthru
        _
      // Predicated region
      $region17: #{decoder_forward.8} parent=11 // pred_check
        %p143 = pneg %p52
      $region18: #{decoder_forward.8} parent=11 // pred_check_branch
        %145 = sbr.rel (%p143) target = $region20
      $region19: #{decoder_forward.8} parent=11 // pred_region
        _
      $region20: #{decoder_forward.8} parent=11 // pred_fallthru
        _
      // Predicated region
      $region21: #{decoder_forward.8} parent=11 // pred_check
        %p146 = pneg %p99
      $region22: #{decoder_forward.8} parent=11 // pred_check_branch
        %148 = sbr.rel (%p146) target = $region24
      $region23: #{decoder_forward.8} parent=11 // pred_region
        _
      $region24: #{decoder_forward.8} parent=11 // pred_fallthru
        _
    $region12: #{decoder_forward.8} parent=5 // pred_fallthru
      _
    %p149 = scmp.lt.s32.totalorder %s10, 6
    // Predicated region
    $region25: #{decoder_forward.8} parent=5 // pred_check
      %p150 = pneg %p149
    $region26: #{decoder_forward.8} parent=5 // pred_check_branch
      %152 = sbr.rel (%p150) target = $region28
    $region27: #{decoder_forward.8} parent=5 // pred_region
      // Predicated region
      $region29: #{decoder_forward.8} parent=27 // pred_check
        %p153 = pneg %p72
      $region30: #{decoder_forward.8} parent=27 // pred_check_branch
        %155 = sbr.rel (%p153) target = $region32
      $region31: #{decoder_forward.8} parent=27 // pred_region
        %s156 = smul.u32 64, %s10
        %p157 = scmp.lt.s32.totalorder %s156, 383
        %s158 = scalar_select %p157, %s156, 383
        %s159 = smul.addr %s158, 8
        %s160 = scalar_lea.vmem %s2, %s159
        %s161 = smul.u32 64, %s10
      $region32: #{decoder_forward.8} parent=27 // pred_fallthru
        _
    $region28: #{decoder_forward.8} parent=5 // pred_fallthru
      _
    %p162 = scmp.le.s32.totalorder 1, %s10
    %p163 = scmp.lt.s32.totalorder %s10, 7
    %p164 = pnand %p162, %p163
    %p165 = pneg %p164
    // Predicated region
    $region33: #{decoder_forward.8} parent=5 // pred_check
      _
    $region34: #{decoder_forward.8} parent=5 // pred_check_branch
      %167 = sbr.rel (%p164) target = $region36
    $region35: #{decoder_forward.8} parent=5 // pred_region
      %s168 = ssub.s32 %s10, 1
      %p169 = pneg %p31
      %p170 = pneg %p28
      %p171 = pneg %p52
      %p172 = pneg %p49
      %s173 = smul.u32 64, %s15
      %p174 = scmp.lt.s32.totalorder %s173, 383
      %s175 = scalar_select %p174, %s173, 383
      %s176 = smul.addr %s175, 8
      %s177 = scalar_lea.vmem %s2, %s176
      %p178 = pneg %p78
      %p179 = pneg %p75
      %p180 = pneg %p99
      %p181 = pneg %p96
      %p182 = pneg %p125
      %p183 = pneg %p122
      %s184 = smul.u32 4, %s15
      %p185 = scmp.lt.s32.totalorder %s184, 23
      %s186 = scalar_select %p185, %s184, 23
      %s187 = smul.addr %s186, 4
      %s188 = scalar_lea.vmem %s4, %s187
      %s189 = smul.u32 64, %s15
      %p190 = scmp.lt.s32.totalorder %s189, 383
      %s191 = scalar_select %p190, %s189, 383
      %s192 = smul.addr %s191, 8
      %s193 = scalar_lea.vmem %s2, %s192
      %s194 = smul.u32 64, %s15
      %s195 = smul.u32 4, %s15
      %p196 = scmp.lt.s32.totalorder %s195, 23
      %s197 = scalar_select %p196, %s195, 23
      %s198 = smul.addr %s197, 4
      %s199 = scalar_lea.vmem %s4, %s198
      %s200 = smul.u32 4, %s15
      %v201 = vld [vmem:[%s193] sm:$0xff]
      %v202 = vld [vmem:[%s193 + $0x8] sm:$0xff]
      %v203 = vld [vmem:[%s193 + $0x10] sm:$0xff]
      %v204 = vld [vmem:[%s193 + $0x18] sm:$0xff]
      %v205 = vld [vmem:[%s193 + $0x20] sm:$0xff]
      %v206 = vld [vmem:[%s193 + $0x28] sm:$0xff]
      %v207 = vld [vmem:[%s193 + $0x30] sm:$0xff]
      %v208 = vld [vmem:[%s193 + $0x38] sm:$0xff]
      %v209 = vld [vmem:[%s193 + $0x40] sm:$0xff]
      %v210 = vld [vmem:[%s193 + $0x48] sm:$0xff]
      %v211 = vld [vmem:[%s193 + $0x50] sm:$0xff]
      %v212 = vld [vmem:[%s193 + $0x58] sm:$0xff]
      %v213 = vld [vmem:[%s193 + $0x60] sm:$0xff]
      %v214 = vld [vmem:[%s193 + $0x68] sm:$0xff]
      %v215 = vld [vmem:[%s193 + $0x70] sm:$0xff]
      %v216 = vld [vmem:[%s193 + $0x78] sm:$0xff]
      %v217 = vld [vmem:[%s193 + $0x80] sm:$0xff]
      %v218 = vld [vmem:[%s193 + $0x88] sm:$0xff]
      %v219 = vld [vmem:[%s193 + $0x90] sm:$0xff]
      %v220 = vld [vmem:[%s193 + $0x98] sm:$0xff]
      %v221 = vld [vmem:[%s193 + $0xa0] sm:$0xff]
      %v222 = vld [vmem:[%s193 + $0xa8] sm:$0xff]
      %v223 = vld [vmem:[%s193 + $0xb0] sm:$0xff]
      %v224 = vld [vmem:[%s193 + $0xb8] sm:$0xff]
      %v225 = vld [vmem:[%s193 + $0xc0] sm:$0xff]
      %v226 = vld [vmem:[%s193 + $0xc8] sm:$0xff]
      %v227 = vld [vmem:[%s193 + $0xd0] sm:$0xff]
      %v228 = vld [vmem:[%s193 + $0xd8] sm:$0xff]
      %v229 = vld [vmem:[%s193 + $0xe0] sm:$0xff]
      %v230 = vld [vmem:[%s193 + $0xe8] sm:$0xff]
      %v231 = vld [vmem:[%s193 + $0xf0] sm:$0xff]
      %v232 = vld [vmem:[%s193 + $0xf8] sm:$0xff]
      %v233 = vld [vmem:[%s193 + $0x100] sm:$0xff]
      %v234 = vld [vmem:[%s193 + $0x108] sm:$0xff]
      %v235 = vld [vmem:[%s193 + $0x110] sm:$0xff]
      %v236 = vld [vmem:[%s193 + $0x118] sm:$0xff]
      %v237 = vld [vmem:[%s193 + $0x120] sm:$0xff]
      %v238 = vld [vmem:[%s193 + $0x128] sm:$0xff]
      %v239 = vld [vmem:[%s193 + $0x130] sm:$0xff]
      %v240 = vld [vmem:[%s193 + $0x138] sm:$0xff]
      %v241 = vld [vmem:[%s193 + $0x140] sm:$0xff]
      %v242 = vld [vmem:[%s193 + $0x148] sm:$0xff]
      %v243 = vld [vmem:[%s193 + $0x150] sm:$0xff]
      %v244 = vld [vmem:[%s193 + $0x158] sm:$0xff]
      %v245 = vld [vmem:[%s193 + $0x160] sm:$0xff]
      %v246 = vld [vmem:[%s193 + $0x168] sm:$0xff]
      %v247 = vld [vmem:[%s193 + $0x170] sm:$0xff]
      %v248 = vld [vmem:[%s193 + $0x178] sm:$0xff]
      %v249 = vld [vmem:[%s193 + $0x180] sm:$0xff]
      %v250 = vld [vmem:[%s193 + $0x188] sm:$0xff]
      %v251 = vld [vmem:[%s193 + $0x190] sm:$0xff]
      %v252 = vld [vmem:[%s193 + $0x198] sm:$0xff]
      %v253 = vld [vmem:[%s193 + $0x1a0] sm:$0xff]
      %v254 = vld [vmem:[%s193 + $0x1a8] sm:$0xff]
      %v255 = vld [vmem:[%s193 + $0x1b0] sm:$0xff]
      %v256 = vld [vmem:[%s193 + $0x1b8] sm:$0xff]
      %v257 = vld [vmem:[%s193 + $0x1c0] sm:$0xff]
      %v258 = vld [vmem:[%s193 + $0x1c8] sm:$0xff]
      %v259 = vld [vmem:[%s193 + $0x1d0] sm:$0xff]
      %v260 = vld [vmem:[%s193 + $0x1d8] sm:$0xff]
      %v261 = vld [vmem:[%s193 + $0x1e0] sm:$0xff]
      %v262 = vld [vmem:[%s193 + $0x1e8] sm:$0xff]
      %v263 = vld [vmem:[%s193 + $0x1f0] sm:$0xff]
      %v264 = vld [vmem:[%s193 + $0x1f8] sm:$0xff]
      %v265 = vld [vmem:[%s0] sm:$0x1]
      %v267 = vperm.slane %v265, 0
      %v269 = vmul.f32 %v201, %v267
      %v270 = vmul.f32 %v202, %v267
      %v271 = vmul.f32 %v203, %v267
      %v272 = vmul.f32 %v204, %v267
      %v273 = vmul.f32 %v205, %v267
      %v274 = vmul.f32 %v206, %v267
      %v275 = vmul.f32 %v207, %v267
      %v276 = vmul.f32 %v208, %v267
      %v277 = vmul.f32 %v209, %v267
      %v278 = vmul.f32 %v210, %v267
      %v279 = vmul.f32 %v211, %v267
      %v280 = vmul.f32 %v212, %v267
      %v281 = vmul.f32 %v213, %v267
      %v282 = vmul.f32 %v214, %v267
      %v283 = vmul.f32 %v215, %v267
      %v284 = vmul.f32 %v216, %v267
      %v285 = vmul.f32 %v217, %v267
      %v286 = vmul.f32 %v218, %v267
      %v287 = vmul.f32 %v219, %v267
      %v288 = vmul.f32 %v220, %v267
      %v289 = vmul.f32 %v221, %v267
      %v290 = vmul.f32 %v222, %v267
      %v291 = vmul.f32 %v223, %v267
      %v292 = vmul.f32 %v224, %v267
      %v293 = vmul.f32 %v225, %v267
      %v294 = vmul.f32 %v226, %v267
      %v295 = vmul.f32 %v227, %v267
      %v296 = vmul.f32 %v228, %v267
      %v297 = vmul.f32 %v229, %v267
      %v298 = vmul.f32 %v230, %v267
      %v299 = vmul.f32 %v231, %v267
      %v300 = vmul.f32 %v232, %v267
      %v301 = vmul.f32 %v233, %v267
      %v302 = vmul.f32 %v234, %v267
      %v303 = vmul.f32 %v235, %v267
      %v304 = vmul.f32 %v236, %v267
      %v305 = vmul.f32 %v237, %v267
      %v306 = vmul.f32 %v238, %v267
      %v307 = vmul.f32 %v239, %v267
      %v308 = vmul.f32 %v240, %v267
      %v309 = vmul.f32 %v241, %v267
      %v310 = vmul.f32 %v242, %v267
      %v311 = vmul.f32 %v243, %v267
      %v312 = vmul.f32 %v244, %v267
      %v313 = vmul.f32 %v245, %v267
      %v314 = vmul.f32 %v246, %v267
      %v315 = vmul.f32 %v247, %v267
      %v316 = vmul.f32 %v248, %v267
      %v317 = vmul.f32 %v249, %v267
      %v318 = vmul.f32 %v250, %v267
      %v319 = vmul.f32 %v251, %v267
      %v320 = vmul.f32 %v252, %v267
      %v321 = vmul.f32 %v253, %v267
      %v322 = vmul.f32 %v254, %v267
      %v323 = vmul.f32 %v255, %v267
      %v324 = vmul.f32 %v256, %v267
      %v325 = vmul.f32 %v257, %v267
      %v326 = vmul.f32 %v258, %v267
      %v327 = vmul.f32 %v259, %v267
      %v328 = vmul.f32 %v260, %v267
      %v329 = vmul.f32 %v261, %v267
      %v330 = vmul.f32 %v262, %v267
      %v331 = vmul.f32 %v263, %v267
      %v332 = vmul.f32 %v264, %v267
      %v333 = vld [vmem:[%s1] sm:$0x1]
      %v335 = vperm.slane %v333, 0
      %v337 = vadd.f32 %v269, %v335
      %v338 = vadd.f32 %v270, %v335
      %v339 = vadd.f32 %v271, %v335
      %v340 = vadd.f32 %v272, %v335
      %v341 = vadd.f32 %v273, %v335
      %v342 = vadd.f32 %v274, %v335
      %v343 = vadd.f32 %v275, %v335
      %v344 = vadd.f32 %v276, %v335
      %v345 = vadd.f32 %v277, %v335
      %v346 = vadd.f32 %v278, %v335
      %v347 = vadd.f32 %v279, %v335
      %v348 = vadd.f32 %v280, %v335
      %v349 = vadd.f32 %v281, %v335
      %v350 = vadd.f32 %v282, %v335
      %v351 = vadd.f32 %v283, %v335
      %v352 = vadd.f32 %v284, %v335
      %v353 = vadd.f32 %v285, %v335
      %v354 = vadd.f32 %v286, %v335
      %v355 = vadd.f32 %v287, %v335
      %v356 = vadd.f32 %v288, %v335
      %v357 = vadd.f32 %v289, %v335
      %v358 = vadd.f32 %v290, %v335
      %v359 = vadd.f32 %v291, %v335
      %v360 = vadd.f32 %v292, %v335
      %v361 = vadd.f32 %v293, %v335
      %v362 = vadd.f32 %v294, %v335
      %v363 = vadd.f32 %v295, %v335
      %v364 = vadd.f32 %v296, %v335
      %v365 = vadd.f32 %v297, %v335
      %v366 = vadd.f32 %v298, %v335
      %v367 = vadd.f32 %v299, %v335
      %v368 = vadd.f32 %v300, %v335
      %v369 = vadd.f32 %v301, %v335
      %v370 = vadd.f32 %v302, %v335
      %v371 = vadd.f32 %v303, %v335
      %v372 = vadd.f32 %v304, %v335
      %v373 = vadd.f32 %v305, %v335
      %v374 = vadd.f32 %v306, %v335
      %v375 = vadd.f32 %v307, %v335
      %v376 = vadd.f32 %v308, %v335
      %v377 = vadd.f32 %v309, %v335
      %v378 = vadd.f32 %v310, %v335
      %v379 = vadd.f32 %v311, %v335
      %v380 = vadd.f32 %v312, %v335
      %v381 = vadd.f32 %v313, %v335
      %v382 = vadd.f32 %v314, %v335
      %v383 = vadd.f32 %v315, %v335
      %v384 = vadd.f32 %v316, %v335
      %v385 = vadd.f32 %v317, %v335
      %v386 = vadd.f32 %v318, %v335
      %v387 = vadd.f32 %v319, %v335
      %v388 = vadd.f32 %v320, %v335
      %v389 = vadd.f32 %v321, %v335
      %v390 = vadd.f32 %v322, %v335
      %v391 = vadd.f32 %v323, %v335
      %v392 = vadd.f32 %v324, %v335
      %v393 = vadd.f32 %v325, %v335
      %v394 = vadd.f32 %v326, %v335
      %v395 = vadd.f32 %v327, %v335
      %v396 = vadd.f32 %v328, %v335
      %v397 = vadd.f32 %v329, %v335
      %v398 = vadd.f32 %v330, %v335
      %v399 = vadd.f32 %v331, %v335
      %v400 = vadd.f32 %v332, %v335
      %v401 = vmax.f32 %v337, 0.0
      %v402 = vmax.f32 %v338, 0.0
      %v403 = vmax.f32 %v339, 0.0
      %v404 = vmax.f32 %v340, 0.0
      %v405 = vmax.f32 %v341, 0.0
      %v406 = vmax.f32 %v342, 0.0
      %v407 = vmax.f32 %v343, 0.0
      %v408 = vmax.f32 %v344, 0.0
      %v409 = vmax.f32 %v345, 0.0
      %v410 = vmax.f32 %v346, 0.0
      %v411 = vmax.f32 %v347, 0.0
      %v412 = vmax.f32 %v348, 0.0
      %v413 = vmax.f32 %v349, 0.0
      %v414 = vmax.f32 %v350, 0.0
      %v415 = vmax.f32 %v351, 0.0
      %v416 = vmax.f32 %v352, 0.0
      %v417 = vmax.f32 %v353, 0.0
      %v418 = vmax.f32 %v354, 0.0
      %v419 = vmax.f32 %v355, 0.0
      %v420 = vmax.f32 %v356, 0.0
      %v421 = vmax.f32 %v357, 0.0
      %v422 = vmax.f32 %v358, 0.0
      %v423 = vmax.f32 %v359, 0.0
      %v424 = vmax.f32 %v360, 0.0
      %v425 = vmax.f32 %v361, 0.0
      %v426 = vmax.f32 %v362, 0.0
      %v427 = vmax.f32 %v363, 0.0
      %v428 = vmax.f32 %v364, 0.0
      %v429 = vmax.f32 %v365, 0.0
      %v430 = vmax.f32 %v366, 0.0
      %v431 = vmax.f32 %v367, 0.0
      %v432 = vmax.f32 %v368, 0.0
      %v433 = vmax.f32 %v369, 0.0
      %v434 = vmax.f32 %v370, 0.0
      %v435 = vmax.f32 %v371, 0.0
      %v436 = vmax.f32 %v372, 0.0
      %v437 = vmax.f32 %v373, 0.0
      %v438 = vmax.f32 %v374, 0.0
      %v439 = vmax.f32 %v375, 0.0
      %v440 = vmax.f32 %v376, 0.0
      %v441 = vmax.f32 %v377, 0.0
      %v442 = vmax.f32 %v378, 0.0
      %v443 = vmax.f32 %v379, 0.0
      %v444 = vmax.f32 %v380, 0.0
      %v445 = vmax.f32 %v381, 0.0
      %v446 = vmax.f32 %v382, 0.0
      %v447 = vmax.f32 %v383, 0.0
      %v448 = vmax.f32 %v384, 0.0
      %v449 = vmax.f32 %v385, 0.0
      %v450 = vmax.f32 %v386, 0.0
      %v451 = vmax.f32 %v387, 0.0
      %v452 = vmax.f32 %v388, 0.0
      %v453 = vmax.f32 %v389, 0.0
      %v454 = vmax.f32 %v390, 0.0
      %v455 = vmax.f32 %v391, 0.0
      %v456 = vmax.f32 %v392, 0.0
      %v457 = vmax.f32 %v393, 0.0
      %v458 = vmax.f32 %v394, 0.0
      %v459 = vmax.f32 %v395, 0.0
      %v460 = vmax.f32 %v396, 0.0
      %v461 = vmax.f32 %v397, 0.0
      %v462 = vmax.f32 %v398, 0.0
      %v463 = vmax.f32 %v399, 0.0
      %v464 = vmax.f32 %v400, 0.0
      %v465 = vld [vmem:[%s3] sm:$0xf]
      %vm466 = vcmask 261120
      %v468 = vsel %vm466, %v465, 0
      %v471 = vsel %vm466, %v401, 0
      %v474 = vsel %vm466, %v402, 0
      %v477 = vsel %vm466, %v403, 0
      %v480 = vsel %vm466, %v404, 0
      %v483 = vsel %vm466, %v405, 0
      %v486 = vsel %vm466, %v406, 0
      %v489 = vsel %vm466, %v407, 0
      %v492 = vsel %vm466, %v408, 0
      %v495 = vsel %vm466, %v409, 0
      %v498 = vsel %vm466, %v410, 0
      %v501 = vsel %vm466, %v411, 0
      %v504 = vsel %vm466, %v412, 0
      %v507 = vsel %vm466, %v413, 0
      %v510 = vsel %vm466, %v414, 0
      %v513 = vsel %vm466, %v415, 0
      %v516 = vsel %vm466, %v416, 0
      %v519 = vsel %vm466, %v417, 0
      %v522 = vsel %vm466, %v418, 0
      %v525 = vsel %vm466, %v419, 0
      %v528 = vsel %vm466, %v420, 0
      %v531 = vsel %vm466, %v421, 0
      %v534 = vsel %vm466, %v422, 0
      %v537 = vsel %vm466, %v423, 0
      %v540 = vsel %vm466, %v424, 0
      %v543 = vsel %vm466, %v425, 0
      %v546 = vsel %vm466, %v426, 0
      %v549 = vsel %vm466, %v427, 0
      %v552 = vsel %vm466, %v428, 0
      %v555 = vsel %vm466, %v429, 0
      %v558 = vsel %vm466, %v430, 0
      %v561 = vsel %vm466, %v431, 0
      %v564 = vsel %vm466, %v432, 0
      %v567 = vsel %vm466, %v433, 0
      %v570 = vsel %vm466, %v434, 0
      %v573 = vsel %vm466, %v435, 0
      %v576 = vsel %vm466, %v436, 0
      %v579 = vsel %vm466, %v437, 0
      %v582 = vsel %vm466, %v438, 0
      %v585 = vsel %vm466, %v439, 0
      %v588 = vsel %vm466, %v440, 0
      %v591 = vsel %vm466, %v441, 0
      %v594 = vsel %vm466, %v442, 0
      %v597 = vsel %vm466, %v443, 0
      %v600 = vsel %vm466, %v444, 0
      %v603 = vsel %vm466, %v445, 0
      %v606 = vsel %vm466, %v446, 0
      %v609 = vsel %vm466, %v447, 0
      %v612 = vsel %vm466, %v448, 0
      %v615 = vsel %vm466, %v449, 0
      %v618 = vsel %vm466, %v450, 0
      %v621 = vsel %vm466, %v451, 0
      %v624 = vsel %vm466, %v452, 0
      %v627 = vsel %vm466, %v453, 0
      %v630 = vsel %vm466, %v454, 0
      %v633 = vsel %vm466, %v455, 0
      %v636 = vsel %vm466, %v456, 0
      %v639 = vsel %vm466, %v457, 0
      %v642 = vsel %vm466, %v458, 0
      %v645 = vsel %vm466, %v459, 0
      %v648 = vsel %vm466, %v460, 0
      %v651 = vsel %vm466, %v461, 0
      %v654 = vsel %vm466, %v462, 0
      %v657 = vsel %vm466, %v463, 0
      %v660 = vsel %vm466, %v464, 0
      %662 = vmatpush.xpose.msra.mxu0 %v516
      %663 = vmatpush.xpose.msra.mxu0 %v513
      %664 = vmatpush.xpose.msra.mxu0 %v510
      %665 = vmatpush.xpose.msra.mxu0 %v507
      %666 = vmatpush.xpose.msra.mxu0 %v504
      %667 = vmatpush.xpose.msra.mxu0 %v501
      %668 = vmatpush.xpose.msra.mxu0 %v498
      %669 = vmatpush.xpose.msra.mxu0 %v495
      %670 = vmatpush.xpose.msra.mxu0 %v492
      %671 = vmatpush.xpose.msra.mxu0 %v489
      %672 = vmatpush.xpose.msra.mxu0 %v486
      %673 = vmatpush.xpose.msra.mxu0 %v483
      %674 = vmatpush.xpose.msra.mxu0 %v480
      %675 = vmatpush.xpose.msra.mxu0 %v477
      %676 = vmatpush.xpose.msra.mxu0 %v474
      %677 = vmatpush.xpose.msra.mxu0 %v471
      %678 = vmatmul.f32.gmra.mxu0 %v468
      %v679 = vpop.f32.mrf.mxu0
      %v680 = vadd.f32 0.0, %v679
      %681 = vdwg.mxu0
      %682 = vmatpush.xpose.msra.mxu0 %v564
      %683 = vmatpush.xpose.msra.mxu0 %v561
      %684 = vmatpush.xpose.msra.mxu0 %v558
      %685 = vmatpush.xpose.msra.mxu0 %v555
      %686 = vmatpush.xpose.msra.mxu0 %v552
      %687 = vmatpush.xpose.msra.mxu0 %v549
      %688 = vmatpush.xpose.msra.mxu0 %v546
      %689 = vmatpush.xpose.msra.mxu0 %v543
      %690 = vmatpush.xpose.msra.mxu0 %v540
      %691 = vmatpush.xpose.msra.mxu0 %v537
      %692 = vmatpush.xpose.msra.mxu0 %v534
      %693 = vmatpush.xpose.msra.mxu0 %v531
      %694 = vmatpush.xpose.msra.mxu0 %v528
      %695 = vmatpush.xpose.msra.mxu0 %v525
      %696 = vmatpush.xpose.msra.mxu0 %v522
      %697 = vmatpush.xpose.msra.mxu0 %v519
      %698 = vmatmul.f32.gmra.mxu0 %v468
      %v699 = vpop.f32.mrf.mxu0
      %v700 = vadd.f32 0.0, %v699
      %701 = vdwg.mxu0
      %702 = vmatpush.xpose.msra.mxu0 %v612
      %703 = vmatpush.xpose.msra.mxu0 %v609
      %704 = vmatpush.xpose.msra.mxu0 %v606
      %705 = vmatpush.xpose.msra.mxu0 %v603
      %706 = vmatpush.xpose.msra.mxu0 %v600
      %707 = vmatpush.xpose.msra.mxu0 %v597
      %708 = vmatpush.xpose.msra.mxu0 %v594
      %709 = vmatpush.xpose.msra.mxu0 %v591
      %710 = vmatpush.xpose.msra.mxu0 %v588
      %711 = vmatpush.xpose.msra.mxu0 %v585
      %712 = vmatpush.xpose.msra.mxu0 %v582
      %713 = vmatpush.xpose.msra.mxu0 %v579
      %714 = vmatpush.xpose.msra.mxu0 %v576
      %715 = vmatpush.xpose.msra.mxu0 %v573
      %716 = vmatpush.xpose.msra.mxu0 %v570
      %717 = vmatpush.xpose.msra.mxu0 %v567
      %718 = vmatmul.f32.gmra.mxu0 %v468
      %v719 = vpop.f32.mrf.mxu0
      %v720 = vadd.f32 0.0, %v719
      %721 = vdwg.mxu0
      %722 = vmatpush.xpose.msra.mxu0 %v660
      %723 = vmatpush.xpose.msra.mxu0 %v657
      %724 = vmatpush.xpose.msra.mxu0 %v654
      %725 = vmatpush.xpose.msra.mxu0 %v651
      %726 = vmatpush.xpose.msra.mxu0 %v648
      %727 = vmatpush.xpose.msra.mxu0 %v645
      %728 = vmatpush.xpose.msra.mxu0 %v642
      %729 = vmatpush.xpose.msra.mxu0 %v639
      %730 = vmatpush.xpose.msra.mxu0 %v636
      %731 = vmatpush.xpose.msra.mxu0 %v633
      %732 = vmatpush.xpose.msra.mxu0 %v630
      %733 = vmatpush.xpose.msra.mxu0 %v627
      %734 = vmatpush.xpose.msra.mxu0 %v624
      %735 = vmatpush.xpose.msra.mxu0 %v621
      %736 = vmatpush.xpose.msra.mxu0 %v618
      %737 = vmatpush.xpose.msra.mxu0 %v615
      %738 = vmatmul.f32.gmra.mxu0 %v468
      %v739 = vpop.f32.mrf.mxu0
      %v740 = vadd.f32 0.0, %v739
      %741 = vdwg.mxu0
      %v746 = vrot.slane %v700, 4
      %v747 = vrot.slane %v740, 4
      %vm748 = vcmask 1043456
      %v749 = vsel %vm748, %v680, %v746
      %v750 = vsel %vm748, %v720, %v747
      %753 = vst [vmem:[%s199] sm:$0xff] %v749
      %754 = vst [vmem:[%s199 + $0x8] sm:$0xff] %v750
      %s755 = smul.u32 4, %s15
      %p756 = scmp.lt.s32.totalorder %s755, 23
      %s757 = scalar_select %p756, %s755, 23
      %s758 = smul.addr %s757, 4
      %s759 = scalar_lea.vmem %s4, %s758
      // Predicated region
      $region37: #{decoder_forward.8} parent=35 // pred_check
        %p760 = pneg %p122
      $region38: #{decoder_forward.8} parent=35 // pred_check_branch
        %762 = sbr.rel (%p760) target = $region40
      $region39: #{decoder_forward.8} parent=35 // pred_region
        %s763 = smul.u32 4, %s15
      $region40: #{decoder_forward.8} parent=35 // pred_fallthru
        _
    $region36: #{decoder_forward.8} parent=5 // pred_fallthru
      _
    %p764 = scmp.le.s32.totalorder 2, %s10
    // Predicated region
    $region41: #{decoder_forward.8} parent=5 // pred_check
      %p765 = pneg %p764
    $region42: #{decoder_forward.8} parent=5 // pred_check_branch
      %767 = sbr.rel (%p765) target = $region44
    $region43: #{decoder_forward.8} parent=5 // pred_region
      %s768 = ssub.s32 %s10, 2
      // Predicated region
      $region45: #{decoder_forward.8} parent=43 // pred_check
        %p769 = pneg %p128
      $region46: #{decoder_forward.8} parent=43 // pred_check_branch
        %771 = sbr.rel (%p769) target = $region48
      $region47: #{decoder_forward.8} parent=43 // pred_region
        %s772 = smul.u32 4, %s16
        %p773 = scmp.lt.s32.totalorder %s772, 23
        %s774 = scalar_select %p773, %s772, 23
        %s775 = smul.addr %s774, 4
        %s776 = scalar_lea.vmem %s4, %s775
      $region48: #{decoder_forward.8} parent=43 // pred_fallthru
        _
    $region44: #{decoder_forward.8} parent=5 // pred_fallthru
      _
  $region6: #{decoder_forward.8} parent=0 // loop_footer
    %s14 = sadd.s32 1, %s10
  $region7: #{decoder_forward.8} parent=0 // loop_footer_branch
    %9 = sbr.rel target = $region3
  $region8: #{decoder_forward.8} parent=0 // loop_exit
    _

// kernel: decoder_forward.9
$region0: #{decoder_forward.9}
  #allocation0 [shape = 'u32[]', space=smem, size = 0x4, offset = 0x4, fixed_abs, tag = 'smem constant byte address 0x4 - core index']
  #allocation1 [shape = 'u32[72,128]{1,0:T(1,128)}', space=vmem, size = 0x9000, scoped, tag = 'internal scratch']
  %s0 = inlined_call_operand.vmem [shape: f32[8,784], index: 0, kind: input, shape index: {}]
  %s1 = inlined_call_operand.vmem [shape: f32[1,784], index: 1, kind: input, shape index: {}]
  %s2 = inlined_call_operand.vmem [shape: f32[8,784], index: 2, kind: output, shape index: {}]
  %s3 = sld [smem:[#allocation0]]
  $region18: #{decoder_forward.9} parent=0
    _
  %s5 = ssub.s32 1, %s3
  %s6 = scalar_select 0, %s5, %s3
  // Predicated region
  $region2: #{decoder_forward.9} parent=0 // pred_check
    _
  $region3: #{decoder_forward.9} parent=0 // pred_check_branch
    %8 = sbr.rel (0) target = $region5
  $region4: #{decoder_forward.9} parent=0 // pred_region
    _
  $region5: #{decoder_forward.9} parent=0 // pred_fallthru
    _
  // Predicated region
  $region6: #{decoder_forward.9} parent=0 // pred_check
    _
  $region7: #{decoder_forward.9} parent=0 // pred_check_branch
    %10 = sbr.rel (0) target = $region9
  $region8: #{decoder_forward.9} parent=0 // pred_region
    _
  $region9: #{decoder_forward.9} parent=0 // pred_fallthru
    _
  %v11 = vld [vmem:[%s0] sm:$0xff]
  %v12 = vld [vmem:[%s0 + $0x8] sm:$0xff]
  %v13 = vld [vmem:[%s0 + $0x10] sm:$0xff]
  %v14 = vld [vmem:[%s0 + $0x18] sm:$0xff]
  %v15 = vld [vmem:[%s0 + $0x20] sm:$0xff]
  %v16 = vld [vmem:[%s0 + $0x28] sm:$0xff]
  %v17 = vld [vmem:[%s0 + $0x30] sm:$0xff]
  %v18 = vld [vmem:[%s1] sm:$0x7f]
  %v20 = vperm.slane %v18, 0
  %v21 = vperm.slane %v18, 1
  %v22 = vperm.slane %v18, 2
  %v23 = vperm.slane %v18, 3
  %v24 = vperm.slane %v18, 4
  %v25 = vperm.slane %v18, 5
  %v26 = vperm.slane %v18, 6
  %v34 = vadd.f32 %v11, %v20
  %v35 = vadd.f32 %v12, %v21
  %v36 = vadd.f32 %v13, %v22
  %v37 = vadd.f32 %v14, %v23
  %v38 = vadd.f32 %v15, %v24
  %v39 = vadd.f32 %v16, %v25
  %v40 = vadd.f32 %v17, %v26
  %v41 = vsub.f32 0.0, %v34
  %v42 = vsub.f32 0.0, %v35
  %v43 = vsub.f32 0.0, %v36
  %v44 = vsub.f32 0.0, %v37
  %v45 = vsub.f32 0.0, %v38
  %v46 = vsub.f32 0.0, %v39
  %v47 = vsub.f32 0.0, %v40
  %v48 = vmul.f32 %v41, 1.442695
  %v49 = vpow.pop %v48
  %v50 = vmul.f32 %v42, 1.442695
  %v51 = vpow.pop %v50
  %v52 = vmul.f32 %v43, 1.442695
  %v53 = vpow.pop %v52
  %v54 = vmul.f32 %v44, 1.442695
  %v55 = vpow.pop %v54
  %v56 = vmul.f32 %v45, 1.442695
  %v57 = vpow.pop %v56
  %v58 = vmul.f32 %v46, 1.442695
  %v59 = vpow.pop %v58
  %v60 = vmul.f32 %v47, 1.442695
  %v61 = vpow.pop %v60
  %v62 = vadd.f32 %v49, 1.0
  %v63 = vadd.f32 %v51, 1.0
  %v64 = vadd.f32 %v53, 1.0
  %v65 = vadd.f32 %v55, 1.0
  %v66 = vadd.f32 %v57, 1.0
  %v67 = vadd.f32 %v59, 1.0
  %v68 = vadd.f32 %v61, 1.0
  %v69 = vrcp.pop %v62
  %v70 = vmul.f32 %v62, %v69
  %v71 = vsub.f32 1.0, %v70
  %v72 = vmul.f32 %v69, %v71
  %v73 = vadd.f32 %v69, %v72
  %vm74 = vweird.f32 %v62
  %vm75 = vweird.f32 %v69
  %vm76 = vmor %vm74, %vm75
  %v77 = vsel %vm76, %v69, %v73
  %v78 = vand.u32 2147483647, %v62
  %vm79 = vcmp.eq.f32.partialorder %v78, 8.507059e+37
  %v80 = vand.u32 %v62, 2147483648
  %v81 = vor.u32 1.1754944e-38, %v80
  %v82 = vsel %vm79, %v81, %v77
  %v83 = vmul.f32 1.0, %v82
  %v84 = vrcp.pop %v63
  %v85 = vmul.f32 %v63, %v84
  %v86 = vsub.f32 1.0, %v85
  %v87 = vmul.f32 %v84, %v86
  %v88 = vadd.f32 %v84, %v87
  %vm89 = vweird.f32 %v63
  %vm90 = vweird.f32 %v84
  %vm91 = vmor %vm89, %vm90
  %v92 = vsel %vm91, %v84, %v88
  %v93 = vand.u32 2147483647, %v63
  %vm94 = vcmp.eq.f32.partialorder %v93, 8.507059e+37
  %v95 = vand.u32 %v63, 2147483648
  %v96 = vor.u32 1.1754944e-38, %v95
  %v97 = vsel %vm94, %v96, %v92
  %v98 = vmul.f32 1.0, %v97
  %v99 = vrcp.pop %v64
  %v100 = vmul.f32 %v64, %v99
  %v101 = vsub.f32 1.0, %v100
  %v102 = vmul.f32 %v99, %v101
  %v103 = vadd.f32 %v99, %v102
  %vm104 = vweird.f32 %v64
  %vm105 = vweird.f32 %v99
  %vm106 = vmor %vm104, %vm105
  %v107 = vsel %vm106, %v99, %v103
  %v108 = vand.u32 2147483647, %v64
  %vm109 = vcmp.eq.f32.partialorder %v108, 8.507059e+37
  %v110 = vand.u32 %v64, 2147483648
  %v111 = vor.u32 1.1754944e-38, %v110
  %v112 = vsel %vm109, %v111, %v107
  %v113 = vmul.f32 1.0, %v112
  %v114 = vrcp.pop %v65
  %v115 = vmul.f32 %v65, %v114
  %v116 = vsub.f32 1.0, %v115
  %v117 = vmul.f32 %v114, %v116
  %v118 = vadd.f32 %v114, %v117
  %vm119 = vweird.f32 %v65
  %vm120 = vweird.f32 %v114
  %vm121 = vmor %vm119, %vm120
  %v122 = vsel %vm121, %v114, %v118
  %v123 = vand.u32 2147483647, %v65
  %vm124 = vcmp.eq.f32.partialorder %v123, 8.507059e+37
  %v125 = vand.u32 %v65, 2147483648
  %v126 = vor.u32 1.1754944e-38, %v125
  %v127 = vsel %vm124, %v126, %v122
  %v128 = vmul.f32 1.0, %v127
  %v129 = vrcp.pop %v66
  %v130 = vmul.f32 %v66, %v129
  %v131 = vsub.f32 1.0, %v130
  %v132 = vmul.f32 %v129, %v131
  %v133 = vadd.f32 %v129, %v132
  %vm134 = vweird.f32 %v66
  %vm135 = vweird.f32 %v129
  %vm136 = vmor %vm134, %vm135
  %v137 = vsel %vm136, %v129, %v133
  %v138 = vand.u32 2147483647, %v66
  %vm139 = vcmp.eq.f32.partialorder %v138, 8.507059e+37
  %v140 = vand.u32 %v66, 2147483648
  %v141 = vor.u32 1.1754944e-38, %v140
  %v142 = vsel %vm139, %v141, %v137
  %v143 = vmul.f32 1.0, %v142
  %v144 = vrcp.pop %v67
  %v145 = vmul.f32 %v67, %v144
  %v146 = vsub.f32 1.0, %v145
  %v147 = vmul.f32 %v144, %v146
  %v148 = vadd.f32 %v144, %v147
  %vm149 = vweird.f32 %v67
  %vm150 = vweird.f32 %v144
  %vm151 = vmor %vm149, %vm150
  %v152 = vsel %vm151, %v144, %v148
  %v153 = vand.u32 2147483647, %v67
  %vm154 = vcmp.eq.f32.partialorder %v153, 8.507059e+37
  %v155 = vand.u32 %v67, 2147483648
  %v156 = vor.u32 1.1754944e-38, %v155
  %v157 = vsel %vm154, %v156, %v152
  %v158 = vmul.f32 1.0, %v157
  %v159 = vrcp.pop %v68
  %v160 = vmul.f32 %v68, %v159
  %v161 = vsub.f32 1.0, %v160
  %v162 = vmul.f32 %v159, %v161
  %v163 = vadd.f32 %v159, %v162
  %vm164 = vweird.f32 %v68
  %vm165 = vweird.f32 %v159
  %vm166 = vmor %vm164, %vm165
  %v167 = vsel %vm166, %v159, %v163
  %v168 = vand.u32 2147483647, %v68
  %vm169 = vcmp.eq.f32.partialorder %v168, 8.507059e+37
  %v170 = vand.u32 %v68, 2147483648
  %v171 = vor.u32 1.1754944e-38, %v170
  %v172 = vsel %vm169, %v171, %v167
  %v173 = vmul.f32 1.0, %v172
  %174 = vst [vmem:[%s2] sm:$0xff] %v83
  %175 = vst [vmem:[%s2 + $0x8] sm:$0xff] %v98
  %176 = vst [vmem:[%s2 + $0x10] sm:$0xff] %v113
  %177 = vst [vmem:[%s2 + $0x18] sm:$0xff] %v128
  %178 = vst [vmem:[%s2 + $0x20] sm:$0xff] %v143
  %179 = vst [vmem:[%s2 + $0x28] sm:$0xff] %v158
  %vm180 = vcmask 130048
  %181 = vst.msk [vmem:[%s2 + $0x30] sm:$0xff] %vm180, %v173
  // Predicated region
  $region10: #{decoder_forward.9} parent=0 // pred_check
    _
  $region11: #{decoder_forward.9} parent=0 // pred_check_branch
    %183 = sbr.rel (0) target = $region13
  $region12: #{decoder_forward.9} parent=0 // pred_region
    _
  $region13: #{decoder_forward.9} parent=0 // pred_fallthru
    _
  // Predicated region
  $region14: #{decoder_forward.9} parent=0 // pred_check
    _
  $region15: #{decoder_forward.9} parent=0 // pred_check_branch
    %185 = sbr.rel (0) target = $region17
  $region16: #{decoder_forward.9} parent=0 // pred_region
    _
  $region17: #{decoder_forward.9} parent=0 // pred_fallthru
    _

</llo_original>
